<compile_context>
chip_gen: v7x
topology: tpu7x:2x2x1
jax: 0.10.0
libtpu: 0.0.40
codegen_flags: <defaults>
</compile_context>

<pallas_src>
import jax
import jax.numpy as jnp
from jax.experimental import pallas as pl
from jax.experimental.pallas import tpu as pltpu

NEG_SLOPE = 0.01  # F.leaky_relu default


def _leaky(x):
    return jnp.where(x > 0, x, NEG_SLOPE * x)


# ---------------------------------------------------------------------------
# Fused kernel: per-point features (both branches, block-diag) + running max
# over N + (on the last grid step) the folded attention-value / XYZ head.
# ---------------------------------------------------------------------------
def vg_kernel(pts_ref,                                  # (tile, 6) f32  [xyz | rgb]
              w1, b1, w2, b2, w3, b3,                   # block-diag conv weights (bf16) / f32 bias
              wm1, wm2, wm3, cmul,                      # split 115->224 mlp (bf16) + view_center const (f32)
              wh1, bh1, w32, b32,                       # folded head (f32)
              o_ref,                                    # (1, 3) f32 output
              acc_ref):                                 # (1, 448) f32 running-max scratch
    i = pl.program_id(0)

    @pl.when(i == 0)
    def _():
        acc_ref[...] = jnp.full(acc_ref.shape, -jnp.inf, acc_ref.dtype)

    bf = jnp.bfloat16
    f32 = jnp.float32

    pts = pts_ref[...].astype(bf)                                                    # (tile, 6)
    h1 = _leaky(jnp.dot(pts, w1[...], preferred_element_type=f32) + b1[...])         # (tile, 32)
    h2 = _leaky(jnp.dot(h1.astype(bf), w2[...], preferred_element_type=f32) + b2[...])  # (tile, 64)
    h3 = _leaky(jnp.dot(h2.astype(bf), w3[...], preferred_element_type=f32) + b3[...])  # (tile, 128)

    # 115 -> 224 conv per branch, fused to 448 outputs; three partial products
    # accumulate into a single f32 result (no in-kernel concat).
    o = (jnp.dot(h1.astype(bf), wm1[...], preferred_element_type=f32)
         + jnp.dot(h2.astype(bf), wm2[...], preferred_element_type=f32)
         + jnp.dot(h3.astype(bf), wm3[...], preferred_element_type=f32)
         + cmul[...])                                                                # (tile, 448)

    acc_ref[...] = jnp.maximum(acc_ref[...], jnp.max(o, axis=0, keepdims=True))

    @pl.when(i == pl.num_programs(0) - 1)
    def _():
        f = acc_ref[...]                                                             # (1, 448) = [f1 | f2]
        # seq_len == 1 attention == value projection, folded host-side into wh1/bh1.
        h = _leaky(jnp.dot(f, wh1[...], preferred_element_type=f32) + bh1[...])      # (1, 256)
        o_ref[...] = jnp.dot(h, w32[...], preferred_element_type=f32) + b32[...]     # (1, 3)


def _full_spec(shape):
    nd = len(shape)
    return pl.BlockSpec(shape, lambda i, _nd=nd: (0,) * _nd)


# ---------------------------------------------------------------------------
# Wrapper
# ---------------------------------------------------------------------------
def view_generate_pallas(xyz, rgb, normal, view_center, P, tile_n=1024):
    # `normal` is unused by the reference module's forward.
    del normal
    assert xyz.shape[0] == 1, "module semantics require batch == 1"
    assert tile_n % 8 == 0
    N = xyz.shape[1]

    # Pack both branches' points side by side: (N, 6) = [xyz | rgb].
    pts = jnp.concatenate([xyz[0], rgb[0]], axis=1).astype(jnp.float32)
    vc = view_center.astype(jnp.float32)[None, :]                     # (1, 3)

    # Tile selection + padding with DUPLICATE points (max-pool invariant).
    tile = min(tile_n, 8 * pl.cdiv(N, 8))
    n_pad = tile * pl.cdiv(N, tile)
    if n_pad != N:
        pad = jnp.broadcast_to(pts[:1], (n_pad - N, 6))
        pts = jnp.concatenate([pts, pad], axis=0)

    # ---- host-side parameter plumbing (plain JAX glue) ----
    bf = jnp.bfloat16

    def T(name):
        return P[name].T

    def bd(a, b):  # block-diagonal [[a, 0], [0, b]]
        za = jnp.zeros((a.shape[0], b.shape[1]), jnp.float32)
        zb = jnp.zeros((b.shape[0], a.shape[1]), jnp.float32)
        return jnp.concatenate(
            [jnp.concatenate([a, za], axis=1),
             jnp.concatenate([zb, b], axis=1)], axis=0)

    w1 = bd(T('xc11w'), T('rc11w')).astype(bf)                        # (6, 32)
    b1 = jnp.concatenate([P['xc11b'], P['rc11b']])[None, :]
    w2 = bd(T('xc12w'), T('rc12w')).astype(bf)                        # (32, 64)
    b2 = jnp.concatenate([P['xc12b'], P['rc12b']])[None, :]
    w3 = bd(T('xc13w'), T('rc13w')).astype(bf)                        # (64, 128)
    b3 = jnp.concatenate([P['xc13b'], P['rc13b']])[None, :]

    wmx, wmr = T('xmw'), T('rmw')                                     # (115, 224) each
    wm1 = bd(wmx[:16],    wmr[:16]).astype(bf)                        # (32, 448)
    wm2 = bd(wmx[16:48],  wmr[16:48]).astype(bf)                      # (64, 448)
    wm3 = bd(wmx[48:112], wmr[48:112]).astype(bf)                     # (128, 448)
    cmul = jnp.concatenate([vc @ wmx[112:] + P['xmb'][None, :],
                            vc @ wmr[112:] + P['rmb'][None, :]], axis=1)  # (1, 448)

    # Head: fold the (block-diag) value projections directly into mlp31 (no
    # nonlinearity between them), then VGNet_XYZ.  Kept f32 (M == 1, negligible).
    wv = bd(T('att1_vw'), T('att2_vw'))                               # (448, 448)
    bv = jnp.concatenate([P['att1_vb'], P['att2_vb']])[None, :]       # (1, 448)
    wh1 = wv @ T('m31w')                                              # (448, 256)
    bh1 = bv @ T('m31w') + P['m31b'][None, :]                         # (1, 256)
    w32 = T('m32w')                                                   # (256, 3)
    b32 = P['m32b'][None, :]

    args = [pts, w1, b1, w2, b2, w3, b3, wm1, wm2, wm3, cmul,
            wh1, bh1, w32, b32]
    in_specs = [pl.BlockSpec((tile, 6), lambda i: (i, 0))] + \
               [_full_spec(a.shape) for a in args[1:]]

    out = pl.pallas_call(
        vg_kernel,
        out_shape=jax.ShapeDtypeStruct((1, 3), jnp.float32),
        grid=(n_pad // tile,),
        in_specs=in_specs,
        out_specs=pl.BlockSpec((1, 3), lambda i: (0, 0)),
        scratch_shapes=[pltpu.VMEM((1, 448), jnp.float32)],
        compiler_params=pltpu.CompilerParams(dimension_semantics=("arbitrary",)),
    )(*args)

    return out[None, :, :]   # (1, 1, 3), matching torch output (B, 1, 3)


# ---------------------------------------------------------------------------
# Plain-JAX reference (torch semantics, NCW conv layout, f32) for correctness
# ---------------------------------------------------------------------------
def reference(xyz, rgb, normal, view_center, P):
    del normal
    N = xyz.shape[1]

    def conv1(x_cn, w, b):          # x_cn: (C_in, N), w: (C_out, C_in)
        return w @ x_cn + b[:, None]

    def branch(pts, prefix):
        x = pts[0].T                                      # (3, N)
        x1 = _leaky(conv1(x, P[prefix + 'c11w'], P[prefix + 'c11b']))
        x2 = _leaky(conv1(x1, P[prefix + 'c12w'], P[prefix + 'c12b']))
        x3 = _leaky(conv1(x2, P[prefix + 'c13w'], P[prefix + 'c13b']))
        pf = jnp.concatenate([x1, x2, x3], axis=0)        # (112, N)
        vcN = jnp.broadcast_to(view_center[:, None], (3, N))
        cat = jnp.concatenate([pf, vcN], axis=0)          # (115, N)
        out = conv1(cat, P[prefix + 'mw'], P[prefix + 'mb'])  # (224, N)
        return jnp.max(out, axis=1)                       # (224,)

    f1 = branch(xyz, 'x')
    f2 = branch(rgb, 'r')
    a1 = P['att1_vw'] @ f1 + P['att1_vb']                 # seq_len==1 attention == value proj
    a2 = P['att2_vw'] @ f2 + P['att2_vb']
    feat = jnp.concatenate([a1, a2])                      # (448,)
    h = _leaky(P['m31w'] @ feat + P['m31b'])
    out = P['m32w'] @ h + P['m32b']
    return out[None, None, :]


# ---------------------------------------------------------------------------
def make_params(key):
    P = {}

    def add(name, shape, fan_in, k):
        bound = 1.0 / jnp.sqrt(jnp.float32(fan_in))
        P[name] = jax.random.uniform(k, shape, jnp.float32, -bound, bound)

    keys = iter(jax.random.split(key, 64))
    # VGNet_Feature (Conv1d weights stored as (C_out, C_in); kernel size 1 squeezed)
    for pfx in ('x', 'r'):
        add(pfx + 'c11w', (16, 3), 3, next(keys));    add(pfx + 'c11b', (16,), 3, next(keys))
        add(pfx + 'c12w', (32, 16), 16, next(keys));  add(pfx + 'c12b', (32,), 16, next(keys))
        add(pfx + 'c13w', (64, 32), 32, next(keys));  add(pfx + 'c13b', (64,), 32, next(keys))
        add(pfx + 'mw', (224, 115), 115, next(keys)); add(pfx + 'mb', (224,), 115, next(keys))
    # Self-attention: only the value projection affects the output (seq_len == 1)
    add('att1_vw', (224, 224), 224, next(keys)); add('att1_vb', (224,), 224, next(keys))
    add('att2_vw', (224, 224), 224, next(keys)); add('att2_vb', (224,), 224, next(keys))
    # VGNet_XYZ
    add('m31w', (256, 448), 448, next(keys)); add('m31b', (256,), 448, next(keys))
    add('m32w', (3, 256), 256, next(keys));   add('m32b', (3,), 256, next(keys))
    return P


if __name__ == "__main__":
    key = jax.random.PRNGKey(0)
    P = make_params(jax.random.fold_in(key, 7))

    B = 1
    # Two sizes: single padded tile (N=300) and multi-tile running max (N=2500).
    for N in (300, 2500):
        k1, k2, k3, k4 = jax.random.split(jax.random.fold_in(key, N), 4)
        xyz = jax.random.normal(k1, (B, N, 3), jnp.float32)
        rgb = jax.random.normal(k2, (B, N, 3), jnp.float32)
        normal = jax.random.normal(k3, (B, N, 3), jnp.float32)   # unused by the module
        view_center = jax.random.normal(k4, (3,), jnp.float32)

        out = view_generate_pallas(xyz, rgb, normal, view_center, P, tile_n=1024)
        out = jax.block_until_ready(out)

        ref = reference(xyz, rgb, normal, view_center, P)
        assert out.shape == (1, 1, 3), out.shape
        # bf16 MXU operands (f32 accumulation) vs. the pure-f32 reference.
        assert jnp.allclose(out, ref, rtol=2e-2, atol=2e-2), (N, out, ref)

    print("KERNEL_OK")
</pallas_src>

<mosaic_0001>
module attributes {stable_mosaic.version = 11 : i64} {
  func.func @vg_kernel(%arg0: i32, %arg1: memref<304x6xf32, #tpu.memory_space<vmem>>, %arg2: memref<6x32xbf16, #tpu.memory_space<vmem>>, %arg3: memref<1x32xf32, #tpu.memory_space<vmem>>, %arg4: memref<32x64xbf16, #tpu.memory_space<vmem>>, %arg5: memref<1x64xf32, #tpu.memory_space<vmem>>, %arg6: memref<64x128xbf16, #tpu.memory_space<vmem>>, %arg7: memref<1x128xf32, #tpu.memory_space<vmem>>, %arg8: memref<32x448xbf16, #tpu.memory_space<vmem>>, %arg9: memref<64x448xbf16, #tpu.memory_space<vmem>>, %arg10: memref<128x448xbf16, #tpu.memory_space<vmem>>, %arg11: memref<1x448xf32, #tpu.memory_space<vmem>>, %arg12: memref<448x256xf32, #tpu.memory_space<vmem>>, %arg13: memref<1x256xf32, #tpu.memory_space<vmem>>, %arg14: memref<256x3xf32, #tpu.memory_space<vmem>>, %arg15: memref<1x3xf32, #tpu.memory_space<vmem>>, %arg16: memref<1x3xf32, #tpu.memory_space<vmem>>, %arg17: memref<1x448xf32, #tpu.memory_space<vmem>>) attributes {dimension_semantics = [#tpu.dimension_semantics<arbitrary>], iteration_bounds = array<i64: 1>, scalar_prefetch = 0 : i64, scratch_operands = 1 : i64, tpu.core_type = #tpu.core_type<tc>, window_params = [{transform_indices = @transform_0, window_bounds = array<i64: 304, 6>}, {pipeline_mode = #tpu.pipeline_mode<synchronous>, transform_indices = @transform_1, window_bounds = array<i64: 6, 32>}, {pipeline_mode = #tpu.pipeline_mode<synchronous>, transform_indices = @transform_2, window_bounds = array<i64: 1, 32>}, {pipeline_mode = #tpu.pipeline_mode<synchronous>, transform_indices = @transform_3, window_bounds = array<i64: 32, 64>}, {pipeline_mode = #tpu.pipeline_mode<synchronous>, transform_indices = @transform_4, window_bounds = array<i64: 1, 64>}, {pipeline_mode = #tpu.pipeline_mode<synchronous>, transform_indices = @transform_5, window_bounds = array<i64: 64, 128>}, {pipeline_mode = #tpu.pipeline_mode<synchronous>, transform_indices = @transform_6, window_bounds = array<i64: 1, 128>}, {pipeline_mode = #tpu.pipeline_mode<synchronous>, transform_indices = @transform_7, window_bounds = array<i64: 32, 448>}, {pipeline_mode = #tpu.pipeline_mode<synchronous>, transform_indices = @transform_8, window_bounds = array<i64: 64, 448>}, {pipeline_mode = #tpu.pipeline_mode<synchronous>, transform_indices = @transform_9, window_bounds = array<i64: 128, 448>}, {pipeline_mode = #tpu.pipeline_mode<synchronous>, transform_indices = @transform_10, window_bounds = array<i64: 1, 448>}, {pipeline_mode = #tpu.pipeline_mode<synchronous>, transform_indices = @transform_11, window_bounds = array<i64: 448, 256>}, {pipeline_mode = #tpu.pipeline_mode<synchronous>, transform_indices = @transform_12, window_bounds = array<i64: 1, 256>}, {pipeline_mode = #tpu.pipeline_mode<synchronous>, transform_indices = @transform_13, window_bounds = array<i64: 256, 3>}, {pipeline_mode = #tpu.pipeline_mode<synchronous>, transform_indices = @transform_14, window_bounds = array<i64: 1, 3>}, {pipeline_mode = #tpu.pipeline_mode<synchronous>, transform_indices = @transform_15, window_bounds = array<i64: 1, 3>}]} {
    %c0_i32 = arith.constant 0 : i32
    %0 = arith.cmpi eq, %arg0, %c0_i32 : i32
    %1 = arith.extui %0 : i1 to i32
    %c0_i32_0 = arith.constant 0 : i32
    %2 = arith.cmpi ne, %1, %c0_i32_0 : i32
    scf.if %2 {
      %cst_40 = arith.constant 0xFF800000 : f32
      %59 = vector.broadcast %cst_40 : f32 to vector<1x448xf32>
      %c0_41 = arith.constant 0 : index
      %c0_42 = arith.constant 0 : index
      %60 = vector.load %arg17[%c0_41, %c0_42] : memref<1x448xf32, #tpu.memory_space<vmem>>, vector<1x448xf32>
      tpu.vector_store %arg17[%c0_41, %c0_42], %59 {strides = array<i32>} : memref<1x448xf32, #tpu.memory_space<vmem>>, vector<1x448xf32>,
    } else {
    }
    %c0 = arith.constant 0 : index
    %c0_1 = arith.constant 0 : index
    %3 = vector.load %arg1[%c0, %c0_1] : memref<304x6xf32, #tpu.memory_space<vmem>>, vector<304x6xf32>
    %4 = arith.truncf %3 : vector<304x6xf32> to vector<304x6xbf16>
    %c0_2 = arith.constant 0 : index
    %c0_3 = arith.constant 0 : index
    %5 = vector.load %arg2[%c0_2, %c0_3] : memref<6x32xbf16, #tpu.memory_space<vmem>>, vector<6x32xbf16>
    %cst = arith.constant dense<0.000000e+00> : vector<304x32xf32>
    %6 = tpu.matmul %4, %5, %cst {dimension_numbers = #tpu.dot_dimension_numbers<[1], [0], [0], [1], [0, 0, 1, 1], [], []>} : vector<304x6xbf16>, vector<6x32xbf16>, vector<304x32xf32> -> vector<304x32xf32>
    %c0_4 = arith.constant 0 : index
    %c0_5 = arith.constant 0 : index
    %7 = vector.load %arg3[%c0_4, %c0_5] : memref<1x32xf32, #tpu.memory_space<vmem>>, vector<1x32xf32>
    %8 = vector.broadcast %7 : vector<1x32xf32> to vector<304x32xf32>
    %9 = arith.addf %6, %8 : vector<304x32xf32>
    %cst_6 = arith.constant 0.000000e+00 : f32
    %10 = vector.broadcast %cst_6 : f32 to vector<304x32xf32>
    %11 = arith.cmpf ogt, %9, %10 : vector<304x32xf32>
    %cst_7 = arith.constant 0.00999999977 : f32
    %12 = vector.broadcast %cst_7 : f32 to vector<304x32xf32>
    %13 = arith.mulf %12, %9 : vector<304x32xf32>
    %14 = arith.select %11, %9, %13 : vector<304x32xi1>, vector<304x32xf32>
    %15 = arith.truncf %14 : vector<304x32xf32> to vector<304x32xbf16>
    %c0_8 = arith.constant 0 : index
    %c0_9 = arith.constant 0 : index
    %16 = vector.load %arg4[%c0_8, %c0_9] : memref<32x64xbf16, #tpu.memory_space<vmem>>, vector<32x64xbf16>
    %cst_10 = arith.constant dense<0.000000e+00> : vector<304x64xf32>
    %17 = tpu.matmul %15, %16, %cst_10 {dimension_numbers = #tpu.dot_dimension_numbers<[1], [0], [0], [1], [0, 0, 1, 1], [], []>} : vector<304x32xbf16>, vector<32x64xbf16>, vector<304x64xf32> -> vector<304x64xf32>
    %c0_11 = arith.constant 0 : index
    %c0_12 = arith.constant 0 : index
    %18 = vector.load %arg5[%c0_11, %c0_12] : memref<1x64xf32, #tpu.memory_space<vmem>>, vector<1x64xf32>
    %19 = vector.broadcast %18 : vector<1x64xf32> to vector<304x64xf32>
    %20 = arith.addf %17, %19 : vector<304x64xf32>
    %cst_13 = arith.constant 0.000000e+00 : f32
    %21 = vector.broadcast %cst_13 : f32 to vector<304x64xf32>
    %22 = arith.cmpf ogt, %20, %21 : vector<304x64xf32>
    %cst_14 = arith.constant 0.00999999977 : f32
    %23 = vector.broadcast %cst_14 : f32 to vector<304x64xf32>
    %24 = arith.mulf %23, %20 : vector<304x64xf32>
    %25 = arith.select %22, %20, %24 : vector<304x64xi1>, vector<304x64xf32>
    %26 = arith.truncf %25 : vector<304x64xf32> to vector<304x64xbf16>
    %c0_15 = arith.constant 0 : index
    %c0_16 = arith.constant 0 : index
    %27 = vector.load %arg6[%c0_15, %c0_16] : memref<64x128xbf16, #tpu.memory_space<vmem>>, vector<64x128xbf16>
    %cst_17 = arith.constant dense<0.000000e+00> : vector<304x128xf32>
    %28 = tpu.matmul %26, %27, %cst_17 {dimension_numbers = #tpu.dot_dimension_numbers<[1], [0], [0], [1], [0, 0, 1, 1], [], []>} : vector<304x64xbf16>, vector<64x128xbf16>, vector<304x128xf32> -> vector<304x128xf32>
    %c0_18 = arith.constant 0 : index
    %c0_19 = arith.constant 0 : index
    %29 = vector.load %arg7[%c0_18, %c0_19] : memref<1x128xf32, #tpu.memory_space<vmem>>, vector<1x128xf32>
    %30 = vector.broadcast %29 : vector<1x128xf32> to vector<304x128xf32>
    %31 = arith.addf %28, %30 : vector<304x128xf32>
    %cst_20 = arith.constant 0.000000e+00 : f32
    %32 = vector.broadcast %cst_20 : f32 to vector<304x128xf32>
    %33 = arith.cmpf ogt, %31, %32 : vector<304x128xf32>
    %cst_21 = arith.constant 0.00999999977 : f32
    %34 = vector.broadcast %cst_21 : f32 to vector<304x128xf32>
    %35 = arith.mulf %34, %31 : vector<304x128xf32>
    %36 = arith.select %33, %31, %35 : vector<304x128xi1>, vector<304x128xf32>
    %37 = arith.truncf %14 : vector<304x32xf32> to vector<304x32xbf16>
    %c0_22 = arith.constant 0 : index
    %c0_23 = arith.constant 0 : index
    %38 = vector.load %arg8[%c0_22, %c0_23] : memref<32x448xbf16, #tpu.memory_space<vmem>>, vector<32x448xbf16>
    %cst_24 = arith.constant dense<0.000000e+00> : vector<304x448xf32>
    %39 = tpu.matmul %37, %38, %cst_24 {dimension_numbers = #tpu.dot_dimension_numbers<[1], [0], [0], [1], [0, 0, 1, 1], [], []>} : vector<304x32xbf16>, vector<32x448xbf16>, vector<304x448xf32> -> vector<304x448xf32>
    %40 = arith.truncf %25 : vector<304x64xf32> to vector<304x64xbf16>
    %c0_25 = arith.constant 0 : index
    %c0_26 = arith.constant 0 : index
    %41 = vector.load %arg9[%c0_25, %c0_26] : memref<64x448xbf16, #tpu.memory_space<vmem>>, vector<64x448xbf16>
    %cst_27 = arith.constant dense<0.000000e+00> : vector<304x448xf32>
    %42 = tpu.matmul %40, %41, %cst_27 {dimension_numbers = #tpu.dot_dimension_numbers<[1], [0], [0], [1], [0, 0, 1, 1], [], []>} : vector<304x64xbf16>, vector<64x448xbf16>, vector<304x448xf32> -> vector<304x448xf32>
    %43 = arith.addf %39, %42 : vector<304x448xf32>
    %44 = arith.truncf %36 : vector<304x128xf32> to vector<304x128xbf16>
    %c0_28 = arith.constant 0 : index
    %c0_29 = arith.constant 0 : index
    %45 = vector.load %arg10[%c0_28, %c0_29] : memref<128x448xbf16, #tpu.memory_space<vmem>>, vector<128x448xbf16>
    %cst_30 = arith.constant dense<0.000000e+00> : vector<304x448xf32>
    %46 = tpu.matmul %44, %45, %cst_30 {dimension_numbers = #tpu.dot_dimension_numbers<[1], [0], [0], [1], [0, 0, 1, 1], [], []>} : vector<304x128xbf16>, vector<128x448xbf16>, vector<304x448xf32> -> vector<304x448xf32>
    %47 = arith.addf %43, %46 : vector<304x448xf32>
    %c0_31 = arith.constant 0 : index
    %c0_32 = arith.constant 0 : index
    %48 = vector.load %arg11[%c0_31, %c0_32] : memref<1x448xf32, #tpu.memory_space<vmem>>, vector<1x448xf32>
    %49 = vector.broadcast %48 : vector<1x448xf32> to vector<304x448xf32>
    %50 = arith.addf %47, %49 : vector<304x448xf32>
    %c0_33 = arith.constant 0 : index
    %c0_34 = arith.constant 0 : index
    %51 = vector.load %arg17[%c0_33, %c0_34] : memref<1x448xf32, #tpu.memory_space<vmem>>, vector<1x448xf32>
    %cst_35 = arith.constant dense<0xFF800000> : vector<448xf32>
    %52 = vector.multi_reduction <maximumf>, %50, %cst_35 [0] : vector<304x448xf32> to vector<448xf32>
    %53 = vector.shape_cast %52 : vector<448xf32> to vector<1x448xf32>
    %54 = arith.maximumf %51, %53 : vector<1x448xf32>
    %c0_36 = arith.constant 0 : index
    %c0_37 = arith.constant 0 : index
    %55 = vector.load %arg17[%c0_36, %c0_37] : memref<1x448xf32, #tpu.memory_space<vmem>>, vector<1x448xf32>
    tpu.vector_store %arg17[%c0_36, %c0_37], %54 {strides = array<i32>} : memref<1x448xf32, #tpu.memory_space<vmem>>, vector<1x448xf32>,
    %c0_i32_38 = arith.constant 0 : i32
    %56 = arith.cmpi eq, %arg0, %c0_i32_38 : i32
    %57 = arith.extui %56 : i1 to i32
    %c0_i32_39 = arith.constant 0 : i32
    %58 = arith.cmpi ne, %57, %c0_i32_39 : i32
    scf.if %58 {
      %c0_40 = arith.constant 0 : index
      %c0_41 = arith.constant 0 : index
      %59 = vector.load %arg17[%c0_40, %c0_41] : memref<1x448xf32, #tpu.memory_space<vmem>>, vector<1x448xf32>
      %c0_42 = arith.constant 0 : index
      %c0_43 = arith.constant 0 : index
      %60 = vector.load %arg12[%c0_42, %c0_43] : memref<448x256xf32, #tpu.memory_space<vmem>>, vector<448x256xf32>
      %cst_44 = arith.constant dense<0.000000e+00> : vector<1x256xf32>
      %61 = tpu.matmul %59, %60, %cst_44 {dimension_numbers = #tpu.dot_dimension_numbers<[1], [0], [0], [1], [0, 0, 1, 1], [], []>} : vector<1x448xf32>, vector<448x256xf32>, vector<1x256xf32> -> vector<1x256xf32>
      %c0_45 = arith.constant 0 : index
      %c0_46 = arith.constant 0 : index
      %62 = vector.load %arg13[%c0_45, %c0_46] : memref<1x256xf32, #tpu.memory_space<vmem>>, vector<1x256xf32>
      %63 = arith.addf %61, %62 : vector<1x256xf32>
      %cst_47 = arith.constant 0.000000e+00 : f32
      %64 = vector.broadcast %cst_47 : f32 to vector<1x256xf32>
      %65 = arith.cmpf ogt, %63, %64 : vector<1x256xf32>
      %cst_48 = arith.constant 0.00999999977 : f32
      %66 = vector.broadcast %cst_48 : f32 to vector<1x256xf32>
      %67 = arith.mulf %66, %63 : vector<1x256xf32>
      %68 = arith.select %65, %63, %67 : vector<1x256xi1>, vector<1x256xf32>
      %c0_49 = arith.constant 0 : index
      %c0_50 = arith.constant 0 : index
      %69 = vector.load %arg14[%c0_49, %c0_50] : memref<256x3xf32, #tpu.memory_space<vmem>>, vector<256x3xf32>
      %cst_51 = arith.constant dense<0.000000e+00> : vector<1x3xf32>
      %70 = tpu.matmul %68, %69, %cst_51 {dimension_numbers = #tpu.dot_dimension_numbers<[1], [0], [0], [1], [0, 0, 1, 1], [], []>} : vector<1x256xf32>, vector<256x3xf32>, vector<1x3xf32> -> vector<1x3xf32>
      %c0_52 = arith.constant 0 : index
      %c0_53 = arith.constant 0 : index
      %71 = vector.load %arg15[%c0_52, %c0_53] : memref<1x3xf32, #tpu.memory_space<vmem>>, vector<1x3xf32>
      %72 = arith.addf %70, %71 : vector<1x3xf32>
      %c0_54 = arith.constant 0 : index
      %c0_55 = arith.constant 0 : index
      %73 = vector.load %arg16[%c0_54, %c0_55] : memref<1x3xf32, #tpu.memory_space<vmem>>, vector<1x3xf32>
      tpu.vector_store %arg16[%c0_54, %c0_55], %72 {strides = array<i32>} : memref<1x3xf32, #tpu.memory_space<vmem>>, vector<1x3xf32>,
    } else {
    }
    return
  }
  func.func @transform_0(%arg0: i32) -> (i32, i32) {
    %c0_i32 = arith.constant 0 : i32
    %c0_i32_0 = arith.constant 0 : i32
    return %arg0, %c0_i32 : i32, i32
  }
  func.func @transform_1(%arg0: i32) -> (i32, i32) {
    %c0_i32 = arith.constant 0 : i32
    %c0_i32_0 = arith.constant 0 : i32
    %c0_i32_1 = arith.constant 0 : i32
    return %c0_i32, %c0_i32_0 : i32, i32
  }
  func.func @transform_2(%arg0: i32) -> (i32, i32) {
    %c0_i32 = arith.constant 0 : i32
    %c0_i32_0 = arith.constant 0 : i32
    %c0_i32_1 = arith.constant 0 : i32
    return %c0_i32, %c0_i32_0 : i32, i32
  }
  func.func @transform_3(%arg0: i32) -> (i32, i32) {
    %c0_i32 = arith.constant 0 : i32
    %c0_i32_0 = arith.constant 0 : i32
    %c0_i32_1 = arith.constant 0 : i32
    return %c0_i32, %c0_i32_0 : i32, i32
  }
  func.func @transform_4(%arg0: i32) -> (i32, i32) {
    %c0_i32 = arith.constant 0 : i32
    %c0_i32_0 = arith.constant 0 : i32
    %c0_i32_1 = arith.constant 0 : i32
    return %c0_i32, %c0_i32_0 : i32, i32
  }
  func.func @transform_5(%arg0: i32) -> (i32, i32) {
    %c0_i32 = arith.constant 0 : i32
    %c0_i32_0 = arith.constant 0 : i32
    %c0_i32_1 = arith.constant 0 : i32
    return %c0_i32, %c0_i32_0 : i32, i32
  }
  func.func @transform_6(%arg0: i32) -> (i32, i32) {
    %c0_i32 = arith.constant 0 : i32
    %c0_i32_0 = arith.constant 0 : i32
    %c0_i32_1 = arith.constant 0 : i32
    return %c0_i32, %c0_i32_0 : i32, i32
  }
  func.func @transform_7(%arg0: i32) -> (i32, i32) {
    %c0_i32 = arith.constant 0 : i32
    %c0_i32_0 = arith.constant 0 : i32
    %c0_i32_1 = arith.constant 0 : i32
    return %c0_i32, %c0_i32_0 : i32, i32
  }
  func.func @transform_8(%arg0: i32) -> (i32, i32) {
    %c0_i32 = arith.constant 0 : i32
    %c0_i32_0 = arith.constant 0 : i32
    %c0_i32_1 = arith.constant 0 : i32
    return %c0_i32, %c0_i32_0 : i32, i32
  }
  func.func @transform_9(%arg0: i32) -> (i32, i32) {
    %c0_i32 = arith.constant 0 : i32
    %c0_i32_0 = arith.constant 0 : i32
    %c0_i32_1 = arith.constant 0 : i32
    return %c0_i32, %c0_i32_0 : i32, i32
  }
  func.func @transform_10(%arg0: i32) -> (i32, i32) {
    %c0_i32 = arith.constant 0 : i32
    %c0_i32_0 = arith.constant 0 : i32
    %c0_i32_1 = arith.constant 0 : i32
    return %c0_i32, %c0_i32_0 : i32, i32
  }
  func.func @transform_11(%arg0: i32) -> (i32, i32) {
    %c0_i32 = arith.constant 0 : i32
    %c0_i32_0 = arith.constant 0 : i32
    %c0_i32_1 = arith.constant 0 : i32
    return %c0_i32, %c0_i32_0 : i32, i32
  }
  func.func @transform_12(%arg0: i32) -> (i32, i32) {
    %c0_i32 = arith.constant 0 : i32
    %c0_i32_0 = arith.constant 0 : i32
    %c0_i32_1 = arith.constant 0 : i32
    return %c0_i32, %c0_i32_0 : i32, i32
  }
  func.func @transform_13(%arg0: i32) -> (i32, i32) {
    %c0_i32 = arith.constant 0 : i32
    %c0_i32_0 = arith.constant 0 : i32
    %c0_i32_1 = arith.constant 0 : i32
    return %c0_i32, %c0_i32_0 : i32, i32
  }
  func.func @transform_14(%arg0: i32) -> (i32, i32) {
    %c0_i32 = arith.constant 0 : i32
    %c0_i32_0 = arith.constant 0 : i32
    %c0_i32_1 = arith.constant 0 : i32
    return %c0_i32, %c0_i32_0 : i32, i32
  }
  func.func @transform_15(%arg0: i32) -> (i32, i32) {
    %c0_i32 = arith.constant 0 : i32
    %c0_i32_0 = arith.constant 0 : i32
    %c0_i32_1 = arith.constant 0 : i32
    return %c0_i32, %c0_i32_0 : i32, i32
  }
}

</mosaic_0001>

<llo_original>
// kernel: tpu_custom_call.1
$region0: #{tpu_custom_call.1}
  #allocation0 [shape = 'u32[]', space=smem, size = 0x4, offset = 0x4, fixed_abs, tag = 'smem constant byte address 0x4 - core index']
  #allocation1 [shape = 'u32[144,128]{1,0:T(1,128)}', space=vmem, size = 0x12000, scoped, tag = 'internal scratch']
  #allocation2 [shape = 'f32[1,448]{1,0:T(1,128)}', space=vmem, size = 0x800, scoped, tag = 'scratch operand']
  %s0 = inlined_call_operand.vmem [shape: f32[304,6], index: 0, kind: input, shape index: {}]
  %s1 = inlined_call_operand.vmem [shape: bf16[6,32], index: 1, kind: input, shape index: {}]
  %s2 = inlined_call_operand.vmem [shape: f32[1,32], index: 2, kind: input, shape index: {}]
  %s3 = inlined_call_operand.vmem [shape: bf16[32,64], index: 3, kind: input, shape index: {}]
  %s4 = inlined_call_operand.hbm [shape: f32[1,64], index: 4, kind: input, shape index: {}]
  %s5 = inlined_call_operand.hbm [shape: bf16[64,128], index: 5, kind: input, shape index: {}]
  %s6 = inlined_call_operand.hbm [shape: f32[1,128], index: 6, kind: input, shape index: {}]
  %s7 = inlined_call_operand.vmem [shape: bf16[32,448], index: 7, kind: input, shape index: {}]
  %s8 = inlined_call_operand.vmem [shape: bf16[64,448], index: 8, kind: input, shape index: {}]
  %s9 = inlined_call_operand.vmem [shape: bf16[128,448], index: 9, kind: input, shape index: {}]
  %s10 = inlined_call_operand.hbm [shape: f32[1,448], index: 10, kind: input, shape index: {}]
  %s11 = inlined_call_operand.vmem [shape: f32[448,256], index: 11, kind: input, shape index: {}]
  %s12 = inlined_call_operand.hbm [shape: f32[1,256], index: 12, kind: input, shape index: {}]
  %s13 = inlined_call_operand.vmem [shape: f32[256,3], index: 13, kind: input, shape index: {}]
  %s14 = inlined_call_operand.hbm [shape: f32[1,3], index: 14, kind: input, shape index: {}]
  %s15 = inlined_call_operand.hbm [shape: f32[1,3], index: 15, kind: output, shape index: {}]
  %s16 = sld [smem:[#allocation0]]
  $region102: #{tpu_custom_call.1} parent=0
    _
  %s18 = ssub.s32 1, %s16
  %s19 = scalar_select 0, %s18, %s16
  $region1: #{tpu_custom_call.1} parent=0
    #allocation3 [shape = 'u8[512]{0}', space=vmem, size = 0x400, scoped, tag = 'input window, operand 4, single buffered']
    #allocation4 [shape = 's32[1]{0}', space=sflag, size = 0x4, scoped, tag = 'scoped memory for tpu_custom_call.1']
    #allocation5 [shape = 's32[1]{0}', space=sflag, size = 0x4, scoped, tag = 'scoped memory for tpu_custom_call.1']
    #allocation6 [shape = 'u8[16384]{0}', space=vmem, size = 0x4000, scoped, tag = 'input window, operand 5, single buffered']
    #allocation7 [shape = 's32[1]{0}', space=sflag, size = 0x4, scoped, tag = 'scoped memory for tpu_custom_call.1']
    #allocation8 [shape = 'u8[512]{0}', space=vmem, size = 0x400, scoped, tag = 'input window, operand 6, single buffered']
    #allocation9 [shape = 'u8[2048]{0}', space=vmem, size = 0x800, scoped, tag = 'input window, operand 10, single buffered']
    #allocation10 [shape = 's32[1]{0}', space=sflag, size = 0x4, scoped, tag = 'scoped memory for tpu_custom_call.1']
    #allocation11 [shape = 'u8[1024]{0}', space=vmem, size = 0x400, scoped, tag = 'input window, operand 12, single buffered']
    #allocation12 [shape = 'u8[512]{0}', space=vmem, size = 0x400, scoped, tag = 'input window, operand 14, single buffered']
    #allocation13 [shape = 's32[1]{0}', space=sflag, size = 0x4, scoped, tag = 'scoped memory for tpu_custom_call.1']
    #allocation14 [shape = 'u8[512]{0}', space=vmem, size = 0x400, scoped, tag = 'output window, operand 0, single buffered']
    %20 = vsyncpa [#allocation4], 0
    %21 = vsyncpa [#allocation7], 0
    %22 = vsyncpa [#allocation10], 0
    %23 = vsyncpa [#allocation13], 0
    %24 = vsyncpa [#allocation5], 0
    // Predicated region
    $region2: #{tpu_custom_call.1} parent=1 // pred_check
      _
    $region3: #{tpu_custom_call.1} parent=1 // pred_check_branch
      %26 = sbr.rel (0) target = $region5
    $region4: #{tpu_custom_call.1} parent=1 // pred_region
      _
    $region5: #{tpu_custom_call.1} parent=1 // pred_fallthru
      _
    // Predicated region
    $region6: #{tpu_custom_call.1} parent=1 // pred_check
      _
    $region7: #{tpu_custom_call.1} parent=1 // pred_check_branch
      %28 = sbr.rel (0) target = $region9
    $region8: #{tpu_custom_call.1} parent=1 // pred_region
      _
    $region9: #{tpu_custom_call.1} parent=1 // pred_fallthru
      _
    // Predicated region
    $region10: #{tpu_custom_call.1} parent=1 // pred_check
      _
    $region11: #{tpu_custom_call.1} parent=1 // pred_check_branch
      %30 = sbr.rel (0) target = $region13
    $region12: #{tpu_custom_call.1} parent=1 // pred_region
      _
    $region13: #{tpu_custom_call.1} parent=1 // pred_fallthru
      _
    // Predicated region
    $region14: #{tpu_custom_call.1} parent=1 // pred_check
      _
    $region15: #{tpu_custom_call.1} parent=1 // pred_check_branch
      %32 = sbr.rel (0) target = $region17
    $region16: #{tpu_custom_call.1} parent=1 // pred_region
      _
    $region17: #{tpu_custom_call.1} parent=1 // pred_fallthru
      _
    // Predicated region
    $region18: #{tpu_custom_call.1} parent=1 // pred_check
      _
    $region19: #{tpu_custom_call.1} parent=1 // pred_check_branch
      %34 = sbr.rel (0) target = $region21
    $region20: #{tpu_custom_call.1} parent=1 // pred_region
      %s36 = ssub.s32 16, 16
      %37 = vsyncadd [#allocation4], %s36
      %s39 = sshll.u32 [#allocation3], 4
      %s40 = int_to_ptr.vmem [resolvable:$true] %s39
      %42 = dma.hbm_to_vmem [thread:$0]  %s4, 16, %s40, [#allocation4]
    $region21: #{tpu_custom_call.1} parent=1 // pred_fallthru
      _
    // Predicated region
    $region22: #{tpu_custom_call.1} parent=1 // pred_check
      _
    $region23: #{tpu_custom_call.1} parent=1 // pred_check_branch
      %44 = sbr.rel (0) target = $region25
    $region24: #{tpu_custom_call.1} parent=1 // pred_region
      %s46 = ssub.s32 512, 512
      %47 = vsyncadd [#allocation7], %s46
      %s48 = sshll.u32 [#allocation6], 4
      %s49 = int_to_ptr.vmem [resolvable:$true] %s48
      %54 = dma.hbm_to_vmem [thread:$0]  %s5, 512, %s49, [#allocation7], 64, 64, 4
    $region25: #{tpu_custom_call.1} parent=1 // pred_fallthru
      _
    // Predicated region
    $region26: #{tpu_custom_call.1} parent=1 // pred_check
      _
    $region27: #{tpu_custom_call.1} parent=1 // pred_check_branch
      %56 = sbr.rel (0) target = $region29
    $region28: #{tpu_custom_call.1} parent=1 // pred_region
      %s58 = ssub.s32 16, 16
      %59 = vsyncadd [#allocation7], %s58
      %s61 = sshll.u32 [#allocation8], 4
      %s62 = int_to_ptr.vmem [resolvable:$true] %s61
      %64 = dma.hbm_to_vmem [thread:$0]  %s6, 16, %s62, [#allocation7]
    $region29: #{tpu_custom_call.1} parent=1 // pred_fallthru
      _
    // Predicated region
    $region30: #{tpu_custom_call.1} parent=1 // pred_check
      _
    $region31: #{tpu_custom_call.1} parent=1 // pred_check_branch
      %66 = sbr.rel (0) target = $region33
    $region32: #{tpu_custom_call.1} parent=1 // pred_region
      _
    $region33: #{tpu_custom_call.1} parent=1 // pred_fallthru
      _
    // Predicated region
    $region34: #{tpu_custom_call.1} parent=1 // pred_check
      _
    $region35: #{tpu_custom_call.1} parent=1 // pred_check_branch
      %68 = sbr.rel (0) target = $region37
    $region36: #{tpu_custom_call.1} parent=1 // pred_region
      _
    $region37: #{tpu_custom_call.1} parent=1 // pred_fallthru
      _
    // Predicated region
    $region38: #{tpu_custom_call.1} parent=1 // pred_check
      _
    $region39: #{tpu_custom_call.1} parent=1 // pred_check_branch
      %70 = sbr.rel (0) target = $region41
    $region40: #{tpu_custom_call.1} parent=1 // pred_region
      _
    $region41: #{tpu_custom_call.1} parent=1 // pred_fallthru
      _
    // Predicated region
    $region42: #{tpu_custom_call.1} parent=1 // pred_check
      _
    $region43: #{tpu_custom_call.1} parent=1 // pred_check_branch
      %72 = sbr.rel (0) target = $region45
    $region44: #{tpu_custom_call.1} parent=1 // pred_region
      %s74 = ssub.s32 64, 64
      %75 = vsyncadd [#allocation10], %s74
      %s77 = sshll.u32 [#allocation9], 4
      %s78 = int_to_ptr.vmem [resolvable:$true] %s77
      %80 = dma.hbm_to_vmem [thread:$0]  %s10, 64, %s78, [#allocation10]
    $region45: #{tpu_custom_call.1} parent=1 // pred_fallthru
      _
    // Predicated region
    $region46: #{tpu_custom_call.1} parent=1 // pred_check
      _
    $region47: #{tpu_custom_call.1} parent=1 // pred_check_branch
      %82 = sbr.rel (0) target = $region49
    $region48: #{tpu_custom_call.1} parent=1 // pred_region
      _
    $region49: #{tpu_custom_call.1} parent=1 // pred_fallthru
      _
    // Predicated region
    $region50: #{tpu_custom_call.1} parent=1 // pred_check
      _
    $region51: #{tpu_custom_call.1} parent=1 // pred_check_branch
      %84 = sbr.rel (0) target = $region53
    $region52: #{tpu_custom_call.1} parent=1 // pred_region
      %s86 = ssub.s32 32, 32
      %87 = vsyncadd [#allocation10], %s86
      %s89 = sshll.u32 [#allocation11], 4
      %s90 = int_to_ptr.vmem [resolvable:$true] %s89
      %92 = dma.hbm_to_vmem [thread:$0]  %s12, 32, %s90, [#allocation10]
    $region53: #{tpu_custom_call.1} parent=1 // pred_fallthru
      _
    // Predicated region
    $region54: #{tpu_custom_call.1} parent=1 // pred_check
      _
    $region55: #{tpu_custom_call.1} parent=1 // pred_check_branch
      %94 = sbr.rel (0) target = $region57
    $region56: #{tpu_custom_call.1} parent=1 // pred_region
      _
    $region57: #{tpu_custom_call.1} parent=1 // pred_fallthru
      _
    // Predicated region
    $region58: #{tpu_custom_call.1} parent=1 // pred_check
      _
    $region59: #{tpu_custom_call.1} parent=1 // pred_check_branch
      %96 = sbr.rel (0) target = $region61
    $region60: #{tpu_custom_call.1} parent=1 // pred_region
      %s98 = ssub.s32 16, 16
      %99 = vsyncadd [#allocation13], %s98
      %s101 = sshll.u32 [#allocation12], 4
      %s102 = int_to_ptr.vmem [resolvable:$true] %s101
      %104 = dma.hbm_to_vmem [thread:$0]  %s14, 16, %s102, [#allocation13]
    $region61: #{tpu_custom_call.1} parent=1 // pred_fallthru
      _
    // Predicated region
    $region62: #{tpu_custom_call.1} parent=1 // pred_check
      _
    $region63: #{tpu_custom_call.1} parent=1 // pred_check_branch
      %106 = sbr.rel (0) target = $region65
    $region64: #{tpu_custom_call.1} parent=1 // pred_region
      %107 = dma.done [#allocation4], 16
    $region65: #{tpu_custom_call.1} parent=1 // pred_fallthru
      _
    // Predicated region
    $region66: #{tpu_custom_call.1} parent=1 // pred_check
      _
    $region67: #{tpu_custom_call.1} parent=1 // pred_check_branch
      %109 = sbr.rel (0) target = $region69
    $region68: #{tpu_custom_call.1} parent=1 // pred_region
      %110 = dma.done [#allocation7], 512
    $region69: #{tpu_custom_call.1} parent=1 // pred_fallthru
      _
    // Predicated region
    $region70: #{tpu_custom_call.1} parent=1 // pred_check
      _
    $region71: #{tpu_custom_call.1} parent=1 // pred_check_branch
      %112 = sbr.rel (0) target = $region73
    $region72: #{tpu_custom_call.1} parent=1 // pred_region
      %113 = dma.done [#allocation7], 16
    $region73: #{tpu_custom_call.1} parent=1 // pred_fallthru
      _
    // Predicated region
    $region74: #{tpu_custom_call.1} parent=1 // pred_check
      _
    $region75: #{tpu_custom_call.1} parent=1 // pred_check_branch
      %115 = sbr.rel (0) target = $region77
    $region76: #{tpu_custom_call.1} parent=1 // pred_region
      %116 = dma.done [#allocation10], 64
    $region77: #{tpu_custom_call.1} parent=1 // pred_fallthru
      _
    // Predicated region
    $region78: #{tpu_custom_call.1} parent=1 // pred_check
      _
    $region79: #{tpu_custom_call.1} parent=1 // pred_check_branch
      %118 = sbr.rel (0) target = $region81
    $region80: #{tpu_custom_call.1} parent=1 // pred_region
      %119 = dma.done [#allocation10], 32
    $region81: #{tpu_custom_call.1} parent=1 // pred_fallthru
      _
    // Predicated region
    $region82: #{tpu_custom_call.1} parent=1 // pred_check
      _
    $region83: #{tpu_custom_call.1} parent=1 // pred_check_branch
      %121 = sbr.rel (0) target = $region85
    $region84: #{tpu_custom_call.1} parent=1 // pred_region
      %122 = dma.done [#allocation13], 16
    $region85: #{tpu_custom_call.1} parent=1 // pred_fallthru
      _
    %p124 = scmp.eq.s32.totalorder 0, 0
    // Predicated region
    $region86: #{tpu_custom_call.1} parent=1 // pred_check
      %p125 = pneg %p124
    $region87: #{tpu_custom_call.1} parent=1 // pred_check_branch
      %127 = sbr.rel (%p125) target = $region89
    $region88: #{tpu_custom_call.1} parent=1 // pred_region
      %v128 = vlaneseq
      %vm129 = vcmp.ge.s32.totalorder %v128, 0
      %vm130 = vcmp.lt.s32.totalorder %v128, 448
      %vm131 = vmand %vm129, %vm130
      %132 = vst.msk [vmem:[#allocation2] sm:$0xf] %vm131, -inf
    $region89: #{tpu_custom_call.1} parent=1 // pred_fallthru
      _
    %v133 = vld [vmem:[%s0] sm:$0xff]
    %v134 = vld [vmem:[%s0 + $0x8] sm:$0xff]
    %v135 = vld [vmem:[%s0 + $0x10] sm:$0xff]
    %v136 = vld [vmem:[%s0 + $0x18] sm:$0xff]
    %v137 = vld [vmem:[%s0 + $0x20] sm:$0xff]
    %v138 = vld [vmem:[%s0 + $0x28] sm:$0xff]
    %v139 = vld [vmem:[%s0 + $0x30] sm:$0xff]
    %v140 = vld [vmem:[%s0 + $0x38] sm:$0xff]
    %v141 = vld [vmem:[%s0 + $0x40] sm:$0xff]
    %v142 = vld [vmem:[%s0 + $0x48] sm:$0xff]
    %v143 = vld [vmem:[%s0 + $0x50] sm:$0xff]
    %v144 = vld [vmem:[%s0 + $0x58] sm:$0xff]
    %v145 = vld [vmem:[%s0 + $0x60] sm:$0xff]
    %v146 = vld [vmem:[%s0 + $0x68] sm:$0xff]
    %v147 = vld [vmem:[%s0 + $0x70] sm:$0xff]
    %v148 = vld [vmem:[%s0 + $0x78] sm:$0xff]
    %v149 = vld [vmem:[%s0 + $0x80] sm:$0xff]
    %v150 = vld [vmem:[%s0 + $0x88] sm:$0xff]
    %v151 = vld [vmem:[%s0 + $0x90] sm:$0xff]
    %v152 = vld [vmem:[%s0 + $0x98] sm:$0xff]
    %v153 = vld [vmem:[%s0 + $0xa0] sm:$0xff]
    %v154 = vld [vmem:[%s0 + $0xa8] sm:$0xff]
    %v155 = vld [vmem:[%s0 + $0xb0] sm:$0xff]
    %v156 = vld [vmem:[%s0 + $0xb8] sm:$0xff]
    %v157 = vld [vmem:[%s0 + $0xc0] sm:$0xff]
    %v158 = vld [vmem:[%s0 + $0xc8] sm:$0xff]
    %v159 = vld [vmem:[%s0 + $0xd0] sm:$0xff]
    %v160 = vld [vmem:[%s0 + $0xd8] sm:$0xff]
    %v161 = vld [vmem:[%s0 + $0xe0] sm:$0xff]
    %v162 = vld [vmem:[%s0 + $0xe8] sm:$0xff]
    %v163 = vld [vmem:[%s0 + $0xf0] sm:$0xff]
    %v164 = vld [vmem:[%s0 + $0xf8] sm:$0xff]
    %v165 = vld [vmem:[%s0 + $0x100] sm:$0xff]
    %v166 = vld [vmem:[%s0 + $0x108] sm:$0xff]
    %v167 = vld [vmem:[%s0 + $0x110] sm:$0xff]
    %v168 = vld [vmem:[%s0 + $0x118] sm:$0xff]
    %v169 = vld [vmem:[%s0 + $0x120] sm:$0xff]
    %v170 = vld [vmem:[%s0 + $0x128] sm:$0xff]
    %v171 = vpack.c.bf16 %v134, %v133
    %v172 = vpack.c.bf16 %v136, %v135
    %v173 = vpack.c.bf16 %v138, %v137
    %v174 = vpack.c.bf16 %v140, %v139
    %v175 = vpack.c.bf16 %v142, %v141
    %v176 = vpack.c.bf16 %v144, %v143
    %v177 = vpack.c.bf16 %v146, %v145
    %v178 = vpack.c.bf16 %v148, %v147
    %v179 = vpack.c.bf16 %v150, %v149
    %v180 = vpack.c.bf16 %v152, %v151
    %v181 = vpack.c.bf16 %v154, %v153
    %v182 = vpack.c.bf16 %v156, %v155
    %v183 = vpack.c.bf16 %v158, %v157
    %v184 = vpack.c.bf16 %v160, %v159
    %v185 = vpack.c.bf16 %v162, %v161
    %v186 = vpack.c.bf16 %v164, %v163
    %v187 = vpack.c.bf16 %v166, %v165
    %v188 = vpack.c.bf16 %v168, %v167
    %v189 = vpack.c.bf16 %v170, %v169
    %v190 = vld [vmem:[%s1] sm:$0x7]
    %v191 = vld [vmem:[%s2] sm:$0x1]
    %v193 = vlaneseq
    %v194 = vshrl.u32 %v193, 7
    %v195 = vsub.s32 0, %v194
    %v196 = vrot.slane %v191, %v195
    %vm198 = vcmask 48128
    %v200 = vsel %vm198, %v171, 0
    %v203 = vsel %vm198, %v172, 0
    %v206 = vsel %vm198, %v173, 0
    %v209 = vsel %vm198, %v174, 0
    %v212 = vsel %vm198, %v175, 0
    %v215 = vsel %vm198, %v176, 0
    %v218 = vsel %vm198, %v177, 0
    %v221 = vsel %vm198, %v178, 0
    %v224 = vsel %vm198, %v179, 0
    %v227 = vsel %vm198, %v180, 0
    %v230 = vsel %vm198, %v181, 0
    %v233 = vsel %vm198, %v182, 0
    %v236 = vsel %vm198, %v183, 0
    %v239 = vsel %vm198, %v184, 0
    %v242 = vsel %vm198, %v185, 0
    %v245 = vsel %vm198, %v186, 0
    %v248 = vsel %vm198, %v187, 0
    %v251 = vsel %vm198, %v188, 0
    %v254 = vsel %vm198, %v189, 0
    %vm256 = vcmask 1042432
    %v258 = vsel %vm256, %v190, 0
    %260 = vmatprep.subr.bf16.mxu0 0
    %261 = vmatpush1.bf16.msra.mxu0 %v258
    %262 = vmatprep.subr.bf16.mxu0 0
    %263 = vmatpush1.bf16.msra.mxu0 0
    %264 = vmatprep.subr.bf16.mxu0 0
    %265 = vmatpush1.bf16.msra.mxu0 0
    %266 = vmatprep.subr.bf16.mxu0 0
    %267 = vmatpush1.bf16.msra.mxu0 0
    %268 = vmatprep.subr.bf16.mxu0 0
    %269 = vmatpush1.bf16.msra.mxu0 0
    %270 = vmatprep.subr.bf16.mxu0 0
    %271 = vmatpush1.bf16.msra.mxu0 0
    %272 = vmatprep.subr.bf16.mxu0 0
    %273 = vmatpush1.bf16.msra.mxu0 0
    %274 = vmatprep.subr.bf16.mxu0 0
    %275 = vmatpush1.bf16.msra.mxu0 0
    %276 = vmatprep.subr.bf16.mxu0 0
    %277 = vmatpush1.bf16.msra.mxu0 0
    %278 = vmatprep.subr.bf16.mxu0 0
    %279 = vmatpush1.bf16.msra.mxu0 0
    %280 = vmatprep.subr.bf16.mxu0 0
    %281 = vmatpush1.bf16.msra.mxu0 0
    %282 = vmatprep.subr.bf16.mxu0 0
    %283 = vmatpush1.bf16.msra.mxu0 0
    %284 = vmatprep.subr.bf16.mxu0 0
    %285 = vmatpush1.bf16.msra.mxu0 0
    %286 = vmatprep.subr.bf16.mxu0 0
    %287 = vmatpush1.bf16.msra.mxu0 0
    %288 = vmatprep.subr.bf16.mxu0 0
    %289 = vmatpush1.bf16.msra.mxu0 0
    %290 = vmatprep.subr.bf16.mxu0 0
    %291 = vmatpush1.bf16.msra.mxu0 0
    %292 = vmatprep.mubr.bf16.mxu0 0
    %293 = vmatmul.mubr.bf16.gmra.mrb[0].mxu0 %v200
    %v294 = vpop.f32.mrb[0].mxu0
    %v295 = vadd.f32 %v196, %v294
    %v296 = vpop.f32.mrb[0].mxu0
    %v297 = vpop.f32.mrb[0].mxu0
    %v298 = vadd.f32 %v196, %v297
    %v299 = vpop.f32.mrb[0].mxu0
    %300 = vmatprep.mubr.bf16.mxu0 0
    %301 = vmatmul.mubr.bf16.gmra.mrb[0].mxu0 %v203
    %v302 = vpop.f32.mrb[0].mxu0
    %v303 = vadd.f32 %v196, %v302
    %v304 = vpop.f32.mrb[0].mxu0
    %v305 = vpop.f32.mrb[0].mxu0
    %v306 = vadd.f32 %v196, %v305
    %v307 = vpop.f32.mrb[0].mxu0
    %308 = vmatprep.mubr.bf16.mxu0 0
    %309 = vmatmul.mubr.bf16.gmra.mrb[0].mxu0 %v206
    %v310 = vpop.f32.mrb[0].mxu0
    %v311 = vadd.f32 %v196, %v310
    %v312 = vpop.f32.mrb[0].mxu0
    %v313 = vpop.f32.mrb[0].mxu0
    %v314 = vadd.f32 %v196, %v313
    %v315 = vpop.f32.mrb[0].mxu0
    %316 = vmatprep.mubr.bf16.mxu0 0
    %317 = vmatmul.mubr.bf16.gmra.mrb[0].mxu0 %v209
    %v318 = vpop.f32.mrb[0].mxu0
    %v319 = vadd.f32 %v196, %v318
    %v320 = vpop.f32.mrb[0].mxu0
    %v321 = vpop.f32.mrb[0].mxu0
    %v322 = vadd.f32 %v196, %v321
    %v323 = vpop.f32.mrb[0].mxu0
    %324 = vmatprep.mubr.bf16.mxu0 0
    %325 = vmatmul.mubr.bf16.gmra.mrb[0].mxu0 %v212
    %v326 = vpop.f32.mrb[0].mxu0
    %v327 = vadd.f32 %v196, %v326
    %v328 = vpop.f32.mrb[0].mxu0
    %v329 = vpop.f32.mrb[0].mxu0
    %v330 = vadd.f32 %v196, %v329
    %v331 = vpop.f32.mrb[0].mxu0
    %332 = vmatprep.mubr.bf16.mxu0 0
    %333 = vmatmul.mubr.bf16.gmra.mrb[0].mxu0 %v215
    %v334 = vpop.f32.mrb[0].mxu0
    %v335 = vadd.f32 %v196, %v334
    %v336 = vpop.f32.mrb[0].mxu0
    %v337 = vpop.f32.mrb[0].mxu0
    %v338 = vadd.f32 %v196, %v337
    %v339 = vpop.f32.mrb[0].mxu0
    %340 = vmatprep.mubr.bf16.mxu0 0
    %341 = vmatmul.mubr.bf16.gmra.mrb[0].mxu0 %v218
    %v342 = vpop.f32.mrb[0].mxu0
    %v343 = vadd.f32 %v196, %v342
    %v344 = vpop.f32.mrb[0].mxu0
    %v345 = vpop.f32.mrb[0].mxu0
    %v346 = vadd.f32 %v196, %v345
    %v347 = vpop.f32.mrb[0].mxu0
    %348 = vmatprep.mubr.bf16.mxu0 0
    %349 = vmatmul.mubr.bf16.gmra.mrb[0].mxu0 %v221
    %v350 = vpop.f32.mrb[0].mxu0
    %v351 = vadd.f32 %v196, %v350
    %v352 = vpop.f32.mrb[0].mxu0
    %v353 = vpop.f32.mrb[0].mxu0
    %v354 = vadd.f32 %v196, %v353
    %v355 = vpop.f32.mrb[0].mxu0
    %356 = vmatprep.mubr.bf16.mxu0 0
    %357 = vmatmul.mubr.bf16.gmra.mrb[0].mxu0 %v224
    %v358 = vpop.f32.mrb[0].mxu0
    %v359 = vadd.f32 %v196, %v358
    %v360 = vpop.f32.mrb[0].mxu0
    %v361 = vpop.f32.mrb[0].mxu0
    %v362 = vadd.f32 %v196, %v361
    %v363 = vpop.f32.mrb[0].mxu0
    %364 = vmatprep.mubr.bf16.mxu0 0
    %365 = vmatmul.mubr.bf16.gmra.mrb[0].mxu0 %v227
    %v366 = vpop.f32.mrb[0].mxu0
    %v367 = vadd.f32 %v196, %v366
    %v368 = vpop.f32.mrb[0].mxu0
    %v369 = vpop.f32.mrb[0].mxu0
    %v370 = vadd.f32 %v196, %v369
    %v371 = vpop.f32.mrb[0].mxu0
    %372 = vmatprep.mubr.bf16.mxu0 0
    %373 = vmatmul.mubr.bf16.gmra.mrb[0].mxu0 %v230
    %v374 = vpop.f32.mrb[0].mxu0
    %v375 = vadd.f32 %v196, %v374
    %v376 = vpop.f32.mrb[0].mxu0
    %v377 = vpop.f32.mrb[0].mxu0
    %v378 = vadd.f32 %v196, %v377
    %v379 = vpop.f32.mrb[0].mxu0
    %380 = vmatprep.mubr.bf16.mxu0 0
    %381 = vmatmul.mubr.bf16.gmra.mrb[0].mxu0 %v233
    %v382 = vpop.f32.mrb[0].mxu0
    %v383 = vadd.f32 %v196, %v382
    %v384 = vpop.f32.mrb[0].mxu0
    %v385 = vpop.f32.mrb[0].mxu0
    %v386 = vadd.f32 %v196, %v385
    %v387 = vpop.f32.mrb[0].mxu0
    %388 = vmatprep.mubr.bf16.mxu0 0
    %389 = vmatmul.mubr.bf16.gmra.mrb[0].mxu0 %v236
    %v390 = vpop.f32.mrb[0].mxu0
    %v391 = vadd.f32 %v196, %v390
    %v392 = vpop.f32.mrb[0].mxu0
    %v393 = vpop.f32.mrb[0].mxu0
    %v394 = vadd.f32 %v196, %v393
    %v395 = vpop.f32.mrb[0].mxu0
    %396 = vmatprep.mubr.bf16.mxu0 0
    %397 = vmatmul.mubr.bf16.gmra.mrb[0].mxu0 %v239
    %v398 = vpop.f32.mrb[0].mxu0
    %v399 = vadd.f32 %v196, %v398
    %v400 = vpop.f32.mrb[0].mxu0
    %v401 = vpop.f32.mrb[0].mxu0
    %v402 = vadd.f32 %v196, %v401
    %v403 = vpop.f32.mrb[0].mxu0
    %404 = vmatprep.mubr.bf16.mxu0 0
    %405 = vmatmul.mubr.bf16.gmra.mrb[0].mxu0 %v242
    %v406 = vpop.f32.mrb[0].mxu0
    %v407 = vadd.f32 %v196, %v406
    %v408 = vpop.f32.mrb[0].mxu0
    %v409 = vpop.f32.mrb[0].mxu0
    %v410 = vadd.f32 %v196, %v409
    %v411 = vpop.f32.mrb[0].mxu0
    %412 = vmatprep.mubr.bf16.mxu0 0
    %413 = vmatmul.mubr.bf16.gmra.mrb[0].mxu0 %v245
    %v414 = vpop.f32.mrb[0].mxu0
    %v415 = vadd.f32 %v196, %v414
    %v416 = vpop.f32.mrb[0].mxu0
    %v417 = vpop.f32.mrb[0].mxu0
    %v418 = vadd.f32 %v196, %v417
    %v419 = vpop.f32.mrb[0].mxu0
    %420 = vmatprep.mubr.bf16.mxu0 0
    %421 = vmatmul.mubr.bf16.gmra.mrb[0].mxu0 %v248
    %v422 = vpop.f32.mrb[0].mxu0
    %v423 = vadd.f32 %v196, %v422
    %v424 = vpop.f32.mrb[0].mxu0
    %v425 = vpop.f32.mrb[0].mxu0
    %v426 = vadd.f32 %v196, %v425
    %v427 = vpop.f32.mrb[0].mxu0
    %428 = vmatprep.mubr.bf16.mxu0 0
    %429 = vmatmul.mubr.bf16.gmra.mrb[0].mxu0 %v251
    %v430 = vpop.f32.mrb[0].mxu0
    %v431 = vadd.f32 %v196, %v430
    %v432 = vpop.f32.mrb[0].mxu0
    %v433 = vpop.f32.mrb[0].mxu0
    %v434 = vadd.f32 %v196, %v433
    %v435 = vpop.f32.mrb[0].mxu0
    %436 = vmatprep.mubr.bf16.mxu0 0
    %437 = vmatmul.mubr.bf16.gmra.mrb[0].mxu0 %v254
    %v438 = vpop.f32.mrb[0].mxu0
    %v439 = vadd.f32 %v196, %v438
    %v440 = vpop.f32.mrb[0].mxu0
    %v441 = vpop.f32.mrb[0].mxu0
    %v442 = vadd.f32 %v196, %v441
    %v443 = vpop.f32.mrb[0].mxu0
    %444 = vdwg.mxu0
    %vm445 = vcmp.gt.f32.partialorder %v295, 0.0
    %vm446 = vcmp.gt.f32.partialorder %v298, 0.0
    %vm447 = vcmp.gt.f32.partialorder %v303, 0.0
    %vm448 = vcmp.gt.f32.partialorder %v306, 0.0
    %vm449 = vcmp.gt.f32.partialorder %v311, 0.0
    %vm450 = vcmp.gt.f32.partialorder %v314, 0.0
    %vm451 = vcmp.gt.f32.partialorder %v319, 0.0
    %vm452 = vcmp.gt.f32.partialorder %v322, 0.0
    %vm453 = vcmp.gt.f32.partialorder %v327, 0.0
    %vm454 = vcmp.gt.f32.partialorder %v330, 0.0
    %vm455 = vcmp.gt.f32.partialorder %v335, 0.0
    %vm456 = vcmp.gt.f32.partialorder %v338, 0.0
    %vm457 = vcmp.gt.f32.partialorder %v343, 0.0
    %vm458 = vcmp.gt.f32.partialorder %v346, 0.0
    %vm459 = vcmp.gt.f32.partialorder %v351, 0.0
    %vm460 = vcmp.gt.f32.partialorder %v354, 0.0
    %vm461 = vcmp.gt.f32.partialorder %v359, 0.0
    %vm462 = vcmp.gt.f32.partialorder %v362, 0.0
    %vm463 = vcmp.gt.f32.partialorder %v367, 0.0
    %vm464 = vcmp.gt.f32.partialorder %v370, 0.0
    %vm465 = vcmp.gt.f32.partialorder %v375, 0.0
    %vm466 = vcmp.gt.f32.partialorder %v378, 0.0
    %vm467 = vcmp.gt.f32.partialorder %v383, 0.0
    %vm468 = vcmp.gt.f32.partialorder %v386, 0.0
    %vm469 = vcmp.gt.f32.partialorder %v391, 0.0
    %vm470 = vcmp.gt.f32.partialorder %v394, 0.0
    %vm471 = vcmp.gt.f32.partialorder %v399, 0.0
    %vm472 = vcmp.gt.f32.partialorder %v402, 0.0
    %vm473 = vcmp.gt.f32.partialorder %v407, 0.0
    %vm474 = vcmp.gt.f32.partialorder %v410, 0.0
    %vm475 = vcmp.gt.f32.partialorder %v415, 0.0
    %vm476 = vcmp.gt.f32.partialorder %v418, 0.0
    %vm477 = vcmp.gt.f32.partialorder %v423, 0.0
    %vm478 = vcmp.gt.f32.partialorder %v426, 0.0
    %vm479 = vcmp.gt.f32.partialorder %v431, 0.0
    %vm480 = vcmp.gt.f32.partialorder %v434, 0.0
    %vm481 = vcmp.gt.f32.partialorder %v439, 0.0
    %vm482 = vcmp.gt.f32.partialorder %v442, 0.0
    %v483 = vmul.f32 %v295, 0.01
    %v484 = vmul.f32 %v298, 0.01
    %v485 = vmul.f32 %v303, 0.01
    %v486 = vmul.f32 %v306, 0.01
    %v487 = vmul.f32 %v311, 0.01
    %v488 = vmul.f32 %v314, 0.01
    %v489 = vmul.f32 %v319, 0.01
    %v490 = vmul.f32 %v322, 0.01
    %v491 = vmul.f32 %v327, 0.01
    %v492 = vmul.f32 %v330, 0.01
    %v493 = vmul.f32 %v335, 0.01
    %v494 = vmul.f32 %v338, 0.01
    %v495 = vmul.f32 %v343, 0.01
    %v496 = vmul.f32 %v346, 0.01
    %v497 = vmul.f32 %v351, 0.01
    %v498 = vmul.f32 %v354, 0.01
    %v499 = vmul.f32 %v359, 0.01
    %v500 = vmul.f32 %v362, 0.01
    %v501 = vmul.f32 %v367, 0.01
    %v502 = vmul.f32 %v370, 0.01
    %v503 = vmul.f32 %v375, 0.01
    %v504 = vmul.f32 %v378, 0.01
    %v505 = vmul.f32 %v383, 0.01
    %v506 = vmul.f32 %v386, 0.01
    %v507 = vmul.f32 %v391, 0.01
    %v508 = vmul.f32 %v394, 0.01
    %v509 = vmul.f32 %v399, 0.01
    %v510 = vmul.f32 %v402, 0.01
    %v511 = vmul.f32 %v407, 0.01
    %v512 = vmul.f32 %v410, 0.01
    %v513 = vmul.f32 %v415, 0.01
    %v514 = vmul.f32 %v418, 0.01
    %v515 = vmul.f32 %v423, 0.01
    %v516 = vmul.f32 %v426, 0.01
    %v517 = vmul.f32 %v431, 0.01
    %v518 = vmul.f32 %v434, 0.01
    %v519 = vmul.f32 %v439, 0.01
    %v520 = vmul.f32 %v442, 0.01
    %v521 = vsel %vm445, %v295, %v483
    %v522 = vsel %vm446, %v298, %v484
    %v523 = vsel %vm447, %v303, %v485
    %v524 = vsel %vm448, %v306, %v486
    %v525 = vsel %vm449, %v311, %v487
    %v526 = vsel %vm450, %v314, %v488
    %v527 = vsel %vm451, %v319, %v489
    %v528 = vsel %vm452, %v322, %v490
    %v529 = vsel %vm453, %v327, %v491
    %v530 = vsel %vm454, %v330, %v492
    %v531 = vsel %vm455, %v335, %v493
    %v532 = vsel %vm456, %v338, %v494
    %v533 = vsel %vm457, %v343, %v495
    %v534 = vsel %vm458, %v346, %v496
    %v535 = vsel %vm459, %v351, %v497
    %v536 = vsel %vm460, %v354, %v498
    %v537 = vsel %vm461, %v359, %v499
    %v538 = vsel %vm462, %v362, %v500
    %v539 = vsel %vm463, %v367, %v501
    %v540 = vsel %vm464, %v370, %v502
    %v541 = vsel %vm465, %v375, %v503
    %v542 = vsel %vm466, %v378, %v504
    %v543 = vsel %vm467, %v383, %v505
    %v544 = vsel %vm468, %v386, %v506
    %v545 = vsel %vm469, %v391, %v507
    %v546 = vsel %vm470, %v394, %v508
    %v547 = vsel %vm471, %v399, %v509
    %v548 = vsel %vm472, %v402, %v510
    %v549 = vsel %vm473, %v407, %v511
    %v550 = vsel %vm474, %v410, %v512
    %v551 = vsel %vm475, %v415, %v513
    %v552 = vsel %vm476, %v418, %v514
    %v553 = vsel %vm477, %v423, %v515
    %v554 = vsel %vm478, %v426, %v516
    %v555 = vsel %vm479, %v431, %v517
    %v556 = vsel %vm480, %v434, %v518
    %v557 = vsel %vm481, %v439, %v519
    %v558 = vsel %vm482, %v442, %v520
    %v559 = vpack.c.bf16 %v522, %v521
    %v560 = vpack.c.bf16 %v524, %v523
    %v561 = vpack.c.bf16 %v526, %v525
    %v562 = vpack.c.bf16 %v528, %v527
    %v563 = vpack.c.bf16 %v530, %v529
    %v564 = vpack.c.bf16 %v532, %v531
    %v565 = vpack.c.bf16 %v534, %v533
    %v566 = vpack.c.bf16 %v536, %v535
    %v567 = vpack.c.bf16 %v538, %v537
    %v568 = vpack.c.bf16 %v540, %v539
    %v569 = vpack.c.bf16 %v542, %v541
    %v570 = vpack.c.bf16 %v544, %v543
    %v571 = vpack.c.bf16 %v546, %v545
    %v572 = vpack.c.bf16 %v548, %v547
    %v573 = vpack.c.bf16 %v550, %v549
    %v574 = vpack.c.bf16 %v552, %v551
    %v575 = vpack.c.bf16 %v554, %v553
    %v576 = vpack.c.bf16 %v556, %v555
    %v577 = vpack.c.bf16 %v558, %v557
    %v578 = vld [vmem:[%s3] sm:$0xf]
    %v579 = vld [vmem:[%s3 + $0x4] sm:$0xf]
    %v580 = vld [vmem:[%s3 + $0x8] sm:$0xf]
    %v581 = vld [vmem:[%s3 + $0xc] sm:$0xf]
    %v582 = vld [vmem:[#allocation3] sm:$0x1]
    %v584 = vlaneseq
    %v585 = vshrl.u32 %v584, 7
    %v586 = vsub.s32 0, %v585
    %v587 = vrot.slane %v582, %v586
    %v593 = vunpack.c.l.b16 %v578
    %v594 = vunpack.c.l.b16 %v579
    %v595 = vunpack.c.l.b16 %v580
    %v596 = vunpack.c.l.b16 %v581
    %v597 = vpack.c.b16 %v594, %v593
    %v598 = vpack.c.b16 %v596, %v595
    %vm601 = vcmask 261120
    %v603 = vsel %vm601, %v559, 0
    %v606 = vsel %vm601, %v560, 0
    %v609 = vsel %vm601, %v561, 0
    %v612 = vsel %vm601, %v562, 0
    %v615 = vsel %vm601, %v563, 0
    %v618 = vsel %vm601, %v564, 0
    %v621 = vsel %vm601, %v565, 0
    %v624 = vsel %vm601, %v566, 0
    %v627 = vsel %vm601, %v567, 0
    %v630 = vsel %vm601, %v568, 0
    %v633 = vsel %vm601, %v569, 0
    %v636 = vsel %vm601, %v570, 0
    %v639 = vsel %vm601, %v571, 0
    %v642 = vsel %vm601, %v572, 0
    %v645 = vsel %vm601, %v573, 0
    %v648 = vsel %vm601, %v574, 0
    %v651 = vsel %vm601, %v575, 0
    %v654 = vsel %vm601, %v576, 0
    %v657 = vsel %vm601, %v577, 0
    %659 = vmatprep.subr.bf16.mxu0 0
    %660 = vmatpush1.bf16.msra.mxu0 %v597
    %661 = vmatprep.subr.bf16.mxu0 0
    %662 = vmatpush1.bf16.msra.mxu0 %v598
    %663 = vmatprep.subr.bf16.mxu0 0
    %664 = vmatpush1.bf16.msra.mxu0 0
    %665 = vmatprep.subr.bf16.mxu0 0
    %666 = vmatpush1.bf16.msra.mxu0 0
    %667 = vmatprep.subr.bf16.mxu0 0
    %668 = vmatpush1.bf16.msra.mxu0 0
    %669 = vmatprep.subr.bf16.mxu0 0
    %670 = vmatpush1.bf16.msra.mxu0 0
    %671 = vmatprep.subr.bf16.mxu0 0
    %672 = vmatpush1.bf16.msra.mxu0 0
    %673 = vmatprep.subr.bf16.mxu0 0
    %674 = vmatpush1.bf16.msra.mxu0 0
    %675 = vmatprep.subr.bf16.mxu0 0
    %676 = vmatpush1.bf16.msra.mxu0 0
    %677 = vmatprep.subr.bf16.mxu0 0
    %678 = vmatpush1.bf16.msra.mxu0 0
    %679 = vmatprep.subr.bf16.mxu0 0
    %680 = vmatpush1.bf16.msra.mxu0 0
    %681 = vmatprep.subr.bf16.mxu0 0
    %682 = vmatpush1.bf16.msra.mxu0 0
    %683 = vmatprep.subr.bf16.mxu0 0
    %684 = vmatpush1.bf16.msra.mxu0 0
    %685 = vmatprep.subr.bf16.mxu0 0
    %686 = vmatpush1.bf16.msra.mxu0 0
    %687 = vmatprep.subr.bf16.mxu0 0
    %688 = vmatpush1.bf16.msra.mxu0 0
    %689 = vmatprep.subr.bf16.mxu0 0
    %690 = vmatpush1.bf16.msra.mxu0 0
    %691 = vmatprep.mubr.bf16.mxu0 0
    %692 = vmatmul.mubr.bf16.gmra.mrb[0].mxu0 %v603
    %v693 = vpop.f32.mrb[0].mxu0
    %v694 = vadd.f32 %v587, %v693
    %v695 = vpop.f32.mrb[0].mxu0
    %v696 = vpop.f32.mrb[0].mxu0
    %v697 = vadd.f32 %v587, %v696
    %v698 = vpop.f32.mrb[0].mxu0
    %699 = vmatprep.mubr.bf16.mxu0 0
    %700 = vmatmul.mubr.bf16.gmra.mrb[0].mxu0 %v606
    %v701 = vpop.f32.mrb[0].mxu0
    %v702 = vadd.f32 %v587, %v701
    %v703 = vpop.f32.mrb[0].mxu0
    %v704 = vpop.f32.mrb[0].mxu0
    %v705 = vadd.f32 %v587, %v704
    %v706 = vpop.f32.mrb[0].mxu0
    %707 = vmatprep.mubr.bf16.mxu0 0
    %708 = vmatmul.mubr.bf16.gmra.mrb[0].mxu0 %v609
    %v709 = vpop.f32.mrb[0].mxu0
    %v710 = vadd.f32 %v587, %v709
    %v711 = vpop.f32.mrb[0].mxu0
    %v712 = vpop.f32.mrb[0].mxu0
    %v713 = vadd.f32 %v587, %v712
    %v714 = vpop.f32.mrb[0].mxu0
    %715 = vmatprep.mubr.bf16.mxu0 0
    %716 = vmatmul.mubr.bf16.gmra.mrb[0].mxu0 %v612
    %v717 = vpop.f32.mrb[0].mxu0
    %v718 = vadd.f32 %v587, %v717
    %v719 = vpop.f32.mrb[0].mxu0
    %v720 = vpop.f32.mrb[0].mxu0
    %v721 = vadd.f32 %v587, %v720
    %v722 = vpop.f32.mrb[0].mxu0
    %723 = vmatprep.mubr.bf16.mxu0 0
    %724 = vmatmul.mubr.bf16.gmra.mrb[0].mxu0 %v615
    %v725 = vpop.f32.mrb[0].mxu0
    %v726 = vadd.f32 %v587, %v725
    %v727 = vpop.f32.mrb[0].mxu0
    %v728 = vpop.f32.mrb[0].mxu0
    %v729 = vadd.f32 %v587, %v728
    %v730 = vpop.f32.mrb[0].mxu0
    %731 = vmatprep.mubr.bf16.mxu0 0
    %732 = vmatmul.mubr.bf16.gmra.mrb[0].mxu0 %v618
    %v733 = vpop.f32.mrb[0].mxu0
    %v734 = vadd.f32 %v587, %v733
    %v735 = vpop.f32.mrb[0].mxu0
    %v736 = vpop.f32.mrb[0].mxu0
    %v737 = vadd.f32 %v587, %v736
    %v738 = vpop.f32.mrb[0].mxu0
    %739 = vmatprep.mubr.bf16.mxu0 0
    %740 = vmatmul.mubr.bf16.gmra.mrb[0].mxu0 %v621
    %v741 = vpop.f32.mrb[0].mxu0
    %v742 = vadd.f32 %v587, %v741
    %v743 = vpop.f32.mrb[0].mxu0
    %v744 = vpop.f32.mrb[0].mxu0
    %v745 = vadd.f32 %v587, %v744
    %v746 = vpop.f32.mrb[0].mxu0
    %747 = vmatprep.mubr.bf16.mxu0 0
    %748 = vmatmul.mubr.bf16.gmra.mrb[0].mxu0 %v624
    %v749 = vpop.f32.mrb[0].mxu0
    %v750 = vadd.f32 %v587, %v749
    %v751 = vpop.f32.mrb[0].mxu0
    %v752 = vpop.f32.mrb[0].mxu0
    %v753 = vadd.f32 %v587, %v752
    %v754 = vpop.f32.mrb[0].mxu0
    %755 = vmatprep.mubr.bf16.mxu0 0
    %756 = vmatmul.mubr.bf16.gmra.mrb[0].mxu0 %v627
    %v757 = vpop.f32.mrb[0].mxu0
    %v758 = vadd.f32 %v587, %v757
    %v759 = vpop.f32.mrb[0].mxu0
    %v760 = vpop.f32.mrb[0].mxu0
    %v761 = vadd.f32 %v587, %v760
    %v762 = vpop.f32.mrb[0].mxu0
    %763 = vmatprep.mubr.bf16.mxu0 0
    %764 = vmatmul.mubr.bf16.gmra.mrb[0].mxu0 %v630
    %v765 = vpop.f32.mrb[0].mxu0
    %v766 = vadd.f32 %v587, %v765
    %v767 = vpop.f32.mrb[0].mxu0
    %v768 = vpop.f32.mrb[0].mxu0
    %v769 = vadd.f32 %v587, %v768
    %v770 = vpop.f32.mrb[0].mxu0
    %771 = vmatprep.mubr.bf16.mxu0 0
    %772 = vmatmul.mubr.bf16.gmra.mrb[0].mxu0 %v633
    %v773 = vpop.f32.mrb[0].mxu0
    %v774 = vadd.f32 %v587, %v773
    %v775 = vpop.f32.mrb[0].mxu0
    %v776 = vpop.f32.mrb[0].mxu0
    %v777 = vadd.f32 %v587, %v776
    %v778 = vpop.f32.mrb[0].mxu0
    %779 = vmatprep.mubr.bf16.mxu0 0
    %780 = vmatmul.mubr.bf16.gmra.mrb[0].mxu0 %v636
    %v781 = vpop.f32.mrb[0].mxu0
    %v782 = vadd.f32 %v587, %v781
    %v783 = vpop.f32.mrb[0].mxu0
    %v784 = vpop.f32.mrb[0].mxu0
    %v785 = vadd.f32 %v587, %v784
    %v786 = vpop.f32.mrb[0].mxu0
    %787 = vmatprep.mubr.bf16.mxu0 0
    %788 = vmatmul.mubr.bf16.gmra.mrb[0].mxu0 %v639
    %v789 = vpop.f32.mrb[0].mxu0
    %v790 = vadd.f32 %v587, %v789
    %v791 = vpop.f32.mrb[0].mxu0
    %v792 = vpop.f32.mrb[0].mxu0
    %v793 = vadd.f32 %v587, %v792
    %v794 = vpop.f32.mrb[0].mxu0
    %795 = vmatprep.mubr.bf16.mxu0 0
    %796 = vmatmul.mubr.bf16.gmra.mrb[0].mxu0 %v642
    %v797 = vpop.f32.mrb[0].mxu0
    %v798 = vadd.f32 %v587, %v797
    %v799 = vpop.f32.mrb[0].mxu0
    %v800 = vpop.f32.mrb[0].mxu0
    %v801 = vadd.f32 %v587, %v800
    %v802 = vpop.f32.mrb[0].mxu0
    %803 = vmatprep.mubr.bf16.mxu0 0
    %804 = vmatmul.mubr.bf16.gmra.mrb[0].mxu0 %v645
    %v805 = vpop.f32.mrb[0].mxu0
    %v806 = vadd.f32 %v587, %v805
    %v807 = vpop.f32.mrb[0].mxu0
    %v808 = vpop.f32.mrb[0].mxu0
    %v809 = vadd.f32 %v587, %v808
    %v810 = vpop.f32.mrb[0].mxu0
    %811 = vmatprep.mubr.bf16.mxu0 0
    %812 = vmatmul.mubr.bf16.gmra.mrb[0].mxu0 %v648
    %v813 = vpop.f32.mrb[0].mxu0
    %v814 = vadd.f32 %v587, %v813
    %v815 = vpop.f32.mrb[0].mxu0
    %v816 = vpop.f32.mrb[0].mxu0
    %v817 = vadd.f32 %v587, %v816
    %v818 = vpop.f32.mrb[0].mxu0
    %819 = vmatprep.mubr.bf16.mxu0 0
    %820 = vmatmul.mubr.bf16.gmra.mrb[0].mxu0 %v651
    %v821 = vpop.f32.mrb[0].mxu0
    %v822 = vadd.f32 %v587, %v821
    %v823 = vpop.f32.mrb[0].mxu0
    %v824 = vpop.f32.mrb[0].mxu0
    %v825 = vadd.f32 %v587, %v824
    %v826 = vpop.f32.mrb[0].mxu0
    %827 = vmatprep.mubr.bf16.mxu0 0
    %828 = vmatmul.mubr.bf16.gmra.mrb[0].mxu0 %v654
    %v829 = vpop.f32.mrb[0].mxu0
    %v830 = vadd.f32 %v587, %v829
    %v831 = vpop.f32.mrb[0].mxu0
    %v832 = vpop.f32.mrb[0].mxu0
    %v833 = vadd.f32 %v587, %v832
    %v834 = vpop.f32.mrb[0].mxu0
    %835 = vmatprep.mubr.bf16.mxu0 0
    %836 = vmatmul.mubr.bf16.gmra.mrb[0].mxu0 %v657
    %v837 = vpop.f32.mrb[0].mxu0
    %v838 = vadd.f32 %v587, %v837
    %v839 = vpop.f32.mrb[0].mxu0
    %v840 = vpop.f32.mrb[0].mxu0
    %v841 = vadd.f32 %v587, %v840
    %v842 = vpop.f32.mrb[0].mxu0
    %843 = vdwg.mxu0
    %vm844 = vcmp.gt.f32.partialorder %v694, 0.0
    %vm845 = vcmp.gt.f32.partialorder %v697, 0.0
    %vm846 = vcmp.gt.f32.partialorder %v702, 0.0
    %vm847 = vcmp.gt.f32.partialorder %v705, 0.0
    %vm848 = vcmp.gt.f32.partialorder %v710, 0.0
    %vm849 = vcmp.gt.f32.partialorder %v713, 0.0
    %vm850 = vcmp.gt.f32.partialorder %v718, 0.0
    %vm851 = vcmp.gt.f32.partialorder %v721, 0.0
    %vm852 = vcmp.gt.f32.partialorder %v726, 0.0
    %vm853 = vcmp.gt.f32.partialorder %v729, 0.0
    %vm854 = vcmp.gt.f32.partialorder %v734, 0.0
    %vm855 = vcmp.gt.f32.partialorder %v737, 0.0
    %vm856 = vcmp.gt.f32.partialorder %v742, 0.0
    %vm857 = vcmp.gt.f32.partialorder %v745, 0.0
    %vm858 = vcmp.gt.f32.partialorder %v750, 0.0
    %vm859 = vcmp.gt.f32.partialorder %v753, 0.0
    %vm860 = vcmp.gt.f32.partialorder %v758, 0.0
    %vm861 = vcmp.gt.f32.partialorder %v761, 0.0
    %vm862 = vcmp.gt.f32.partialorder %v766, 0.0
    %vm863 = vcmp.gt.f32.partialorder %v769, 0.0
    %vm864 = vcmp.gt.f32.partialorder %v774, 0.0
    %vm865 = vcmp.gt.f32.partialorder %v777, 0.0
    %vm866 = vcmp.gt.f32.partialorder %v782, 0.0
    %vm867 = vcmp.gt.f32.partialorder %v785, 0.0
    %vm868 = vcmp.gt.f32.partialorder %v790, 0.0
    %vm869 = vcmp.gt.f32.partialorder %v793, 0.0
    %vm870 = vcmp.gt.f32.partialorder %v798, 0.0
    %vm871 = vcmp.gt.f32.partialorder %v801, 0.0
    %vm872 = vcmp.gt.f32.partialorder %v806, 0.0
    %vm873 = vcmp.gt.f32.partialorder %v809, 0.0
    %vm874 = vcmp.gt.f32.partialorder %v814, 0.0
    %vm875 = vcmp.gt.f32.partialorder %v817, 0.0
    %vm876 = vcmp.gt.f32.partialorder %v822, 0.0
    %vm877 = vcmp.gt.f32.partialorder %v825, 0.0
    %vm878 = vcmp.gt.f32.partialorder %v830, 0.0
    %vm879 = vcmp.gt.f32.partialorder %v833, 0.0
    %vm880 = vcmp.gt.f32.partialorder %v838, 0.0
    %vm881 = vcmp.gt.f32.partialorder %v841, 0.0
    %v882 = vmul.f32 %v694, 0.01
    %v883 = vmul.f32 %v697, 0.01
    %v884 = vmul.f32 %v702, 0.01
    %v885 = vmul.f32 %v705, 0.01
    %v886 = vmul.f32 %v710, 0.01
    %v887 = vmul.f32 %v713, 0.01
    %v888 = vmul.f32 %v718, 0.01
    %v889 = vmul.f32 %v721, 0.01
    %v890 = vmul.f32 %v726, 0.01
    %v891 = vmul.f32 %v729, 0.01
    %v892 = vmul.f32 %v734, 0.01
    %v893 = vmul.f32 %v737, 0.01
    %v894 = vmul.f32 %v742, 0.01
    %v895 = vmul.f32 %v745, 0.01
    %v896 = vmul.f32 %v750, 0.01
    %v897 = vmul.f32 %v753, 0.01
    %v898 = vmul.f32 %v758, 0.01
    %v899 = vmul.f32 %v761, 0.01
    %v900 = vmul.f32 %v766, 0.01
    %v901 = vmul.f32 %v769, 0.01
    %v902 = vmul.f32 %v774, 0.01
    %v903 = vmul.f32 %v777, 0.01
    %v904 = vmul.f32 %v782, 0.01
    %v905 = vmul.f32 %v785, 0.01
    %v906 = vmul.f32 %v790, 0.01
    %v907 = vmul.f32 %v793, 0.01
    %v908 = vmul.f32 %v798, 0.01
    %v909 = vmul.f32 %v801, 0.01
    %v910 = vmul.f32 %v806, 0.01
    %v911 = vmul.f32 %v809, 0.01
    %v912 = vmul.f32 %v814, 0.01
    %v913 = vmul.f32 %v817, 0.01
    %v914 = vmul.f32 %v822, 0.01
    %v915 = vmul.f32 %v825, 0.01
    %v916 = vmul.f32 %v830, 0.01
    %v917 = vmul.f32 %v833, 0.01
    %v918 = vmul.f32 %v838, 0.01
    %v919 = vmul.f32 %v841, 0.01
    %v920 = vsel %vm844, %v694, %v882
    %v921 = vsel %vm845, %v697, %v883
    %v922 = vsel %vm846, %v702, %v884
    %v923 = vsel %vm847, %v705, %v885
    %v924 = vsel %vm848, %v710, %v886
    %v925 = vsel %vm849, %v713, %v887
    %v926 = vsel %vm850, %v718, %v888
    %v927 = vsel %vm851, %v721, %v889
    %v928 = vsel %vm852, %v726, %v890
    %v929 = vsel %vm853, %v729, %v891
    %v930 = vsel %vm854, %v734, %v892
    %v931 = vsel %vm855, %v737, %v893
    %v932 = vsel %vm856, %v742, %v894
    %v933 = vsel %vm857, %v745, %v895
    %v934 = vsel %vm858, %v750, %v896
    %v935 = vsel %vm859, %v753, %v897
    %v936 = vsel %vm860, %v758, %v898
    %v937 = vsel %vm861, %v761, %v899
    %v938 = vsel %vm862, %v766, %v900
    %v939 = vsel %vm863, %v769, %v901
    %v940 = vsel %vm864, %v774, %v902
    %v941 = vsel %vm865, %v777, %v903
    %v942 = vsel %vm866, %v782, %v904
    %v943 = vsel %vm867, %v785, %v905
    %v944 = vsel %vm868, %v790, %v906
    %v945 = vsel %vm869, %v793, %v907
    %v946 = vsel %vm870, %v798, %v908
    %v947 = vsel %vm871, %v801, %v909
    %v948 = vsel %vm872, %v806, %v910
    %v949 = vsel %vm873, %v809, %v911
    %v950 = vsel %vm874, %v814, %v912
    %v951 = vsel %vm875, %v817, %v913
    %v952 = vsel %vm876, %v822, %v914
    %v953 = vsel %vm877, %v825, %v915
    %v954 = vsel %vm878, %v830, %v916
    %v955 = vsel %vm879, %v833, %v917
    %v956 = vsel %vm880, %v838, %v918
    %v957 = vsel %vm881, %v841, %v919
    %v958 = vpack.c.bf16 %v921, %v920
    %v959 = vpack.c.bf16 %v923, %v922
    %v960 = vpack.c.bf16 %v925, %v924
    %v961 = vpack.c.bf16 %v927, %v926
    %v962 = vpack.c.bf16 %v929, %v928
    %v963 = vpack.c.bf16 %v931, %v930
    %v964 = vpack.c.bf16 %v933, %v932
    %v965 = vpack.c.bf16 %v935, %v934
    %v966 = vpack.c.bf16 %v937, %v936
    %v967 = vpack.c.bf16 %v939, %v938
    %v968 = vpack.c.bf16 %v941, %v940
    %v969 = vpack.c.bf16 %v943, %v942
    %v970 = vpack.c.bf16 %v945, %v944
    %v971 = vpack.c.bf16 %v947, %v946
    %v972 = vpack.c.bf16 %v949, %v948
    %v973 = vpack.c.bf16 %v951, %v950
    %v974 = vpack.c.bf16 %v953, %v952
    %v975 = vpack.c.bf16 %v955, %v954
    %v976 = vpack.c.bf16 %v957, %v956
    %v977 = vld [vmem:[#allocation6] sm:$0xf]
    %v978 = vld [vmem:[#allocation6 + $0x4] sm:$0xf]
    %v979 = vld [vmem:[#allocation6 + $0x8] sm:$0xf]
    %v980 = vld [vmem:[#allocation6 + $0xc] sm:$0xf]
    %v981 = vld [vmem:[#allocation6 + $0x10] sm:$0xf]
    %v982 = vld [vmem:[#allocation6 + $0x14] sm:$0xf]
    %v983 = vld [vmem:[#allocation6 + $0x18] sm:$0xf]
    %v984 = vld [vmem:[#allocation6 + $0x1c] sm:$0xf]
    %v985 = vld [vmem:[#allocation8] sm:$0x1]
    %v987 = vlaneseq
    %v988 = vshrl.u32 %v987, 7
    %v989 = vsub.s32 0, %v988
    %v990 = vrot.slane %v985, %v989
    %v1000 = vunpack.c.l.b16 %v977
    %v1001 = vunpack.c.l.b16 %v978
    %v1002 = vunpack.c.l.b16 %v979
    %v1003 = vunpack.c.l.b16 %v980
    %v1004 = vunpack.c.l.b16 %v981
    %v1005 = vunpack.c.l.b16 %v982
    %v1006 = vunpack.c.l.b16 %v983
    %v1007 = vunpack.c.l.b16 %v984
    %v1008 = vpack.c.b16 %v1001, %v1000
    %v1009 = vpack.c.b16 %v1003, %v1002
    %v1010 = vpack.c.b16 %v1005, %v1004
    %v1011 = vpack.c.b16 %v1007, %v1006
    %vm1016 = vcmask 523264
    %v1018 = vsel %vm1016, %v958, 0
    %v1021 = vsel %vm1016, %v959, 0
    %v1024 = vsel %vm1016, %v960, 0
    %v1027 = vsel %vm1016, %v961, 0
    %v1030 = vsel %vm1016, %v962, 0
    %v1033 = vsel %vm1016, %v963, 0
    %v1036 = vsel %vm1016, %v964, 0
    %v1039 = vsel %vm1016, %v965, 0
    %v1042 = vsel %vm1016, %v966, 0
    %v1045 = vsel %vm1016, %v967, 0
    %v1048 = vsel %vm1016, %v968, 0
    %v1051 = vsel %vm1016, %v969, 0
    %v1054 = vsel %vm1016, %v970, 0
    %v1057 = vsel %vm1016, %v971, 0
    %v1060 = vsel %vm1016, %v972, 0
    %v1063 = vsel %vm1016, %v973, 0
    %v1066 = vsel %vm1016, %v974, 0
    %v1069 = vsel %vm1016, %v975, 0
    %v1072 = vsel %vm1016, %v976, 0
    %1074 = vmatprep.subr.bf16.mxu0 0
    %1075 = vmatpush1.bf16.msra.mxu0 %v1008
    %1076 = vmatprep.subr.bf16.mxu0 0
    %1077 = vmatpush1.bf16.msra.mxu0 %v1009
    %1078 = vmatprep.subr.bf16.mxu0 0
    %1079 = vmatpush1.bf16.msra.mxu0 %v1010
    %1080 = vmatprep.subr.bf16.mxu0 0
    %1081 = vmatpush1.bf16.msra.mxu0 %v1011
    %1082 = vmatprep.subr.bf16.mxu0 0
    %1083 = vmatpush1.bf16.msra.mxu0 0
    %1084 = vmatprep.subr.bf16.mxu0 0
    %1085 = vmatpush1.bf16.msra.mxu0 0
    %1086 = vmatprep.subr.bf16.mxu0 0
    %1087 = vmatpush1.bf16.msra.mxu0 0
    %1088 = vmatprep.subr.bf16.mxu0 0
    %1089 = vmatpush1.bf16.msra.mxu0 0
    %1090 = vmatprep.subr.bf16.mxu0 0
    %1091 = vmatpush1.bf16.msra.mxu0 0
    %1092 = vmatprep.subr.bf16.mxu0 0
    %1093 = vmatpush1.bf16.msra.mxu0 0
    %1094 = vmatprep.subr.bf16.mxu0 0
    %1095 = vmatpush1.bf16.msra.mxu0 0
    %1096 = vmatprep.subr.bf16.mxu0 0
    %1097 = vmatpush1.bf16.msra.mxu0 0
    %1098 = vmatprep.subr.bf16.mxu0 0
    %1099 = vmatpush1.bf16.msra.mxu0 0
    %1100 = vmatprep.subr.bf16.mxu0 0
    %1101 = vmatpush1.bf16.msra.mxu0 0
    %1102 = vmatprep.subr.bf16.mxu0 0
    %1103 = vmatpush1.bf16.msra.mxu0 0
    %1104 = vmatprep.subr.bf16.mxu0 0
    %1105 = vmatpush1.bf16.msra.mxu0 0
    %1106 = vmatprep.mubr.bf16.mxu0 0
    %1107 = vmatmul.mubr.bf16.gmra.mrb[0].mxu0 %v1018
    %v1108 = vpop.f32.mrb[0].mxu0
    %v1109 = vadd.f32 %v990, %v1108
    %v1110 = vpop.f32.mrb[0].mxu0
    %v1111 = vpop.f32.mrb[0].mxu0
    %v1112 = vadd.f32 %v990, %v1111
    %v1113 = vpop.f32.mrb[0].mxu0
    %1114 = vmatprep.mubr.bf16.mxu0 0
    %1115 = vmatmul.mubr.bf16.gmra.mrb[0].mxu0 %v1021
    %v1116 = vpop.f32.mrb[0].mxu0
    %v1117 = vadd.f32 %v990, %v1116
    %v1118 = vpop.f32.mrb[0].mxu0
    %v1119 = vpop.f32.mrb[0].mxu0
    %v1120 = vadd.f32 %v990, %v1119
    %v1121 = vpop.f32.mrb[0].mxu0
    %1122 = vmatprep.mubr.bf16.mxu0 0
    %1123 = vmatmul.mubr.bf16.gmra.mrb[0].mxu0 %v1024
    %v1124 = vpop.f32.mrb[0].mxu0
    %v1125 = vadd.f32 %v990, %v1124
    %v1126 = vpop.f32.mrb[0].mxu0
    %v1127 = vpop.f32.mrb[0].mxu0
    %v1128 = vadd.f32 %v990, %v1127
    %v1129 = vpop.f32.mrb[0].mxu0
    %1130 = vmatprep.mubr.bf16.mxu0 0
    %1131 = vmatmul.mubr.bf16.gmra.mrb[0].mxu0 %v1027
    %v1132 = vpop.f32.mrb[0].mxu0
    %v1133 = vadd.f32 %v990, %v1132
    %v1134 = vpop.f32.mrb[0].mxu0
    %v1135 = vpop.f32.mrb[0].mxu0
    %v1136 = vadd.f32 %v990, %v1135
    %v1137 = vpop.f32.mrb[0].mxu0
    %1138 = vmatprep.mubr.bf16.mxu0 0
    %1139 = vmatmul.mubr.bf16.gmra.mrb[0].mxu0 %v1030
    %v1140 = vpop.f32.mrb[0].mxu0
    %v1141 = vadd.f32 %v990, %v1140
    %v1142 = vpop.f32.mrb[0].mxu0
    %v1143 = vpop.f32.mrb[0].mxu0
    %v1144 = vadd.f32 %v990, %v1143
    %v1145 = vpop.f32.mrb[0].mxu0
    %1146 = vmatprep.mubr.bf16.mxu0 0
    %1147 = vmatmul.mubr.bf16.gmra.mrb[0].mxu0 %v1033
    %v1148 = vpop.f32.mrb[0].mxu0
    %v1149 = vadd.f32 %v990, %v1148
    %v1150 = vpop.f32.mrb[0].mxu0
    %v1151 = vpop.f32.mrb[0].mxu0
    %v1152 = vadd.f32 %v990, %v1151
    %v1153 = vpop.f32.mrb[0].mxu0
    %1154 = vmatprep.mubr.bf16.mxu0 0
    %1155 = vmatmul.mubr.bf16.gmra.mrb[0].mxu0 %v1036
    %v1156 = vpop.f32.mrb[0].mxu0
    %v1157 = vadd.f32 %v990, %v1156
    %v1158 = vpop.f32.mrb[0].mxu0
    %v1159 = vpop.f32.mrb[0].mxu0
    %v1160 = vadd.f32 %v990, %v1159
    %v1161 = vpop.f32.mrb[0].mxu0
    %1162 = vmatprep.mubr.bf16.mxu0 0
    %1163 = vmatmul.mubr.bf16.gmra.mrb[0].mxu0 %v1039
    %v1164 = vpop.f32.mrb[0].mxu0
    %v1165 = vadd.f32 %v990, %v1164
    %v1166 = vpop.f32.mrb[0].mxu0
    %v1167 = vpop.f32.mrb[0].mxu0
    %v1168 = vadd.f32 %v990, %v1167
    %v1169 = vpop.f32.mrb[0].mxu0
    %1170 = vmatprep.mubr.bf16.mxu0 0
    %1171 = vmatmul.mubr.bf16.gmra.mrb[0].mxu0 %v1042
    %v1172 = vpop.f32.mrb[0].mxu0
    %v1173 = vadd.f32 %v990, %v1172
    %v1174 = vpop.f32.mrb[0].mxu0
    %v1175 = vpop.f32.mrb[0].mxu0
    %v1176 = vadd.f32 %v990, %v1175
    %v1177 = vpop.f32.mrb[0].mxu0
    %1178 = vmatprep.mubr.bf16.mxu0 0
    %1179 = vmatmul.mubr.bf16.gmra.mrb[0].mxu0 %v1045
    %v1180 = vpop.f32.mrb[0].mxu0
    %v1181 = vadd.f32 %v990, %v1180
    %v1182 = vpop.f32.mrb[0].mxu0
    %v1183 = vpop.f32.mrb[0].mxu0
    %v1184 = vadd.f32 %v990, %v1183
    %v1185 = vpop.f32.mrb[0].mxu0
    %1186 = vmatprep.mubr.bf16.mxu0 0
    %1187 = vmatmul.mubr.bf16.gmra.mrb[0].mxu0 %v1048
    %v1188 = vpop.f32.mrb[0].mxu0
    %v1189 = vadd.f32 %v990, %v1188
    %v1190 = vpop.f32.mrb[0].mxu0
    %v1191 = vpop.f32.mrb[0].mxu0
    %v1192 = vadd.f32 %v990, %v1191
    %v1193 = vpop.f32.mrb[0].mxu0
    %1194 = vmatprep.mubr.bf16.mxu0 0
    %1195 = vmatmul.mubr.bf16.gmra.mrb[0].mxu0 %v1051
    %v1196 = vpop.f32.mrb[0].mxu0
    %v1197 = vadd.f32 %v990, %v1196
    %v1198 = vpop.f32.mrb[0].mxu0
    %v1199 = vpop.f32.mrb[0].mxu0
    %v1200 = vadd.f32 %v990, %v1199
    %v1201 = vpop.f32.mrb[0].mxu0
    %1202 = vmatprep.mubr.bf16.mxu0 0
    %1203 = vmatmul.mubr.bf16.gmra.mrb[0].mxu0 %v1054
    %v1204 = vpop.f32.mrb[0].mxu0
    %v1205 = vadd.f32 %v990, %v1204
    %v1206 = vpop.f32.mrb[0].mxu0
    %v1207 = vpop.f32.mrb[0].mxu0
    %v1208 = vadd.f32 %v990, %v1207
    %v1209 = vpop.f32.mrb[0].mxu0
    %1210 = vmatprep.mubr.bf16.mxu0 0
    %1211 = vmatmul.mubr.bf16.gmra.mrb[0].mxu0 %v1057
    %v1212 = vpop.f32.mrb[0].mxu0
    %v1213 = vadd.f32 %v990, %v1212
    %v1214 = vpop.f32.mrb[0].mxu0
    %v1215 = vpop.f32.mrb[0].mxu0
    %v1216 = vadd.f32 %v990, %v1215
    %v1217 = vpop.f32.mrb[0].mxu0
    %1218 = vmatprep.mubr.bf16.mxu0 0
    %1219 = vmatmul.mubr.bf16.gmra.mrb[0].mxu0 %v1060
    %v1220 = vpop.f32.mrb[0].mxu0
    %v1221 = vadd.f32 %v990, %v1220
    %v1222 = vpop.f32.mrb[0].mxu0
    %v1223 = vpop.f32.mrb[0].mxu0
    %v1224 = vadd.f32 %v990, %v1223
    %v1225 = vpop.f32.mrb[0].mxu0
    %1226 = vmatprep.mubr.bf16.mxu0 0
    %1227 = vmatmul.mubr.bf16.gmra.mrb[0].mxu0 %v1063
    %v1228 = vpop.f32.mrb[0].mxu0
    %v1229 = vadd.f32 %v990, %v1228
    %v1230 = vpop.f32.mrb[0].mxu0
    %v1231 = vpop.f32.mrb[0].mxu0
    %v1232 = vadd.f32 %v990, %v1231
    %v1233 = vpop.f32.mrb[0].mxu0
    %1234 = vmatprep.mubr.bf16.mxu0 0
    %1235 = vmatmul.mubr.bf16.gmra.mrb[0].mxu0 %v1066
    %v1236 = vpop.f32.mrb[0].mxu0
    %v1237 = vadd.f32 %v990, %v1236
    %v1238 = vpop.f32.mrb[0].mxu0
    %v1239 = vpop.f32.mrb[0].mxu0
    %v1240 = vadd.f32 %v990, %v1239
    %v1241 = vpop.f32.mrb[0].mxu0
    %1242 = vmatprep.mubr.bf16.mxu0 0
    %1243 = vmatmul.mubr.bf16.gmra.mrb[0].mxu0 %v1069
    %v1244 = vpop.f32.mrb[0].mxu0
    %v1245 = vadd.f32 %v990, %v1244
    %v1246 = vpop.f32.mrb[0].mxu0
    %v1247 = vpop.f32.mrb[0].mxu0
    %v1248 = vadd.f32 %v990, %v1247
    %v1249 = vpop.f32.mrb[0].mxu0
    %1250 = vmatprep.mubr.bf16.mxu0 0
    %1251 = vmatmul.mubr.bf16.gmra.mrb[0].mxu0 %v1072
    %v1252 = vpop.f32.mrb[0].mxu0
    %v1253 = vadd.f32 %v990, %v1252
    %v1254 = vpop.f32.mrb[0].mxu0
    %v1255 = vpop.f32.mrb[0].mxu0
    %v1256 = vadd.f32 %v990, %v1255
    %v1257 = vpop.f32.mrb[0].mxu0
    %1258 = vdwg.mxu0
    %vm1259 = vcmp.gt.f32.partialorder %v1109, 0.0
    %vm1260 = vcmp.gt.f32.partialorder %v1112, 0.0
    %vm1261 = vcmp.gt.f32.partialorder %v1117, 0.0
    %vm1262 = vcmp.gt.f32.partialorder %v1120, 0.0
    %vm1263 = vcmp.gt.f32.partialorder %v1125, 0.0
    %vm1264 = vcmp.gt.f32.partialorder %v1128, 0.0
    %vm1265 = vcmp.gt.f32.partialorder %v1133, 0.0
    %vm1266 = vcmp.gt.f32.partialorder %v1136, 0.0
    %vm1267 = vcmp.gt.f32.partialorder %v1141, 0.0
    %vm1268 = vcmp.gt.f32.partialorder %v1144, 0.0
    %vm1269 = vcmp.gt.f32.partialorder %v1149, 0.0
    %vm1270 = vcmp.gt.f32.partialorder %v1152, 0.0
    %vm1271 = vcmp.gt.f32.partialorder %v1157, 0.0
    %vm1272 = vcmp.gt.f32.partialorder %v1160, 0.0
    %vm1273 = vcmp.gt.f32.partialorder %v1165, 0.0
    %vm1274 = vcmp.gt.f32.partialorder %v1168, 0.0
    %vm1275 = vcmp.gt.f32.partialorder %v1173, 0.0
    %vm1276 = vcmp.gt.f32.partialorder %v1176, 0.0
    %vm1277 = vcmp.gt.f32.partialorder %v1181, 0.0
    %vm1278 = vcmp.gt.f32.partialorder %v1184, 0.0
    %vm1279 = vcmp.gt.f32.partialorder %v1189, 0.0
    %vm1280 = vcmp.gt.f32.partialorder %v1192, 0.0
    %vm1281 = vcmp.gt.f32.partialorder %v1197, 0.0
    %vm1282 = vcmp.gt.f32.partialorder %v1200, 0.0
    %vm1283 = vcmp.gt.f32.partialorder %v1205, 0.0
    %vm1284 = vcmp.gt.f32.partialorder %v1208, 0.0
    %vm1285 = vcmp.gt.f32.partialorder %v1213, 0.0
    %vm1286 = vcmp.gt.f32.partialorder %v1216, 0.0
    %vm1287 = vcmp.gt.f32.partialorder %v1221, 0.0
    %vm1288 = vcmp.gt.f32.partialorder %v1224, 0.0
    %vm1289 = vcmp.gt.f32.partialorder %v1229, 0.0
    %vm1290 = vcmp.gt.f32.partialorder %v1232, 0.0
    %vm1291 = vcmp.gt.f32.partialorder %v1237, 0.0
    %vm1292 = vcmp.gt.f32.partialorder %v1240, 0.0
    %vm1293 = vcmp.gt.f32.partialorder %v1245, 0.0
    %vm1294 = vcmp.gt.f32.partialorder %v1248, 0.0
    %vm1295 = vcmp.gt.f32.partialorder %v1253, 0.0
    %vm1296 = vcmp.gt.f32.partialorder %v1256, 0.0
    %v1297 = vmul.f32 %v1109, 0.01
    %v1298 = vmul.f32 %v1112, 0.01
    %v1299 = vmul.f32 %v1117, 0.01
    %v1300 = vmul.f32 %v1120, 0.01
    %v1301 = vmul.f32 %v1125, 0.01
    %v1302 = vmul.f32 %v1128, 0.01
    %v1303 = vmul.f32 %v1133, 0.01
    %v1304 = vmul.f32 %v1136, 0.01
    %v1305 = vmul.f32 %v1141, 0.01
    %v1306 = vmul.f32 %v1144, 0.01
    %v1307 = vmul.f32 %v1149, 0.01
    %v1308 = vmul.f32 %v1152, 0.01
    %v1309 = vmul.f32 %v1157, 0.01
    %v1310 = vmul.f32 %v1160, 0.01
    %v1311 = vmul.f32 %v1165, 0.01
    %v1312 = vmul.f32 %v1168, 0.01
    %v1313 = vmul.f32 %v1173, 0.01
    %v1314 = vmul.f32 %v1176, 0.01
    %v1315 = vmul.f32 %v1181, 0.01
    %v1316 = vmul.f32 %v1184, 0.01
    %v1317 = vmul.f32 %v1189, 0.01
    %v1318 = vmul.f32 %v1192, 0.01
    %v1319 = vmul.f32 %v1197, 0.01
    %v1320 = vmul.f32 %v1200, 0.01
    %v1321 = vmul.f32 %v1205, 0.01
    %v1322 = vmul.f32 %v1208, 0.01
    %v1323 = vmul.f32 %v1213, 0.01
    %v1324 = vmul.f32 %v1216, 0.01
    %v1325 = vmul.f32 %v1221, 0.01
    %v1326 = vmul.f32 %v1224, 0.01
    %v1327 = vmul.f32 %v1229, 0.01
    %v1328 = vmul.f32 %v1232, 0.01
    %v1329 = vmul.f32 %v1237, 0.01
    %v1330 = vmul.f32 %v1240, 0.01
    %v1331 = vmul.f32 %v1245, 0.01
    %v1332 = vmul.f32 %v1248, 0.01
    %v1333 = vmul.f32 %v1253, 0.01
    %v1334 = vmul.f32 %v1256, 0.01
    %v1335 = vsel %vm1259, %v1109, %v1297
    %v1336 = vsel %vm1260, %v1112, %v1298
    %v1337 = vsel %vm1261, %v1117, %v1299
    %v1338 = vsel %vm1262, %v1120, %v1300
    %v1339 = vsel %vm1263, %v1125, %v1301
    %v1340 = vsel %vm1264, %v1128, %v1302
    %v1341 = vsel %vm1265, %v1133, %v1303
    %v1342 = vsel %vm1266, %v1136, %v1304
    %v1343 = vsel %vm1267, %v1141, %v1305
    %v1344 = vsel %vm1268, %v1144, %v1306
    %v1345 = vsel %vm1269, %v1149, %v1307
    %v1346 = vsel %vm1270, %v1152, %v1308
    %v1347 = vsel %vm1271, %v1157, %v1309
    %v1348 = vsel %vm1272, %v1160, %v1310
    %v1349 = vsel %vm1273, %v1165, %v1311
    %v1350 = vsel %vm1274, %v1168, %v1312
    %v1351 = vsel %vm1275, %v1173, %v1313
    %v1352 = vsel %vm1276, %v1176, %v1314
    %v1353 = vsel %vm1277, %v1181, %v1315
    %v1354 = vsel %vm1278, %v1184, %v1316
    %v1355 = vsel %vm1279, %v1189, %v1317
    %v1356 = vsel %vm1280, %v1192, %v1318
    %v1357 = vsel %vm1281, %v1197, %v1319
    %v1358 = vsel %vm1282, %v1200, %v1320
    %v1359 = vsel %vm1283, %v1205, %v1321
    %v1360 = vsel %vm1284, %v1208, %v1322
    %v1361 = vsel %vm1285, %v1213, %v1323
    %v1362 = vsel %vm1286, %v1216, %v1324
    %v1363 = vsel %vm1287, %v1221, %v1325
    %v1364 = vsel %vm1288, %v1224, %v1326
    %v1365 = vsel %vm1289, %v1229, %v1327
    %v1366 = vsel %vm1290, %v1232, %v1328
    %v1367 = vsel %vm1291, %v1237, %v1329
    %v1368 = vsel %vm1292, %v1240, %v1330
    %v1369 = vsel %vm1293, %v1245, %v1331
    %v1370 = vsel %vm1294, %v1248, %v1332
    %v1371 = vsel %vm1295, %v1253, %v1333
    %v1372 = vsel %vm1296, %v1256, %v1334
    %v1373 = vld [vmem:[%s7] sm:$0xff]
    %v1374 = vld [vmem:[%s7 + $0x8] sm:$0xff]
    %v1375 = vld [vmem:[%s7 + $0x10] sm:$0xff]
    %v1376 = vld [vmem:[%s7 + $0x18] sm:$0xff]
    %v1377 = vld [vmem:[%s7 + $0x20] sm:$0xff]
    %v1378 = vld [vmem:[%s7 + $0x28] sm:$0xff]
    %v1379 = vld [vmem:[%s7 + $0x30] sm:$0xff]
    %v1380 = vld [vmem:[%s7 + $0x38] sm:$0xff]
    %v1381 = vld [vmem:[%s8] sm:$0xff]
    %v1382 = vld [vmem:[%s8 + $0x8] sm:$0xff]
    %v1383 = vld [vmem:[%s8 + $0x10] sm:$0xff]
    %v1384 = vld [vmem:[%s8 + $0x18] sm:$0xff]
    %v1385 = vld [vmem:[%s8 + $0x20] sm:$0xff]
    %v1386 = vld [vmem:[%s8 + $0x28] sm:$0xff]
    %v1387 = vld [vmem:[%s8 + $0x30] sm:$0xff]
    %v1388 = vld [vmem:[%s8 + $0x38] sm:$0xff]
    %v1389 = vld [vmem:[%s8 + $0x40] sm:$0xff]
    %v1390 = vld [vmem:[%s8 + $0x48] sm:$0xff]
    %v1391 = vld [vmem:[%s8 + $0x50] sm:$0xff]
    %v1392 = vld [vmem:[%s8 + $0x58] sm:$0xff]
    %v1393 = vld [vmem:[%s8 + $0x60] sm:$0xff]
    %v1394 = vld [vmem:[%s8 + $0x68] sm:$0xff]
    %v1395 = vld [vmem:[%s8 + $0x70] sm:$0xff]
    %v1396 = vld [vmem:[%s8 + $0x78] sm:$0xff]
    %v1413 = vunpack.c.l.b16 %v1381
    %v1414 = vunpack.c.h.b16 %v1381
    %v1415 = vunpack.c.l.b16 %v1382
    %v1416 = vunpack.c.h.b16 %v1382
    %v1417 = vunpack.c.l.b16 %v1383
    %v1418 = vunpack.c.h.b16 %v1383
    %v1419 = vunpack.c.l.b16 %v1384
    %v1420 = vunpack.c.h.b16 %v1384
    %v1421 = vunpack.c.l.b16 %v1385
    %v1422 = vunpack.c.h.b16 %v1385
    %v1423 = vunpack.c.l.b16 %v1386
    %v1424 = vunpack.c.h.b16 %v1386
    %v1425 = vunpack.c.l.b16 %v1387
    %v1426 = vunpack.c.h.b16 %v1387
    %v1427 = vunpack.c.l.b16 %v1388
    %v1428 = vunpack.c.h.b16 %v1388
    %v1429 = vunpack.c.l.b16 %v1389
    %v1430 = vunpack.c.h.b16 %v1389
    %v1431 = vunpack.c.l.b16 %v1390
    %v1432 = vunpack.c.h.b16 %v1390
    %v1433 = vunpack.c.l.b16 %v1391
    %v1434 = vunpack.c.h.b16 %v1391
    %v1435 = vunpack.c.l.b16 %v1392
    %v1436 = vunpack.c.h.b16 %v1392
    %v1437 = vunpack.c.l.b16 %v1393
    %v1438 = vunpack.c.h.b16 %v1393
    %v1439 = vunpack.c.l.b16 %v1394
    %v1440 = vunpack.c.h.b16 %v1394
    %v1441 = vunpack.c.l.b16 %v1395
    %v1442 = vunpack.c.h.b16 %v1395
    %v1443 = vunpack.c.l.b16 %v1396
    %v1444 = vunpack.c.h.b16 %v1396
    %v1445 = vpack.c.b16 %v1417, %v1413
    %v1446 = vpack.c.b16 %v1418, %v1414
    %v1447 = vpack.c.b16 %v1419, %v1415
    %v1448 = vpack.c.b16 %v1420, %v1416
    %v1449 = vpack.c.b16 %v1425, %v1421
    %v1450 = vpack.c.b16 %v1426, %v1422
    %v1451 = vpack.c.b16 %v1427, %v1423
    %v1452 = vpack.c.b16 %v1428, %v1424
    %v1453 = vpack.c.b16 %v1433, %v1429
    %v1454 = vpack.c.b16 %v1434, %v1430
    %v1455 = vpack.c.b16 %v1435, %v1431
    %v1456 = vpack.c.b16 %v1436, %v1432
    %v1457 = vpack.c.b16 %v1441, %v1437
    %v1458 = vpack.c.b16 %v1442, %v1438
    %v1459 = vpack.c.b16 %v1443, %v1439
    %v1460 = vpack.c.b16 %v1444, %v1440
    %1477 = vmatprep.subr.bf16.mxu0 %v1446
    %1478 = vmatpush1.bf16.msra.mxu0 %v1445
    %1479 = vmatprep.subr.bf16.mxu0 %v1450
    %1480 = vmatpush1.bf16.msra.mxu0 %v1449
    %1481 = vmatprep.subr.bf16.mxu0 %v1454
    %1482 = vmatpush1.bf16.msra.mxu0 %v1453
    %1483 = vmatprep.subr.bf16.mxu0 %v1458
    %1484 = vmatpush1.bf16.msra.mxu0 %v1457
    %1485 = vmatprep.subr.bf16.mxu0 0
    %1486 = vmatpush1.bf16.msra.mxu0 0
    %1487 = vmatprep.subr.bf16.mxu0 0
    %1488 = vmatpush1.bf16.msra.mxu0 0
    %1489 = vmatprep.subr.bf16.mxu0 0
    %1490 = vmatpush1.bf16.msra.mxu0 0
    %1491 = vmatprep.subr.bf16.mxu0 0
    %1492 = vmatpush1.bf16.msra.mxu0 0
    %1493 = vmatprep.subr.bf16.mxu0 0
    %1494 = vmatpush1.bf16.msra.mxu0 0
    %1495 = vmatprep.subr.bf16.mxu0 0
    %1496 = vmatpush1.bf16.msra.mxu0 0
    %1497 = vmatprep.subr.bf16.mxu0 0
    %1498 = vmatpush1.bf16.msra.mxu0 0
    %1499 = vmatprep.subr.bf16.mxu0 0
    %1500 = vmatpush1.bf16.msra.mxu0 0
    %1501 = vmatprep.subr.bf16.mxu0 0
    %1502 = vmatpush1.bf16.msra.mxu0 0
    %1503 = vmatprep.subr.bf16.mxu0 0
    %1504 = vmatpush1.bf16.msra.mxu0 0
    %1505 = vmatprep.subr.bf16.mxu0 0
    %1506 = vmatpush1.bf16.msra.mxu0 0
    %1507 = vmatprep.subr.bf16.mxu0 0
    %1508 = vmatpush1.bf16.msra.mxu0 0
    %1509 = vmatprep.mubr.bf16.mxu0 0
    %1510 = vmatmul.mubr.bf16.gmra.mrb[0].mxu0 %v1018
    %v1511 = vpop.f32.mrb[0].mxu0
    %v1512 = vadd.f32 0.0, %v1511
    %v1513 = vpop.f32.mrb[0].mxu0
    %v1514 = vadd.f32 0.0, %v1513
    %v1515 = vpop.f32.mrb[0].mxu0
    %v1516 = vadd.f32 0.0, %v1515
    %v1517 = vpop.f32.mrb[0].mxu0
    %v1518 = vadd.f32 0.0, %v1517
    %1519 = vmatprep.mubr.bf16.mxu0 0
    %1520 = vmatmul.mubr.bf16.gmra.mrb[0].mxu0 %v1021
    %v1521 = vpop.f32.mrb[0].mxu0
    %v1522 = vadd.f32 0.0, %v1521
    %v1523 = vpop.f32.mrb[0].mxu0
    %v1524 = vadd.f32 0.0, %v1523
    %v1525 = vpop.f32.mrb[0].mxu0
    %v1526 = vadd.f32 0.0, %v1525
    %v1527 = vpop.f32.mrb[0].mxu0
    %v1528 = vadd.f32 0.0, %v1527
    %1529 = vmatprep.mubr.bf16.mxu0 0
    %1530 = vmatmul.mubr.bf16.gmra.mrb[0].mxu0 %v1024
    %v1531 = vpop.f32.mrb[0].mxu0
    %v1532 = vadd.f32 0.0, %v1531
    %v1533 = vpop.f32.mrb[0].mxu0
    %v1534 = vadd.f32 0.0, %v1533
    %v1535 = vpop.f32.mrb[0].mxu0
    %v1536 = vadd.f32 0.0, %v1535
    %v1537 = vpop.f32.mrb[0].mxu0
    %v1538 = vadd.f32 0.0, %v1537
    %1539 = vmatprep.mubr.bf16.mxu0 0
    %1540 = vmatmul.mubr.bf16.gmra.mrb[0].mxu0 %v1027
    %v1541 = vpop.f32.mrb[0].mxu0
    %v1542 = vadd.f32 0.0, %v1541
    %v1543 = vpop.f32.mrb[0].mxu0
    %v1544 = vadd.f32 0.0, %v1543
    %v1545 = vpop.f32.mrb[0].mxu0
    %v1546 = vadd.f32 0.0, %v1545
    %v1547 = vpop.f32.mrb[0].mxu0
    %v1548 = vadd.f32 0.0, %v1547
    %1549 = vmatprep.mubr.bf16.mxu0 0
    %1550 = vmatmul.mubr.bf16.gmra.mrb[0].mxu0 %v1030
    %v1551 = vpop.f32.mrb[0].mxu0
    %v1552 = vadd.f32 0.0, %v1551
    %v1553 = vpop.f32.mrb[0].mxu0
    %v1554 = vadd.f32 0.0, %v1553
    %v1555 = vpop.f32.mrb[0].mxu0
    %v1556 = vadd.f32 0.0, %v1555
    %v1557 = vpop.f32.mrb[0].mxu0
    %v1558 = vadd.f32 0.0, %v1557
    %1559 = vmatprep.mubr.bf16.mxu0 0
    %1560 = vmatmul.mubr.bf16.gmra.mrb[0].mxu0 %v1033
    %v1561 = vpop.f32.mrb[0].mxu0
    %v1562 = vadd.f32 0.0, %v1561
    %v1563 = vpop.f32.mrb[0].mxu0
    %v1564 = vadd.f32 0.0, %v1563
    %v1565 = vpop.f32.mrb[0].mxu0
    %v1566 = vadd.f32 0.0, %v1565
    %v1567 = vpop.f32.mrb[0].mxu0
    %v1568 = vadd.f32 0.0, %v1567
    %1569 = vmatprep.mubr.bf16.mxu0 0
    %1570 = vmatmul.mubr.bf16.gmra.mrb[0].mxu0 %v1036
    %v1571 = vpop.f32.mrb[0].mxu0
    %v1572 = vadd.f32 0.0, %v1571
    %v1573 = vpop.f32.mrb[0].mxu0
    %v1574 = vadd.f32 0.0, %v1573
    %v1575 = vpop.f32.mrb[0].mxu0
    %v1576 = vadd.f32 0.0, %v1575
    %v1577 = vpop.f32.mrb[0].mxu0
    %v1578 = vadd.f32 0.0, %v1577
    %1579 = vmatprep.mubr.bf16.mxu0 0
    %1580 = vmatmul.mubr.bf16.gmra.mrb[0].mxu0 %v1039
    %v1581 = vpop.f32.mrb[0].mxu0
    %v1582 = vadd.f32 0.0, %v1581
    %v1583 = vpop.f32.mrb[0].mxu0
    %v1584 = vadd.f32 0.0, %v1583
    %v1585 = vpop.f32.mrb[0].mxu0
    %v1586 = vadd.f32 0.0, %v1585
    %v1587 = vpop.f32.mrb[0].mxu0
    %v1588 = vadd.f32 0.0, %v1587
    %1589 = vmatprep.mubr.bf16.mxu0 0
    %1590 = vmatmul.mubr.bf16.gmra.mrb[0].mxu0 %v1042
    %v1591 = vpop.f32.mrb[0].mxu0
    %v1592 = vadd.f32 0.0, %v1591
    %v1593 = vpop.f32.mrb[0].mxu0
    %v1594 = vadd.f32 0.0, %v1593
    %v1595 = vpop.f32.mrb[0].mxu0
    %v1596 = vadd.f32 0.0, %v1595
    %v1597 = vpop.f32.mrb[0].mxu0
    %v1598 = vadd.f32 0.0, %v1597
    %1599 = vmatprep.mubr.bf16.mxu0 0
    %1600 = vmatmul.mubr.bf16.gmra.mrb[0].mxu0 %v1045
    %v1601 = vpop.f32.mrb[0].mxu0
    %v1602 = vadd.f32 0.0, %v1601
    %v1603 = vpop.f32.mrb[0].mxu0
    %v1604 = vadd.f32 0.0, %v1603
    %v1605 = vpop.f32.mrb[0].mxu0
    %v1606 = vadd.f32 0.0, %v1605
    %v1607 = vpop.f32.mrb[0].mxu0
    %v1608 = vadd.f32 0.0, %v1607
    %1609 = vmatprep.mubr.bf16.mxu0 0
    %1610 = vmatmul.mubr.bf16.gmra.mrb[0].mxu0 %v1048
    %v1611 = vpop.f32.mrb[0].mxu0
    %v1612 = vadd.f32 0.0, %v1611
    %v1613 = vpop.f32.mrb[0].mxu0
    %v1614 = vadd.f32 0.0, %v1613
    %v1615 = vpop.f32.mrb[0].mxu0
    %v1616 = vadd.f32 0.0, %v1615
    %v1617 = vpop.f32.mrb[0].mxu0
    %v1618 = vadd.f32 0.0, %v1617
    %1619 = vmatprep.mubr.bf16.mxu0 0
    %1620 = vmatmul.mubr.bf16.gmra.mrb[0].mxu0 %v1051
    %v1621 = vpop.f32.mrb[0].mxu0
    %v1622 = vadd.f32 0.0, %v1621
    %v1623 = vpop.f32.mrb[0].mxu0
    %v1624 = vadd.f32 0.0, %v1623
    %v1625 = vpop.f32.mrb[0].mxu0
    %v1626 = vadd.f32 0.0, %v1625
    %v1627 = vpop.f32.mrb[0].mxu0
    %v1628 = vadd.f32 0.0, %v1627
    %1629 = vmatprep.mubr.bf16.mxu0 0
    %1630 = vmatmul.mubr.bf16.gmra.mrb[0].mxu0 %v1054
    %v1631 = vpop.f32.mrb[0].mxu0
    %v1632 = vadd.f32 0.0, %v1631
    %v1633 = vpop.f32.mrb[0].mxu0
    %v1634 = vadd.f32 0.0, %v1633
    %v1635 = vpop.f32.mrb[0].mxu0
    %v1636 = vadd.f32 0.0, %v1635
    %v1637 = vpop.f32.mrb[0].mxu0
    %v1638 = vadd.f32 0.0, %v1637
    %1639 = vmatprep.mubr.bf16.mxu0 0
    %1640 = vmatmul.mubr.bf16.gmra.mrb[0].mxu0 %v1057
    %v1641 = vpop.f32.mrb[0].mxu0
    %v1642 = vadd.f32 0.0, %v1641
    %v1643 = vpop.f32.mrb[0].mxu0
    %v1644 = vadd.f32 0.0, %v1643
    %v1645 = vpop.f32.mrb[0].mxu0
    %v1646 = vadd.f32 0.0, %v1645
    %v1647 = vpop.f32.mrb[0].mxu0
    %v1648 = vadd.f32 0.0, %v1647
    %1649 = vmatprep.mubr.bf16.mxu0 0
    %1650 = vmatmul.mubr.bf16.gmra.mrb[0].mxu0 %v1060
    %v1651 = vpop.f32.mrb[0].mxu0
    %v1652 = vadd.f32 0.0, %v1651
    %v1653 = vpop.f32.mrb[0].mxu0
    %v1654 = vadd.f32 0.0, %v1653
    %v1655 = vpop.f32.mrb[0].mxu0
    %v1656 = vadd.f32 0.0, %v1655
    %v1657 = vpop.f32.mrb[0].mxu0
    %v1658 = vadd.f32 0.0, %v1657
    %1659 = vmatprep.mubr.bf16.mxu0 0
    %1660 = vmatmul.mubr.bf16.gmra.mrb[0].mxu0 %v1063
    %v1661 = vpop.f32.mrb[0].mxu0
    %v1662 = vadd.f32 0.0, %v1661
    %v1663 = vpop.f32.mrb[0].mxu0
    %v1664 = vadd.f32 0.0, %v1663
    %v1665 = vpop.f32.mrb[0].mxu0
    %v1666 = vadd.f32 0.0, %v1665
    %v1667 = vpop.f32.mrb[0].mxu0
    %v1668 = vadd.f32 0.0, %v1667
    %1669 = vmatprep.mubr.bf16.mxu0 0
    %1670 = vmatmul.mubr.bf16.gmra.mrb[0].mxu0 %v1066
    %v1671 = vpop.f32.mrb[0].mxu0
    %v1672 = vadd.f32 0.0, %v1671
    %v1673 = vpop.f32.mrb[0].mxu0
    %v1674 = vadd.f32 0.0, %v1673
    %v1675 = vpop.f32.mrb[0].mxu0
    %v1676 = vadd.f32 0.0, %v1675
    %v1677 = vpop.f32.mrb[0].mxu0
    %v1678 = vadd.f32 0.0, %v1677
    %1679 = vmatprep.mubr.bf16.mxu0 0
    %1680 = vmatmul.mubr.bf16.gmra.mrb[0].mxu0 %v1069
    %v1681 = vpop.f32.mrb[0].mxu0
    %v1682 = vadd.f32 0.0, %v1681
    %v1683 = vpop.f32.mrb[0].mxu0
    %v1684 = vadd.f32 0.0, %v1683
    %v1685 = vpop.f32.mrb[0].mxu0
    %v1686 = vadd.f32 0.0, %v1685
    %v1687 = vpop.f32.mrb[0].mxu0
    %v1688 = vadd.f32 0.0, %v1687
    %1689 = vmatprep.mubr.bf16.mxu0 0
    %1690 = vmatmul.mubr.bf16.gmra.mrb[0].mxu0 %v1072
    %v1691 = vpop.f32.mrb[0].mxu0
    %v1692 = vadd.f32 0.0, %v1691
    %v1693 = vpop.f32.mrb[0].mxu0
    %v1694 = vadd.f32 0.0, %v1693
    %v1695 = vpop.f32.mrb[0].mxu0
    %v1696 = vadd.f32 0.0, %v1695
    %v1697 = vpop.f32.mrb[0].mxu0
    %v1698 = vadd.f32 0.0, %v1697
    %1699 = vdwg.mxu0
    %1700 = vmatprep.subr.bf16.mxu0 %v1448
    %1701 = vmatpush1.bf16.msra.mxu0 %v1447
    %1702 = vmatprep.subr.bf16.mxu0 %v1452
    %1703 = vmatpush1.bf16.msra.mxu0 %v1451
    %1704 = vmatprep.subr.bf16.mxu0 %v1456
    %1705 = vmatpush1.bf16.msra.mxu0 %v1455
    %1706 = vmatprep.subr.bf16.mxu0 %v1460
    %1707 = vmatpush1.bf16.msra.mxu0 %v1459
    %1708 = vmatprep.subr.bf16.mxu0 0
    %1709 = vmatpush1.bf16.msra.mxu0 0
    %1710 = vmatprep.subr.bf16.mxu0 0
    %1711 = vmatpush1.bf16.msra.mxu0 0
    %1712 = vmatprep.subr.bf16.mxu0 0
    %1713 = vmatpush1.bf16.msra.mxu0 0
    %1714 = vmatprep.subr.bf16.mxu0 0
    %1715 = vmatpush1.bf16.msra.mxu0 0
    %1716 = vmatprep.subr.bf16.mxu0 0
    %1717 = vmatpush1.bf16.msra.mxu0 0
    %1718 = vmatprep.subr.bf16.mxu0 0
    %1719 = vmatpush1.bf16.msra.mxu0 0
    %1720 = vmatprep.subr.bf16.mxu0 0
    %1721 = vmatpush1.bf16.msra.mxu0 0
    %1722 = vmatprep.subr.bf16.mxu0 0
    %1723 = vmatpush1.bf16.msra.mxu0 0
    %1724 = vmatprep.subr.bf16.mxu0 0
    %1725 = vmatpush1.bf16.msra.mxu0 0
    %1726 = vmatprep.subr.bf16.mxu0 0
    %1727 = vmatpush1.bf16.msra.mxu0 0
    %1728 = vmatprep.subr.bf16.mxu0 0
    %1729 = vmatpush1.bf16.msra.mxu0 0
    %1730 = vmatprep.subr.bf16.mxu0 0
    %1731 = vmatpush1.bf16.msra.mxu0 0
    %1732 = vmatprep.mubr.bf16.mxu0 0
    %1733 = vmatmul.mubr.bf16.gmra.mrb[0].mxu0 %v1018
    %v1734 = vpop.f32.mrb[0].mxu0
    %v1735 = vadd.f32 0.0, %v1734
    %v1736 = vpop.f32.mrb[0].mxu0
    %v1737 = vadd.f32 0.0, %v1736
    %v1738 = vpop.f32.mrb[0].mxu0
    %v1739 = vadd.f32 0.0, %v1738
    %v1740 = vpop.f32.mrb[0].mxu0
    %v1741 = vadd.f32 0.0, %v1740
    %1742 = vmatprep.mubr.bf16.mxu0 0
    %1743 = vmatmul.mubr.bf16.gmra.mrb[0].mxu0 %v1021
    %v1744 = vpop.f32.mrb[0].mxu0
    %v1745 = vadd.f32 0.0, %v1744
    %v1746 = vpop.f32.mrb[0].mxu0
    %v1747 = vadd.f32 0.0, %v1746
    %v1748 = vpop.f32.mrb[0].mxu0
    %v1749 = vadd.f32 0.0, %v1748
    %v1750 = vpop.f32.mrb[0].mxu0
    %v1751 = vadd.f32 0.0, %v1750
    %1752 = vmatprep.mubr.bf16.mxu0 0
    %1753 = vmatmul.mubr.bf16.gmra.mrb[0].mxu0 %v1024
    %v1754 = vpop.f32.mrb[0].mxu0
    %v1755 = vadd.f32 0.0, %v1754
    %v1756 = vpop.f32.mrb[0].mxu0
    %v1757 = vadd.f32 0.0, %v1756
    %v1758 = vpop.f32.mrb[0].mxu0
    %v1759 = vadd.f32 0.0, %v1758
    %v1760 = vpop.f32.mrb[0].mxu0
    %v1761 = vadd.f32 0.0, %v1760
    %1762 = vmatprep.mubr.bf16.mxu0 0
    %1763 = vmatmul.mubr.bf16.gmra.mrb[0].mxu0 %v1027
    %v1764 = vpop.f32.mrb[0].mxu0
    %v1765 = vadd.f32 0.0, %v1764
    %v1766 = vpop.f32.mrb[0].mxu0
    %v1767 = vadd.f32 0.0, %v1766
    %v1768 = vpop.f32.mrb[0].mxu0
    %v1769 = vadd.f32 0.0, %v1768
    %v1770 = vpop.f32.mrb[0].mxu0
    %v1771 = vadd.f32 0.0, %v1770
    %1772 = vmatprep.mubr.bf16.mxu0 0
    %1773 = vmatmul.mubr.bf16.gmra.mrb[0].mxu0 %v1030
    %v1774 = vpop.f32.mrb[0].mxu0
    %v1775 = vadd.f32 0.0, %v1774
    %v1776 = vpop.f32.mrb[0].mxu0
    %v1777 = vadd.f32 0.0, %v1776
    %v1778 = vpop.f32.mrb[0].mxu0
    %v1779 = vadd.f32 0.0, %v1778
    %v1780 = vpop.f32.mrb[0].mxu0
    %v1781 = vadd.f32 0.0, %v1780
    %1782 = vmatprep.mubr.bf16.mxu0 0
    %1783 = vmatmul.mubr.bf16.gmra.mrb[0].mxu0 %v1033
    %v1784 = vpop.f32.mrb[0].mxu0
    %v1785 = vadd.f32 0.0, %v1784
    %v1786 = vpop.f32.mrb[0].mxu0
    %v1787 = vadd.f32 0.0, %v1786
    %v1788 = vpop.f32.mrb[0].mxu0
    %v1789 = vadd.f32 0.0, %v1788
    %v1790 = vpop.f32.mrb[0].mxu0
    %v1791 = vadd.f32 0.0, %v1790
    %1792 = vmatprep.mubr.bf16.mxu0 0
    %1793 = vmatmul.mubr.bf16.gmra.mrb[0].mxu0 %v1036
    %v1794 = vpop.f32.mrb[0].mxu0
    %v1795 = vadd.f32 0.0, %v1794
    %v1796 = vpop.f32.mrb[0].mxu0
    %v1797 = vadd.f32 0.0, %v1796
    %v1798 = vpop.f32.mrb[0].mxu0
    %v1799 = vadd.f32 0.0, %v1798
    %v1800 = vpop.f32.mrb[0].mxu0
    %v1801 = vadd.f32 0.0, %v1800
    %1802 = vmatprep.mubr.bf16.mxu0 0
    %1803 = vmatmul.mubr.bf16.gmra.mrb[0].mxu0 %v1039
    %v1804 = vpop.f32.mrb[0].mxu0
    %v1805 = vadd.f32 0.0, %v1804
    %v1806 = vpop.f32.mrb[0].mxu0
    %v1807 = vadd.f32 0.0, %v1806
    %v1808 = vpop.f32.mrb[0].mxu0
    %v1809 = vadd.f32 0.0, %v1808
    %v1810 = vpop.f32.mrb[0].mxu0
    %v1811 = vadd.f32 0.0, %v1810
    %1812 = vmatprep.mubr.bf16.mxu0 0
    %1813 = vmatmul.mubr.bf16.gmra.mrb[0].mxu0 %v1042
    %v1814 = vpop.f32.mrb[0].mxu0
    %v1815 = vadd.f32 0.0, %v1814
    %v1816 = vpop.f32.mrb[0].mxu0
    %v1817 = vadd.f32 0.0, %v1816
    %v1818 = vpop.f32.mrb[0].mxu0
    %v1819 = vadd.f32 0.0, %v1818
    %v1820 = vpop.f32.mrb[0].mxu0
    %v1821 = vadd.f32 0.0, %v1820
    %1822 = vmatprep.mubr.bf16.mxu0 0
    %1823 = vmatmul.mubr.bf16.gmra.mrb[0].mxu0 %v1045
    %v1824 = vpop.f32.mrb[0].mxu0
    %v1825 = vadd.f32 0.0, %v1824
    %v1826 = vpop.f32.mrb[0].mxu0
    %v1827 = vadd.f32 0.0, %v1826
    %v1828 = vpop.f32.mrb[0].mxu0
    %v1829 = vadd.f32 0.0, %v1828
    %v1830 = vpop.f32.mrb[0].mxu0
    %v1831 = vadd.f32 0.0, %v1830
    %1832 = vmatprep.mubr.bf16.mxu0 0
    %1833 = vmatmul.mubr.bf16.gmra.mrb[0].mxu0 %v1048
    %v1834 = vpop.f32.mrb[0].mxu0
    %v1835 = vadd.f32 0.0, %v1834
    %v1836 = vpop.f32.mrb[0].mxu0
    %v1837 = vadd.f32 0.0, %v1836
    %v1838 = vpop.f32.mrb[0].mxu0
    %v1839 = vadd.f32 0.0, %v1838
    %v1840 = vpop.f32.mrb[0].mxu0
    %v1841 = vadd.f32 0.0, %v1840
    %1842 = vmatprep.mubr.bf16.mxu0 0
    %1843 = vmatmul.mubr.bf16.gmra.mrb[0].mxu0 %v1051
    %v1844 = vpop.f32.mrb[0].mxu0
    %v1845 = vadd.f32 0.0, %v1844
    %v1846 = vpop.f32.mrb[0].mxu0
    %v1847 = vadd.f32 0.0, %v1846
    %v1848 = vpop.f32.mrb[0].mxu0
    %v1849 = vadd.f32 0.0, %v1848
    %v1850 = vpop.f32.mrb[0].mxu0
    %v1851 = vadd.f32 0.0, %v1850
    %1852 = vmatprep.mubr.bf16.mxu0 0
    %1853 = vmatmul.mubr.bf16.gmra.mrb[0].mxu0 %v1054
    %v1854 = vpop.f32.mrb[0].mxu0
    %v1855 = vadd.f32 0.0, %v1854
    %v1856 = vpop.f32.mrb[0].mxu0
    %v1857 = vadd.f32 0.0, %v1856
    %v1858 = vpop.f32.mrb[0].mxu0
    %v1859 = vadd.f32 0.0, %v1858
    %v1860 = vpop.f32.mrb[0].mxu0
    %v1861 = vadd.f32 0.0, %v1860
    %1862 = vmatprep.mubr.bf16.mxu0 0
    %1863 = vmatmul.mubr.bf16.gmra.mrb[0].mxu0 %v1057
    %v1864 = vpop.f32.mrb[0].mxu0
    %v1865 = vadd.f32 0.0, %v1864
    %v1866 = vpop.f32.mrb[0].mxu0
    %v1867 = vadd.f32 0.0, %v1866
    %v1868 = vpop.f32.mrb[0].mxu0
    %v1869 = vadd.f32 0.0, %v1868
    %v1870 = vpop.f32.mrb[0].mxu0
    %v1871 = vadd.f32 0.0, %v1870
    %1872 = vmatprep.mubr.bf16.mxu0 0
    %1873 = vmatmul.mubr.bf16.gmra.mrb[0].mxu0 %v1060
    %v1874 = vpop.f32.mrb[0].mxu0
    %v1875 = vadd.f32 0.0, %v1874
    %v1876 = vpop.f32.mrb[0].mxu0
    %v1877 = vadd.f32 0.0, %v1876
    %v1878 = vpop.f32.mrb[0].mxu0
    %v1879 = vadd.f32 0.0, %v1878
    %v1880 = vpop.f32.mrb[0].mxu0
    %v1881 = vadd.f32 0.0, %v1880
    %1882 = vmatprep.mubr.bf16.mxu0 0
    %1883 = vmatmul.mubr.bf16.gmra.mrb[0].mxu0 %v1063
    %v1884 = vpop.f32.mrb[0].mxu0
    %v1885 = vadd.f32 0.0, %v1884
    %v1886 = vpop.f32.mrb[0].mxu0
    %v1887 = vadd.f32 0.0, %v1886
    %v1888 = vpop.f32.mrb[0].mxu0
    %v1889 = vadd.f32 0.0, %v1888
    %v1890 = vpop.f32.mrb[0].mxu0
    %v1891 = vadd.f32 0.0, %v1890
    %1892 = vmatprep.mubr.bf16.mxu0 0
    %1893 = vmatmul.mubr.bf16.gmra.mrb[0].mxu0 %v1066
    %v1894 = vpop.f32.mrb[0].mxu0
    %v1895 = vadd.f32 0.0, %v1894
    %v1896 = vpop.f32.mrb[0].mxu0
    %v1897 = vadd.f32 0.0, %v1896
    %v1898 = vpop.f32.mrb[0].mxu0
    %v1899 = vadd.f32 0.0, %v1898
    %v1900 = vpop.f32.mrb[0].mxu0
    %v1901 = vadd.f32 0.0, %v1900
    %1902 = vmatprep.mubr.bf16.mxu0 0
    %1903 = vmatmul.mubr.bf16.gmra.mrb[0].mxu0 %v1069
    %v1904 = vpop.f32.mrb[0].mxu0
    %v1905 = vadd.f32 0.0, %v1904
    %v1906 = vpop.f32.mrb[0].mxu0
    %v1907 = vadd.f32 0.0, %v1906
    %v1908 = vpop.f32.mrb[0].mxu0
    %v1909 = vadd.f32 0.0, %v1908
    %v1910 = vpop.f32.mrb[0].mxu0
    %v1911 = vadd.f32 0.0, %v1910
    %1912 = vmatprep.mubr.bf16.mxu0 0
    %1913 = vmatmul.mubr.bf16.gmra.mrb[0].mxu0 %v1072
    %v1914 = vpop.f32.mrb[0].mxu0
    %v1915 = vadd.f32 0.0, %v1914
    %v1916 = vpop.f32.mrb[0].mxu0
    %v1917 = vadd.f32 0.0, %v1916
    %v1918 = vpop.f32.mrb[0].mxu0
    %v1919 = vadd.f32 0.0, %v1918
    %v1920 = vpop.f32.mrb[0].mxu0
    %v1921 = vadd.f32 0.0, %v1920
    %1922 = vdwg.mxu0
    %v1931 = vunpack.c.l.b16 %v1373
    %v1932 = vunpack.c.h.b16 %v1373
    %v1933 = vunpack.c.l.b16 %v1374
    %v1934 = vunpack.c.h.b16 %v1374
    %v1935 = vunpack.c.l.b16 %v1375
    %v1936 = vunpack.c.h.b16 %v1375
    %v1937 = vunpack.c.l.b16 %v1376
    %v1938 = vunpack.c.h.b16 %v1376
    %v1939 = vunpack.c.l.b16 %v1377
    %v1940 = vunpack.c.h.b16 %v1377
    %v1941 = vunpack.c.l.b16 %v1378
    %v1942 = vunpack.c.h.b16 %v1378
    %v1943 = vunpack.c.l.b16 %v1379
    %v1944 = vunpack.c.h.b16 %v1379
    %v1945 = vunpack.c.l.b16 %v1380
    %v1946 = vunpack.c.h.b16 %v1380
    %v1947 = vpack.c.b16 %v1935, %v1931
    %v1948 = vpack.c.b16 %v1936, %v1932
    %v1949 = vpack.c.b16 %v1937, %v1933
    %v1950 = vpack.c.b16 %v1938, %v1934
    %v1951 = vpack.c.b16 %v1943, %v1939
    %v1952 = vpack.c.b16 %v1944, %v1940
    %v1953 = vpack.c.b16 %v1945, %v1941
    %v1954 = vpack.c.b16 %v1946, %v1942
    %1963 = vmatprep.subr.bf16.mxu0 %v1948
    %1964 = vmatpush1.bf16.msra.mxu0 %v1947
    %1965 = vmatprep.subr.bf16.mxu0 %v1952
    %1966 = vmatpush1.bf16.msra.mxu0 %v1951
    %1967 = vmatprep.subr.bf16.mxu0 0
    %1968 = vmatpush1.bf16.msra.mxu0 0
    %1969 = vmatprep.subr.bf16.mxu0 0
    %1970 = vmatpush1.bf16.msra.mxu0 0
    %1971 = vmatprep.subr.bf16.mxu0 0
    %1972 = vmatpush1.bf16.msra.mxu0 0
    %1973 = vmatprep.subr.bf16.mxu0 0
    %1974 = vmatpush1.bf16.msra.mxu0 0
    %1975 = vmatprep.subr.bf16.mxu0 0
    %1976 = vmatpush1.bf16.msra.mxu0 0
    %1977 = vmatprep.subr.bf16.mxu0 0
    %1978 = vmatpush1.bf16.msra.mxu0 0
    %1979 = vmatprep.subr.bf16.mxu0 0
    %1980 = vmatpush1.bf16.msra.mxu0 0
    %1981 = vmatprep.subr.bf16.mxu0 0
    %1982 = vmatpush1.bf16.msra.mxu0 0
    %1983 = vmatprep.subr.bf16.mxu0 0
    %1984 = vmatpush1.bf16.msra.mxu0 0
    %1985 = vmatprep.subr.bf16.mxu0 0
    %1986 = vmatpush1.bf16.msra.mxu0 0
    %1987 = vmatprep.subr.bf16.mxu0 0
    %1988 = vmatpush1.bf16.msra.mxu0 0
    %1989 = vmatprep.subr.bf16.mxu0 0
    %1990 = vmatpush1.bf16.msra.mxu0 0
    %1991 = vmatprep.subr.bf16.mxu0 0
    %1992 = vmatpush1.bf16.msra.mxu0 0
    %1993 = vmatprep.subr.bf16.mxu0 0
    %1994 = vmatpush1.bf16.msra.mxu0 0
    %1995 = vmatprep.mubr.bf16.mxu0 0
    %1996 = vmatmul.mubr.bf16.gmra.mrb[0].mxu0 %v603
    %v1997 = vpop.f32.mrb[0].mxu0
    %v1998 = vadd.f32 %v1512, %v1997
    %v1999 = vpop.f32.mrb[0].mxu0
    %v2000 = vadd.f32 %v1514, %v1999
    %v2001 = vpop.f32.mrb[0].mxu0
    %v2002 = vadd.f32 %v1516, %v2001
    %v2003 = vpop.f32.mrb[0].mxu0
    %v2004 = vadd.f32 %v1518, %v2003
    %2005 = vmatprep.mubr.bf16.mxu0 0
    %2006 = vmatmul.mubr.bf16.gmra.mrb[0].mxu0 %v606
    %v2007 = vpop.f32.mrb[0].mxu0
    %v2008 = vadd.f32 %v1522, %v2007
    %v2009 = vpop.f32.mrb[0].mxu0
    %v2010 = vadd.f32 %v1524, %v2009
    %v2011 = vpop.f32.mrb[0].mxu0
    %v2012 = vadd.f32 %v1526, %v2011
    %v2013 = vpop.f32.mrb[0].mxu0
    %v2014 = vadd.f32 %v1528, %v2013
    %2015 = vmatprep.mubr.bf16.mxu0 0
    %2016 = vmatmul.mubr.bf16.gmra.mrb[0].mxu0 %v609
    %v2017 = vpop.f32.mrb[0].mxu0
    %v2018 = vadd.f32 %v1532, %v2017
    %v2019 = vpop.f32.mrb[0].mxu0
    %v2020 = vadd.f32 %v1534, %v2019
    %v2021 = vpop.f32.mrb[0].mxu0
    %v2022 = vadd.f32 %v1536, %v2021
    %v2023 = vpop.f32.mrb[0].mxu0
    %v2024 = vadd.f32 %v1538, %v2023
    %2025 = vmatprep.mubr.bf16.mxu0 0
    %2026 = vmatmul.mubr.bf16.gmra.mrb[0].mxu0 %v612
    %v2027 = vpop.f32.mrb[0].mxu0
    %v2028 = vadd.f32 %v1542, %v2027
    %v2029 = vpop.f32.mrb[0].mxu0
    %v2030 = vadd.f32 %v1544, %v2029
    %v2031 = vpop.f32.mrb[0].mxu0
    %v2032 = vadd.f32 %v1546, %v2031
    %v2033 = vpop.f32.mrb[0].mxu0
    %v2034 = vadd.f32 %v1548, %v2033
    %2035 = vmatprep.mubr.bf16.mxu0 0
    %2036 = vmatmul.mubr.bf16.gmra.mrb[0].mxu0 %v615
    %v2037 = vpop.f32.mrb[0].mxu0
    %v2038 = vadd.f32 %v1552, %v2037
    %v2039 = vpop.f32.mrb[0].mxu0
    %v2040 = vadd.f32 %v1554, %v2039
    %v2041 = vpop.f32.mrb[0].mxu0
    %v2042 = vadd.f32 %v1556, %v2041
    %v2043 = vpop.f32.mrb[0].mxu0
    %v2044 = vadd.f32 %v1558, %v2043
    %2045 = vmatprep.mubr.bf16.mxu0 0
    %2046 = vmatmul.mubr.bf16.gmra.mrb[0].mxu0 %v618
    %v2047 = vpop.f32.mrb[0].mxu0
    %v2048 = vadd.f32 %v1562, %v2047
    %v2049 = vpop.f32.mrb[0].mxu0
    %v2050 = vadd.f32 %v1564, %v2049
    %v2051 = vpop.f32.mrb[0].mxu0
    %v2052 = vadd.f32 %v1566, %v2051
    %v2053 = vpop.f32.mrb[0].mxu0
    %v2054 = vadd.f32 %v1568, %v2053
    %2055 = vmatprep.mubr.bf16.mxu0 0
    %2056 = vmatmul.mubr.bf16.gmra.mrb[0].mxu0 %v621
    %v2057 = vpop.f32.mrb[0].mxu0
    %v2058 = vadd.f32 %v1572, %v2057
    %v2059 = vpop.f32.mrb[0].mxu0
    %v2060 = vadd.f32 %v1574, %v2059
    %v2061 = vpop.f32.mrb[0].mxu0
    %v2062 = vadd.f32 %v1576, %v2061
    %v2063 = vpop.f32.mrb[0].mxu0
    %v2064 = vadd.f32 %v1578, %v2063
    %2065 = vmatprep.mubr.bf16.mxu0 0
    %2066 = vmatmul.mubr.bf16.gmra.mrb[0].mxu0 %v624
    %v2067 = vpop.f32.mrb[0].mxu0
    %v2068 = vadd.f32 %v1582, %v2067
    %v2069 = vpop.f32.mrb[0].mxu0
    %v2070 = vadd.f32 %v1584, %v2069
    %v2071 = vpop.f32.mrb[0].mxu0
    %v2072 = vadd.f32 %v1586, %v2071
    %v2073 = vpop.f32.mrb[0].mxu0
    %v2074 = vadd.f32 %v1588, %v2073
    %2075 = vmatprep.mubr.bf16.mxu0 0
    %2076 = vmatmul.mubr.bf16.gmra.mrb[0].mxu0 %v627
    %v2077 = vpop.f32.mrb[0].mxu0
    %v2078 = vadd.f32 %v1592, %v2077
    %v2079 = vpop.f32.mrb[0].mxu0
    %v2080 = vadd.f32 %v1594, %v2079
    %v2081 = vpop.f32.mrb[0].mxu0
    %v2082 = vadd.f32 %v1596, %v2081
    %v2083 = vpop.f32.mrb[0].mxu0
    %v2084 = vadd.f32 %v1598, %v2083
    %2085 = vmatprep.mubr.bf16.mxu0 0
    %2086 = vmatmul.mubr.bf16.gmra.mrb[0].mxu0 %v630
    %v2087 = vpop.f32.mrb[0].mxu0
    %v2088 = vadd.f32 %v1602, %v2087
    %v2089 = vpop.f32.mrb[0].mxu0
    %v2090 = vadd.f32 %v1604, %v2089
    %v2091 = vpop.f32.mrb[0].mxu0
    %v2092 = vadd.f32 %v1606, %v2091
    %v2093 = vpop.f32.mrb[0].mxu0
    %v2094 = vadd.f32 %v1608, %v2093
    %2095 = vmatprep.mubr.bf16.mxu0 0
    %2096 = vmatmul.mubr.bf16.gmra.mrb[0].mxu0 %v633
    %v2097 = vpop.f32.mrb[0].mxu0
    %v2098 = vadd.f32 %v1612, %v2097
    %v2099 = vpop.f32.mrb[0].mxu0
    %v2100 = vadd.f32 %v1614, %v2099
    %v2101 = vpop.f32.mrb[0].mxu0
    %v2102 = vadd.f32 %v1616, %v2101
    %v2103 = vpop.f32.mrb[0].mxu0
    %v2104 = vadd.f32 %v1618, %v2103
    %2105 = vmatprep.mubr.bf16.mxu0 0
    %2106 = vmatmul.mubr.bf16.gmra.mrb[0].mxu0 %v636
    %v2107 = vpop.f32.mrb[0].mxu0
    %v2108 = vadd.f32 %v1622, %v2107
    %v2109 = vpop.f32.mrb[0].mxu0
    %v2110 = vadd.f32 %v1624, %v2109
    %v2111 = vpop.f32.mrb[0].mxu0
    %v2112 = vadd.f32 %v1626, %v2111
    %v2113 = vpop.f32.mrb[0].mxu0
    %v2114 = vadd.f32 %v1628, %v2113
    %2115 = vmatprep.mubr.bf16.mxu0 0
    %2116 = vmatmul.mubr.bf16.gmra.mrb[0].mxu0 %v639
    %v2117 = vpop.f32.mrb[0].mxu0
    %v2118 = vadd.f32 %v1632, %v2117
    %v2119 = vpop.f32.mrb[0].mxu0
    %v2120 = vadd.f32 %v1634, %v2119
    %v2121 = vpop.f32.mrb[0].mxu0
    %v2122 = vadd.f32 %v1636, %v2121
    %v2123 = vpop.f32.mrb[0].mxu0
    %v2124 = vadd.f32 %v1638, %v2123
    %2125 = vmatprep.mubr.bf16.mxu0 0
    %2126 = vmatmul.mubr.bf16.gmra.mrb[0].mxu0 %v642
    %v2127 = vpop.f32.mrb[0].mxu0
    %v2128 = vadd.f32 %v1642, %v2127
    %v2129 = vpop.f32.mrb[0].mxu0
    %v2130 = vadd.f32 %v1644, %v2129
    %v2131 = vpop.f32.mrb[0].mxu0
    %v2132 = vadd.f32 %v1646, %v2131
    %v2133 = vpop.f32.mrb[0].mxu0
    %v2134 = vadd.f32 %v1648, %v2133
    %2135 = vmatprep.mubr.bf16.mxu0 0
    %2136 = vmatmul.mubr.bf16.gmra.mrb[0].mxu0 %v645
    %v2137 = vpop.f32.mrb[0].mxu0
    %v2138 = vadd.f32 %v1652, %v2137
    %v2139 = vpop.f32.mrb[0].mxu0
    %v2140 = vadd.f32 %v1654, %v2139
    %v2141 = vpop.f32.mrb[0].mxu0
    %v2142 = vadd.f32 %v1656, %v2141
    %v2143 = vpop.f32.mrb[0].mxu0
    %v2144 = vadd.f32 %v1658, %v2143
    %2145 = vmatprep.mubr.bf16.mxu0 0
    %2146 = vmatmul.mubr.bf16.gmra.mrb[0].mxu0 %v648
    %v2147 = vpop.f32.mrb[0].mxu0
    %v2148 = vadd.f32 %v1662, %v2147
    %v2149 = vpop.f32.mrb[0].mxu0
    %v2150 = vadd.f32 %v1664, %v2149
    %v2151 = vpop.f32.mrb[0].mxu0
    %v2152 = vadd.f32 %v1666, %v2151
    %v2153 = vpop.f32.mrb[0].mxu0
    %v2154 = vadd.f32 %v1668, %v2153
    %2155 = vmatprep.mubr.bf16.mxu0 0
    %2156 = vmatmul.mubr.bf16.gmra.mrb[0].mxu0 %v651
    %v2157 = vpop.f32.mrb[0].mxu0
    %v2158 = vadd.f32 %v1672, %v2157
    %v2159 = vpop.f32.mrb[0].mxu0
    %v2160 = vadd.f32 %v1674, %v2159
    %v2161 = vpop.f32.mrb[0].mxu0
    %v2162 = vadd.f32 %v1676, %v2161
    %v2163 = vpop.f32.mrb[0].mxu0
    %v2164 = vadd.f32 %v1678, %v2163
    %2165 = vmatprep.mubr.bf16.mxu0 0
    %2166 = vmatmul.mubr.bf16.gmra.mrb[0].mxu0 %v654
    %v2167 = vpop.f32.mrb[0].mxu0
    %v2168 = vadd.f32 %v1682, %v2167
    %v2169 = vpop.f32.mrb[0].mxu0
    %v2170 = vadd.f32 %v1684, %v2169
    %v2171 = vpop.f32.mrb[0].mxu0
    %v2172 = vadd.f32 %v1686, %v2171
    %v2173 = vpop.f32.mrb[0].mxu0
    %v2174 = vadd.f32 %v1688, %v2173
    %2175 = vmatprep.mubr.bf16.mxu0 0
    %2176 = vmatmul.mubr.bf16.gmra.mrb[0].mxu0 %v657
    %v2177 = vpop.f32.mrb[0].mxu0
    %v2178 = vadd.f32 %v1692, %v2177
    %v2179 = vpop.f32.mrb[0].mxu0
    %v2180 = vadd.f32 %v1694, %v2179
    %v2181 = vpop.f32.mrb[0].mxu0
    %v2182 = vadd.f32 %v1696, %v2181
    %v2183 = vpop.f32.mrb[0].mxu0
    %v2184 = vadd.f32 %v1698, %v2183
    %2185 = vdwg.mxu0
    %2186 = vmatprep.subr.bf16.mxu0 %v1950
    %2187 = vmatpush1.bf16.msra.mxu0 %v1949
    %2188 = vmatprep.subr.bf16.mxu0 %v1954
    %2189 = vmatpush1.bf16.msra.mxu0 %v1953
    %2190 = vmatprep.subr.bf16.mxu0 0
    %2191 = vmatpush1.bf16.msra.mxu0 0
    %2192 = vmatprep.subr.bf16.mxu0 0
    %2193 = vmatpush1.bf16.msra.mxu0 0
    %2194 = vmatprep.subr.bf16.mxu0 0
    %2195 = vmatpush1.bf16.msra.mxu0 0
    %2196 = vmatprep.subr.bf16.mxu0 0
    %2197 = vmatpush1.bf16.msra.mxu0 0
    %2198 = vmatprep.subr.bf16.mxu0 0
    %2199 = vmatpush1.bf16.msra.mxu0 0
    %2200 = vmatprep.subr.bf16.mxu0 0
    %2201 = vmatpush1.bf16.msra.mxu0 0
    %2202 = vmatprep.subr.bf16.mxu0 0
    %2203 = vmatpush1.bf16.msra.mxu0 0
    %2204 = vmatprep.subr.bf16.mxu0 0
    %2205 = vmatpush1.bf16.msra.mxu0 0
    %2206 = vmatprep.subr.bf16.mxu0 0
    %2207 = vmatpush1.bf16.msra.mxu0 0
    %2208 = vmatprep.subr.bf16.mxu0 0
    %2209 = vmatpush1.bf16.msra.mxu0 0
    %2210 = vmatprep.subr.bf16.mxu0 0
    %2211 = vmatpush1.bf16.msra.mxu0 0
    %2212 = vmatprep.subr.bf16.mxu0 0
    %2213 = vmatpush1.bf16.msra.mxu0 0
    %2214 = vmatprep.subr.bf16.mxu0 0
    %2215 = vmatpush1.bf16.msra.mxu0 0
    %2216 = vmatprep.subr.bf16.mxu0 0
    %2217 = vmatpush1.bf16.msra.mxu0 0
    %2218 = vmatprep.mubr.bf16.mxu0 0
    %2219 = vmatmul.mubr.bf16.gmra.mrb[0].mxu0 %v603
    %v2220 = vpop.f32.mrb[0].mxu0
    %v2221 = vadd.f32 %v1735, %v2220
    %v2222 = vpop.f32.mrb[0].mxu0
    %v2223 = vadd.f32 %v1737, %v2222
    %v2224 = vpop.f32.mrb[0].mxu0
    %v2225 = vadd.f32 %v1739, %v2224
    %v2226 = vpop.f32.mrb[0].mxu0
    %v2227 = vadd.f32 %v1741, %v2226
    %2228 = vmatprep.mubr.bf16.mxu0 0
    %2229 = vmatmul.mubr.bf16.gmra.mrb[0].mxu0 %v606
    %v2230 = vpop.f32.mrb[0].mxu0
    %v2231 = vadd.f32 %v1745, %v2230
    %v2232 = vpop.f32.mrb[0].mxu0
    %v2233 = vadd.f32 %v1747, %v2232
    %v2234 = vpop.f32.mrb[0].mxu0
    %v2235 = vadd.f32 %v1749, %v2234
    %v2236 = vpop.f32.mrb[0].mxu0
    %v2237 = vadd.f32 %v1751, %v2236
    %2238 = vmatprep.mubr.bf16.mxu0 0
    %2239 = vmatmul.mubr.bf16.gmra.mrb[0].mxu0 %v609
    %v2240 = vpop.f32.mrb[0].mxu0
    %v2241 = vadd.f32 %v1755, %v2240
    %v2242 = vpop.f32.mrb[0].mxu0
    %v2243 = vadd.f32 %v1757, %v2242
    %v2244 = vpop.f32.mrb[0].mxu0
    %v2245 = vadd.f32 %v1759, %v2244
    %v2246 = vpop.f32.mrb[0].mxu0
    %v2247 = vadd.f32 %v1761, %v2246
    %2248 = vmatprep.mubr.bf16.mxu0 0
    %2249 = vmatmul.mubr.bf16.gmra.mrb[0].mxu0 %v612
    %v2250 = vpop.f32.mrb[0].mxu0
    %v2251 = vadd.f32 %v1765, %v2250
    %v2252 = vpop.f32.mrb[0].mxu0
    %v2253 = vadd.f32 %v1767, %v2252
    %v2254 = vpop.f32.mrb[0].mxu0
    %v2255 = vadd.f32 %v1769, %v2254
    %v2256 = vpop.f32.mrb[0].mxu0
    %v2257 = vadd.f32 %v1771, %v2256
    %2258 = vmatprep.mubr.bf16.mxu0 0
    %2259 = vmatmul.mubr.bf16.gmra.mrb[0].mxu0 %v615
    %v2260 = vpop.f32.mrb[0].mxu0
    %v2261 = vadd.f32 %v1775, %v2260
    %v2262 = vpop.f32.mrb[0].mxu0
    %v2263 = vadd.f32 %v1777, %v2262
    %v2264 = vpop.f32.mrb[0].mxu0
    %v2265 = vadd.f32 %v1779, %v2264
    %v2266 = vpop.f32.mrb[0].mxu0
    %v2267 = vadd.f32 %v1781, %v2266
    %2268 = vmatprep.mubr.bf16.mxu0 0
    %2269 = vmatmul.mubr.bf16.gmra.mrb[0].mxu0 %v618
    %v2270 = vpop.f32.mrb[0].mxu0
    %v2271 = vadd.f32 %v1785, %v2270
    %v2272 = vpop.f32.mrb[0].mxu0
    %v2273 = vadd.f32 %v1787, %v2272
    %v2274 = vpop.f32.mrb[0].mxu0
    %v2275 = vadd.f32 %v1789, %v2274
    %v2276 = vpop.f32.mrb[0].mxu0
    %v2277 = vadd.f32 %v1791, %v2276
    %2278 = vmatprep.mubr.bf16.mxu0 0
    %2279 = vmatmul.mubr.bf16.gmra.mrb[0].mxu0 %v621
    %v2280 = vpop.f32.mrb[0].mxu0
    %v2281 = vadd.f32 %v1795, %v2280
    %v2282 = vpop.f32.mrb[0].mxu0
    %v2283 = vadd.f32 %v1797, %v2282
    %v2284 = vpop.f32.mrb[0].mxu0
    %v2285 = vadd.f32 %v1799, %v2284
    %v2286 = vpop.f32.mrb[0].mxu0
    %v2287 = vadd.f32 %v1801, %v2286
    %2288 = vmatprep.mubr.bf16.mxu0 0
    %2289 = vmatmul.mubr.bf16.gmra.mrb[0].mxu0 %v624
    %v2290 = vpop.f32.mrb[0].mxu0
    %v2291 = vadd.f32 %v1805, %v2290
    %v2292 = vpop.f32.mrb[0].mxu0
    %v2293 = vadd.f32 %v1807, %v2292
    %v2294 = vpop.f32.mrb[0].mxu0
    %v2295 = vadd.f32 %v1809, %v2294
    %v2296 = vpop.f32.mrb[0].mxu0
    %v2297 = vadd.f32 %v1811, %v2296
    %2298 = vmatprep.mubr.bf16.mxu0 0
    %2299 = vmatmul.mubr.bf16.gmra.mrb[0].mxu0 %v627
    %v2300 = vpop.f32.mrb[0].mxu0
    %v2301 = vadd.f32 %v1815, %v2300
    %v2302 = vpop.f32.mrb[0].mxu0
    %v2303 = vadd.f32 %v1817, %v2302
    %v2304 = vpop.f32.mrb[0].mxu0
    %v2305 = vadd.f32 %v1819, %v2304
    %v2306 = vpop.f32.mrb[0].mxu0
    %v2307 = vadd.f32 %v1821, %v2306
    %2308 = vmatprep.mubr.bf16.mxu0 0
    %2309 = vmatmul.mubr.bf16.gmra.mrb[0].mxu0 %v630
    %v2310 = vpop.f32.mrb[0].mxu0
    %v2311 = vadd.f32 %v1825, %v2310
    %v2312 = vpop.f32.mrb[0].mxu0
    %v2313 = vadd.f32 %v1827, %v2312
    %v2314 = vpop.f32.mrb[0].mxu0
    %v2315 = vadd.f32 %v1829, %v2314
    %v2316 = vpop.f32.mrb[0].mxu0
    %v2317 = vadd.f32 %v1831, %v2316
    %2318 = vmatprep.mubr.bf16.mxu0 0
    %2319 = vmatmul.mubr.bf16.gmra.mrb[0].mxu0 %v633
    %v2320 = vpop.f32.mrb[0].mxu0
    %v2321 = vadd.f32 %v1835, %v2320
    %v2322 = vpop.f32.mrb[0].mxu0
    %v2323 = vadd.f32 %v1837, %v2322
    %v2324 = vpop.f32.mrb[0].mxu0
    %v2325 = vadd.f32 %v1839, %v2324
    %v2326 = vpop.f32.mrb[0].mxu0
    %v2327 = vadd.f32 %v1841, %v2326
    %2328 = vmatprep.mubr.bf16.mxu0 0
    %2329 = vmatmul.mubr.bf16.gmra.mrb[0].mxu0 %v636
    %v2330 = vpop.f32.mrb[0].mxu0
    %v2331 = vadd.f32 %v1845, %v2330
    %v2332 = vpop.f32.mrb[0].mxu0
    %v2333 = vadd.f32 %v1847, %v2332
    %v2334 = vpop.f32.mrb[0].mxu0
    %v2335 = vadd.f32 %v1849, %v2334
    %v2336 = vpop.f32.mrb[0].mxu0
    %v2337 = vadd.f32 %v1851, %v2336
    %2338 = vmatprep.mubr.bf16.mxu0 0
    %2339 = vmatmul.mubr.bf16.gmra.mrb[0].mxu0 %v639
    %v2340 = vpop.f32.mrb[0].mxu0
    %v2341 = vadd.f32 %v1855, %v2340
    %v2342 = vpop.f32.mrb[0].mxu0
    %v2343 = vadd.f32 %v1857, %v2342
    %v2344 = vpop.f32.mrb[0].mxu0
    %v2345 = vadd.f32 %v1859, %v2344
    %v2346 = vpop.f32.mrb[0].mxu0
    %v2347 = vadd.f32 %v1861, %v2346
    %2348 = vmatprep.mubr.bf16.mxu0 0
    %2349 = vmatmul.mubr.bf16.gmra.mrb[0].mxu0 %v642
    %v2350 = vpop.f32.mrb[0].mxu0
    %v2351 = vadd.f32 %v1865, %v2350
    %v2352 = vpop.f32.mrb[0].mxu0
    %v2353 = vadd.f32 %v1867, %v2352
    %v2354 = vpop.f32.mrb[0].mxu0
    %v2355 = vadd.f32 %v1869, %v2354
    %v2356 = vpop.f32.mrb[0].mxu0
    %v2357 = vadd.f32 %v1871, %v2356
    %2358 = vmatprep.mubr.bf16.mxu0 0
    %2359 = vmatmul.mubr.bf16.gmra.mrb[0].mxu0 %v645
    %v2360 = vpop.f32.mrb[0].mxu0
    %v2361 = vadd.f32 %v1875, %v2360
    %v2362 = vpop.f32.mrb[0].mxu0
    %v2363 = vadd.f32 %v1877, %v2362
    %v2364 = vpop.f32.mrb[0].mxu0
    %v2365 = vadd.f32 %v1879, %v2364
    %v2366 = vpop.f32.mrb[0].mxu0
    %v2367 = vadd.f32 %v1881, %v2366
    %2368 = vmatprep.mubr.bf16.mxu0 0
    %2369 = vmatmul.mubr.bf16.gmra.mrb[0].mxu0 %v648
    %v2370 = vpop.f32.mrb[0].mxu0
    %v2371 = vadd.f32 %v1885, %v2370
    %v2372 = vpop.f32.mrb[0].mxu0
    %v2373 = vadd.f32 %v1887, %v2372
    %v2374 = vpop.f32.mrb[0].mxu0
    %v2375 = vadd.f32 %v1889, %v2374
    %v2376 = vpop.f32.mrb[0].mxu0
    %v2377 = vadd.f32 %v1891, %v2376
    %2378 = vmatprep.mubr.bf16.mxu0 0
    %2379 = vmatmul.mubr.bf16.gmra.mrb[0].mxu0 %v651
    %v2380 = vpop.f32.mrb[0].mxu0
    %v2381 = vadd.f32 %v1895, %v2380
    %v2382 = vpop.f32.mrb[0].mxu0
    %v2383 = vadd.f32 %v1897, %v2382
    %v2384 = vpop.f32.mrb[0].mxu0
    %v2385 = vadd.f32 %v1899, %v2384
    %v2386 = vpop.f32.mrb[0].mxu0
    %v2387 = vadd.f32 %v1901, %v2386
    %2388 = vmatprep.mubr.bf16.mxu0 0
    %2389 = vmatmul.mubr.bf16.gmra.mrb[0].mxu0 %v654
    %v2390 = vpop.f32.mrb[0].mxu0
    %v2391 = vadd.f32 %v1905, %v2390
    %v2392 = vpop.f32.mrb[0].mxu0
    %v2393 = vadd.f32 %v1907, %v2392
    %v2394 = vpop.f32.mrb[0].mxu0
    %v2395 = vadd.f32 %v1909, %v2394
    %v2396 = vpop.f32.mrb[0].mxu0
    %v2397 = vadd.f32 %v1911, %v2396
    %2398 = vmatprep.mubr.bf16.mxu0 0
    %2399 = vmatmul.mubr.bf16.gmra.mrb[0].mxu0 %v657
    %v2400 = vpop.f32.mrb[0].mxu0
    %v2401 = vadd.f32 %v1915, %v2400
    %v2402 = vpop.f32.mrb[0].mxu0
    %v2403 = vadd.f32 %v1917, %v2402
    %v2404 = vpop.f32.mrb[0].mxu0
    %v2405 = vadd.f32 %v1919, %v2404
    %v2406 = vpop.f32.mrb[0].mxu0
    %v2407 = vadd.f32 %v1921, %v2406
    %2408 = vdwg.mxu0
    %v2409 = vpack.c.bf16 %v1336, %v1335
    %v2410 = vpack.c.bf16 %v1338, %v1337
    %v2411 = vpack.c.bf16 %v1340, %v1339
    %v2412 = vpack.c.bf16 %v1342, %v1341
    %v2413 = vpack.c.bf16 %v1344, %v1343
    %v2414 = vpack.c.bf16 %v1346, %v1345
    %v2415 = vpack.c.bf16 %v1348, %v1347
    %v2416 = vpack.c.bf16 %v1350, %v1349
    %v2417 = vpack.c.bf16 %v1352, %v1351
    %v2418 = vpack.c.bf16 %v1354, %v1353
    %v2419 = vpack.c.bf16 %v1356, %v1355
    %v2420 = vpack.c.bf16 %v1358, %v1357
    %v2421 = vpack.c.bf16 %v1360, %v1359
    %v2422 = vpack.c.bf16 %v1362, %v1361
    %v2423 = vpack.c.bf16 %v1364, %v1363
    %v2424 = vpack.c.bf16 %v1366, %v1365
    %v2425 = vpack.c.bf16 %v1368, %v1367
    %v2426 = vpack.c.bf16 %v1370, %v1369
    %v2427 = vpack.c.bf16 %v1372, %v1371
    %v2428 = vld [vmem:[%s9] sm:$0xff]
    %v2429 = vld [vmem:[%s9 + $0x8] sm:$0xff]
    %v2430 = vld [vmem:[%s9 + $0x10] sm:$0xff]
    %v2431 = vld [vmem:[%s9 + $0x18] sm:$0xff]
    %v2432 = vld [vmem:[%s9 + $0x20] sm:$0xff]
    %v2433 = vld [vmem:[%s9 + $0x28] sm:$0xff]
    %v2434 = vld [vmem:[%s9 + $0x30] sm:$0xff]
    %v2435 = vld [vmem:[%s9 + $0x38] sm:$0xff]
    %v2436 = vld [vmem:[%s9 + $0x40] sm:$0xff]
    %v2437 = vld [vmem:[%s9 + $0x48] sm:$0xff]
    %v2438 = vld [vmem:[%s9 + $0x50] sm:$0xff]
    %v2439 = vld [vmem:[%s9 + $0x58] sm:$0xff]
    %v2440 = vld [vmem:[%s9 + $0x60] sm:$0xff]
    %v2441 = vld [vmem:[%s9 + $0x68] sm:$0xff]
    %v2442 = vld [vmem:[%s9 + $0x70] sm:$0xff]
    %v2443 = vld [vmem:[%s9 + $0x78] sm:$0xff]
    %v2444 = vld [vmem:[%s9 + $0x80] sm:$0xff]
    %v2445 = vld [vmem:[%s9 + $0x88] sm:$0xff]
    %v2446 = vld [vmem:[%s9 + $0x90] sm:$0xff]
    %v2447 = vld [vmem:[%s9 + $0x98] sm:$0xff]
    %v2448 = vld [vmem:[%s9 + $0xa0] sm:$0xff]
    %v2449 = vld [vmem:[%s9 + $0xa8] sm:$0xff]
    %v2450 = vld [vmem:[%s9 + $0xb0] sm:$0xff]
    %v2451 = vld [vmem:[%s9 + $0xb8] sm:$0xff]
    %v2452 = vld [vmem:[%s9 + $0xc0] sm:$0xff]
    %v2453 = vld [vmem:[%s9 + $0xc8] sm:$0xff]
    %v2454 = vld [vmem:[%s9 + $0xd0] sm:$0xff]
    %v2455 = vld [vmem:[%s9 + $0xd8] sm:$0xff]
    %v2456 = vld [vmem:[%s9 + $0xe0] sm:$0xff]
    %v2457 = vld [vmem:[%s9 + $0xe8] sm:$0xff]
    %v2458 = vld [vmem:[%s9 + $0xf0] sm:$0xff]
    %v2459 = vld [vmem:[%s9 + $0xf8] sm:$0xff]
    %v2492 = vunpack.c.l.b16 %v2428
    %v2493 = vunpack.c.h.b16 %v2428
    %v2494 = vunpack.c.l.b16 %v2429
    %v2495 = vunpack.c.h.b16 %v2429
    %v2496 = vunpack.c.l.b16 %v2430
    %v2497 = vunpack.c.h.b16 %v2430
    %v2498 = vunpack.c.l.b16 %v2431
    %v2499 = vunpack.c.h.b16 %v2431
    %v2500 = vunpack.c.l.b16 %v2432
    %v2501 = vunpack.c.h.b16 %v2432
    %v2502 = vunpack.c.l.b16 %v2433
    %v2503 = vunpack.c.h.b16 %v2433
    %v2504 = vunpack.c.l.b16 %v2434
    %v2505 = vunpack.c.h.b16 %v2434
    %v2506 = vunpack.c.l.b16 %v2435
    %v2507 = vunpack.c.h.b16 %v2435
    %v2508 = vunpack.c.l.b16 %v2436
    %v2509 = vunpack.c.h.b16 %v2436
    %v2510 = vunpack.c.l.b16 %v2437
    %v2511 = vunpack.c.h.b16 %v2437
    %v2512 = vunpack.c.l.b16 %v2438
    %v2513 = vunpack.c.h.b16 %v2438
    %v2514 = vunpack.c.l.b16 %v2439
    %v2515 = vunpack.c.h.b16 %v2439
    %v2516 = vunpack.c.l.b16 %v2440
    %v2517 = vunpack.c.h.b16 %v2440
    %v2518 = vunpack.c.l.b16 %v2441
    %v2519 = vunpack.c.h.b16 %v2441
    %v2520 = vunpack.c.l.b16 %v2442
    %v2521 = vunpack.c.h.b16 %v2442
    %v2522 = vunpack.c.l.b16 %v2443
    %v2523 = vunpack.c.h.b16 %v2443
    %v2524 = vunpack.c.l.b16 %v2444
    %v2525 = vunpack.c.h.b16 %v2444
    %v2526 = vunpack.c.l.b16 %v2445
    %v2527 = vunpack.c.h.b16 %v2445
    %v2528 = vunpack.c.l.b16 %v2446
    %v2529 = vunpack.c.h.b16 %v2446
    %v2530 = vunpack.c.l.b16 %v2447
    %v2531 = vunpack.c.h.b16 %v2447
    %v2532 = vunpack.c.l.b16 %v2448
    %v2533 = vunpack.c.h.b16 %v2448
    %v2534 = vunpack.c.l.b16 %v2449
    %v2535 = vunpack.c.h.b16 %v2449
    %v2536 = vunpack.c.l.b16 %v2450
    %v2537 = vunpack.c.h.b16 %v2450
    %v2538 = vunpack.c.l.b16 %v2451
    %v2539 = vunpack.c.h.b16 %v2451
    %v2540 = vunpack.c.l.b16 %v2452
    %v2541 = vunpack.c.h.b16 %v2452
    %v2542 = vunpack.c.l.b16 %v2453
    %v2543 = vunpack.c.h.b16 %v2453
    %v2544 = vunpack.c.l.b16 %v2454
    %v2545 = vunpack.c.h.b16 %v2454
    %v2546 = vunpack.c.l.b16 %v2455
    %v2547 = vunpack.c.h.b16 %v2455
    %v2548 = vunpack.c.l.b16 %v2456
    %v2549 = vunpack.c.h.b16 %v2456
    %v2550 = vunpack.c.l.b16 %v2457
    %v2551 = vunpack.c.h.b16 %v2457
    %v2552 = vunpack.c.l.b16 %v2458
    %v2553 = vunpack.c.h.b16 %v2458
    %v2554 = vunpack.c.l.b16 %v2459
    %v2555 = vunpack.c.h.b16 %v2459
    %v2556 = vpack.c.b16 %v2496, %v2492
    %v2557 = vpack.c.b16 %v2497, %v2493
    %v2558 = vpack.c.b16 %v2498, %v2494
    %v2559 = vpack.c.b16 %v2499, %v2495
    %v2560 = vpack.c.b16 %v2504, %v2500
    %v2561 = vpack.c.b16 %v2505, %v2501
    %v2562 = vpack.c.b16 %v2506, %v2502
    %v2563 = vpack.c.b16 %v2507, %v2503
    %v2564 = vpack.c.b16 %v2512, %v2508
    %v2565 = vpack.c.b16 %v2513, %v2509
    %v2566 = vpack.c.b16 %v2514, %v2510
    %v2567 = vpack.c.b16 %v2515, %v2511
    %v2568 = vpack.c.b16 %v2520, %v2516
    %v2569 = vpack.c.b16 %v2521, %v2517
    %v2570 = vpack.c.b16 %v2522, %v2518
    %v2571 = vpack.c.b16 %v2523, %v2519
    %v2572 = vpack.c.b16 %v2528, %v2524
    %v2573 = vpack.c.b16 %v2529, %v2525
    %v2574 = vpack.c.b16 %v2530, %v2526
    %v2575 = vpack.c.b16 %v2531, %v2527
    %v2576 = vpack.c.b16 %v2536, %v2532
    %v2577 = vpack.c.b16 %v2537, %v2533
    %v2578 = vpack.c.b16 %v2538, %v2534
    %v2579 = vpack.c.b16 %v2539, %v2535
    %v2580 = vpack.c.b16 %v2544, %v2540
    %v2581 = vpack.c.b16 %v2545, %v2541
    %v2582 = vpack.c.b16 %v2546, %v2542
    %v2583 = vpack.c.b16 %v2547, %v2543
    %v2584 = vpack.c.b16 %v2552, %v2548
    %v2585 = vpack.c.b16 %v2553, %v2549
    %v2586 = vpack.c.b16 %v2554, %v2550
    %v2587 = vpack.c.b16 %v2555, %v2551
    %2620 = vmatprep.subr.bf16.mxu0 %v2557
    %2621 = vmatpush1.bf16.msra.mxu0 %v2556
    %2622 = vmatprep.subr.bf16.mxu0 %v2561
    %2623 = vmatpush1.bf16.msra.mxu0 %v2560
    %2624 = vmatprep.subr.bf16.mxu0 %v2565
    %2625 = vmatpush1.bf16.msra.mxu0 %v2564
    %2626 = vmatprep.subr.bf16.mxu0 %v2569
    %2627 = vmatpush1.bf16.msra.mxu0 %v2568
    %2628 = vmatprep.subr.bf16.mxu0 %v2573
    %2629 = vmatpush1.bf16.msra.mxu0 %v2572
    %2630 = vmatprep.subr.bf16.mxu0 %v2577
    %2631 = vmatpush1.bf16.msra.mxu0 %v2576
    %2632 = vmatprep.subr.bf16.mxu0 %v2581
    %2633 = vmatpush1.bf16.msra.mxu0 %v2580
    %2634 = vmatprep.subr.bf16.mxu0 %v2585
    %2635 = vmatpush1.bf16.msra.mxu0 %v2584
    %2636 = vmatprep.subr.bf16.mxu0 0
    %2637 = vmatpush1.bf16.msra.mxu0 0
    %2638 = vmatprep.subr.bf16.mxu0 0
    %2639 = vmatpush1.bf16.msra.mxu0 0
    %2640 = vmatprep.subr.bf16.mxu0 0
    %2641 = vmatpush1.bf16.msra.mxu0 0
    %2642 = vmatprep.subr.bf16.mxu0 0
    %2643 = vmatpush1.bf16.msra.mxu0 0
    %2644 = vmatprep.subr.bf16.mxu0 0
    %2645 = vmatpush1.bf16.msra.mxu0 0
    %2646 = vmatprep.subr.bf16.mxu0 0
    %2647 = vmatpush1.bf16.msra.mxu0 0
    %2648 = vmatprep.subr.bf16.mxu0 0
    %2649 = vmatpush1.bf16.msra.mxu0 0
    %2650 = vmatprep.subr.bf16.mxu0 0
    %2651 = vmatpush1.bf16.msra.mxu0 0
    %2652 = vmatprep.mubr.bf16.mxu0 0
    %2653 = vmatmul.mubr.bf16.gmra.mrb[0].mxu0 %v2409
    %v2654 = vpop.f32.mrb[0].mxu0
    %v2655 = vadd.f32 0.0, %v2654
    %v2656 = vpop.f32.mrb[0].mxu0
    %v2657 = vadd.f32 0.0, %v2656
    %v2658 = vpop.f32.mrb[0].mxu0
    %v2659 = vadd.f32 0.0, %v2658
    %v2660 = vpop.f32.mrb[0].mxu0
    %v2661 = vadd.f32 0.0, %v2660
    %2662 = vmatprep.mubr.bf16.mxu0 0
    %2663 = vmatmul.mubr.bf16.gmra.mrb[0].mxu0 %v2410
    %v2664 = vpop.f32.mrb[0].mxu0
    %v2665 = vadd.f32 0.0, %v2664
    %v2666 = vpop.f32.mrb[0].mxu0
    %v2667 = vadd.f32 0.0, %v2666
    %v2668 = vpop.f32.mrb[0].mxu0
    %v2669 = vadd.f32 0.0, %v2668
    %v2670 = vpop.f32.mrb[0].mxu0
    %v2671 = vadd.f32 0.0, %v2670
    %2672 = vmatprep.mubr.bf16.mxu0 0
    %2673 = vmatmul.mubr.bf16.gmra.mrb[0].mxu0 %v2411
    %v2674 = vpop.f32.mrb[0].mxu0
    %v2675 = vadd.f32 0.0, %v2674
    %v2676 = vpop.f32.mrb[0].mxu0
    %v2677 = vadd.f32 0.0, %v2676
    %v2678 = vpop.f32.mrb[0].mxu0
    %v2679 = vadd.f32 0.0, %v2678
    %v2680 = vpop.f32.mrb[0].mxu0
    %v2681 = vadd.f32 0.0, %v2680
    %2682 = vmatprep.mubr.bf16.mxu0 0
    %2683 = vmatmul.mubr.bf16.gmra.mrb[0].mxu0 %v2412
    %v2684 = vpop.f32.mrb[0].mxu0
    %v2685 = vadd.f32 0.0, %v2684
    %v2686 = vpop.f32.mrb[0].mxu0
    %v2687 = vadd.f32 0.0, %v2686
    %v2688 = vpop.f32.mrb[0].mxu0
    %v2689 = vadd.f32 0.0, %v2688
    %v2690 = vpop.f32.mrb[0].mxu0
    %v2691 = vadd.f32 0.0, %v2690
    %2692 = vmatprep.mubr.bf16.mxu0 0
    %2693 = vmatmul.mubr.bf16.gmra.mrb[0].mxu0 %v2413
    %v2694 = vpop.f32.mrb[0].mxu0
    %v2695 = vadd.f32 0.0, %v2694
    %v2696 = vpop.f32.mrb[0].mxu0
    %v2697 = vadd.f32 0.0, %v2696
    %v2698 = vpop.f32.mrb[0].mxu0
    %v2699 = vadd.f32 0.0, %v2698
    %v2700 = vpop.f32.mrb[0].mxu0
    %v2701 = vadd.f32 0.0, %v2700
    %2702 = vmatprep.mubr.bf16.mxu0 0
    %2703 = vmatmul.mubr.bf16.gmra.mrb[0].mxu0 %v2414
    %v2704 = vpop.f32.mrb[0].mxu0
    %v2705 = vadd.f32 0.0, %v2704
    %v2706 = vpop.f32.mrb[0].mxu0
    %v2707 = vadd.f32 0.0, %v2706
    %v2708 = vpop.f32.mrb[0].mxu0
    %v2709 = vadd.f32 0.0, %v2708
    %v2710 = vpop.f32.mrb[0].mxu0
    %v2711 = vadd.f32 0.0, %v2710
    %2712 = vmatprep.mubr.bf16.mxu0 0
    %2713 = vmatmul.mubr.bf16.gmra.mrb[0].mxu0 %v2415
    %v2714 = vpop.f32.mrb[0].mxu0
    %v2715 = vadd.f32 0.0, %v2714
    %v2716 = vpop.f32.mrb[0].mxu0
    %v2717 = vadd.f32 0.0, %v2716
    %v2718 = vpop.f32.mrb[0].mxu0
    %v2719 = vadd.f32 0.0, %v2718
    %v2720 = vpop.f32.mrb[0].mxu0
    %v2721 = vadd.f32 0.0, %v2720
    %2722 = vmatprep.mubr.bf16.mxu0 0
    %2723 = vmatmul.mubr.bf16.gmra.mrb[0].mxu0 %v2416
    %v2724 = vpop.f32.mrb[0].mxu0
    %v2725 = vadd.f32 0.0, %v2724
    %v2726 = vpop.f32.mrb[0].mxu0
    %v2727 = vadd.f32 0.0, %v2726
    %v2728 = vpop.f32.mrb[0].mxu0
    %v2729 = vadd.f32 0.0, %v2728
    %v2730 = vpop.f32.mrb[0].mxu0
    %v2731 = vadd.f32 0.0, %v2730
    %2732 = vmatprep.mubr.bf16.mxu0 0
    %2733 = vmatmul.mubr.bf16.gmra.mrb[0].mxu0 %v2417
    %v2734 = vpop.f32.mrb[0].mxu0
    %v2735 = vadd.f32 0.0, %v2734
    %v2736 = vpop.f32.mrb[0].mxu0
    %v2737 = vadd.f32 0.0, %v2736
    %v2738 = vpop.f32.mrb[0].mxu0
    %v2739 = vadd.f32 0.0, %v2738
    %v2740 = vpop.f32.mrb[0].mxu0
    %v2741 = vadd.f32 0.0, %v2740
    %2742 = vmatprep.mubr.bf16.mxu0 0
    %2743 = vmatmul.mubr.bf16.gmra.mrb[0].mxu0 %v2418
    %v2744 = vpop.f32.mrb[0].mxu0
    %v2745 = vadd.f32 0.0, %v2744
    %v2746 = vpop.f32.mrb[0].mxu0
    %v2747 = vadd.f32 0.0, %v2746
    %v2748 = vpop.f32.mrb[0].mxu0
    %v2749 = vadd.f32 0.0, %v2748
    %v2750 = vpop.f32.mrb[0].mxu0
    %v2751 = vadd.f32 0.0, %v2750
    %2752 = vmatprep.mubr.bf16.mxu0 0
    %2753 = vmatmul.mubr.bf16.gmra.mrb[0].mxu0 %v2419
    %v2754 = vpop.f32.mrb[0].mxu0
    %v2755 = vadd.f32 0.0, %v2754
    %v2756 = vpop.f32.mrb[0].mxu0
    %v2757 = vadd.f32 0.0, %v2756
    %v2758 = vpop.f32.mrb[0].mxu0
    %v2759 = vadd.f32 0.0, %v2758
    %v2760 = vpop.f32.mrb[0].mxu0
    %v2761 = vadd.f32 0.0, %v2760
    %2762 = vmatprep.mubr.bf16.mxu0 0
    %2763 = vmatmul.mubr.bf16.gmra.mrb[0].mxu0 %v2420
    %v2764 = vpop.f32.mrb[0].mxu0
    %v2765 = vadd.f32 0.0, %v2764
    %v2766 = vpop.f32.mrb[0].mxu0
    %v2767 = vadd.f32 0.0, %v2766
    %v2768 = vpop.f32.mrb[0].mxu0
    %v2769 = vadd.f32 0.0, %v2768
    %v2770 = vpop.f32.mrb[0].mxu0
    %v2771 = vadd.f32 0.0, %v2770
    %2772 = vmatprep.mubr.bf16.mxu0 0
    %2773 = vmatmul.mubr.bf16.gmra.mrb[0].mxu0 %v2421
    %v2774 = vpop.f32.mrb[0].mxu0
    %v2775 = vadd.f32 0.0, %v2774
    %v2776 = vpop.f32.mrb[0].mxu0
    %v2777 = vadd.f32 0.0, %v2776
    %v2778 = vpop.f32.mrb[0].mxu0
    %v2779 = vadd.f32 0.0, %v2778
    %v2780 = vpop.f32.mrb[0].mxu0
    %v2781 = vadd.f32 0.0, %v2780
    %2782 = vmatprep.mubr.bf16.mxu0 0
    %2783 = vmatmul.mubr.bf16.gmra.mrb[0].mxu0 %v2422
    %v2784 = vpop.f32.mrb[0].mxu0
    %v2785 = vadd.f32 0.0, %v2784
    %v2786 = vpop.f32.mrb[0].mxu0
    %v2787 = vadd.f32 0.0, %v2786
    %v2788 = vpop.f32.mrb[0].mxu0
    %v2789 = vadd.f32 0.0, %v2788
    %v2790 = vpop.f32.mrb[0].mxu0
    %v2791 = vadd.f32 0.0, %v2790
    %2792 = vmatprep.mubr.bf16.mxu0 0
    %2793 = vmatmul.mubr.bf16.gmra.mrb[0].mxu0 %v2423
    %v2794 = vpop.f32.mrb[0].mxu0
    %v2795 = vadd.f32 0.0, %v2794
    %v2796 = vpop.f32.mrb[0].mxu0
    %v2797 = vadd.f32 0.0, %v2796
    %v2798 = vpop.f32.mrb[0].mxu0
    %v2799 = vadd.f32 0.0, %v2798
    %v2800 = vpop.f32.mrb[0].mxu0
    %v2801 = vadd.f32 0.0, %v2800
    %2802 = vmatprep.mubr.bf16.mxu0 0
    %2803 = vmatmul.mubr.bf16.gmra.mrb[0].mxu0 %v2424
    %v2804 = vpop.f32.mrb[0].mxu0
    %v2805 = vadd.f32 0.0, %v2804
    %v2806 = vpop.f32.mrb[0].mxu0
    %v2807 = vadd.f32 0.0, %v2806
    %v2808 = vpop.f32.mrb[0].mxu0
    %v2809 = vadd.f32 0.0, %v2808
    %v2810 = vpop.f32.mrb[0].mxu0
    %v2811 = vadd.f32 0.0, %v2810
    %2812 = vmatprep.mubr.bf16.mxu0 0
    %2813 = vmatmul.mubr.bf16.gmra.mrb[0].mxu0 %v2425
    %v2814 = vpop.f32.mrb[0].mxu0
    %v2815 = vadd.f32 0.0, %v2814
    %v2816 = vpop.f32.mrb[0].mxu0
    %v2817 = vadd.f32 0.0, %v2816
    %v2818 = vpop.f32.mrb[0].mxu0
    %v2819 = vadd.f32 0.0, %v2818
    %v2820 = vpop.f32.mrb[0].mxu0
    %v2821 = vadd.f32 0.0, %v2820
    %2822 = vmatprep.mubr.bf16.mxu0 0
    %2823 = vmatmul.mubr.bf16.gmra.mrb[0].mxu0 %v2426
    %v2824 = vpop.f32.mrb[0].mxu0
    %v2825 = vadd.f32 0.0, %v2824
    %v2826 = vpop.f32.mrb[0].mxu0
    %v2827 = vadd.f32 0.0, %v2826
    %v2828 = vpop.f32.mrb[0].mxu0
    %v2829 = vadd.f32 0.0, %v2828
    %v2830 = vpop.f32.mrb[0].mxu0
    %v2831 = vadd.f32 0.0, %v2830
    %2832 = vmatprep.mubr.bf16.mxu0 0
    %2833 = vmatmul.mubr.bf16.gmra.mrb[0].mxu0 %v2427
    %v2834 = vpop.f32.mrb[0].mxu0
    %v2835 = vadd.f32 0.0, %v2834
    %v2836 = vpop.f32.mrb[0].mxu0
    %v2837 = vadd.f32 0.0, %v2836
    %v2838 = vpop.f32.mrb[0].mxu0
    %v2839 = vadd.f32 0.0, %v2838
    %v2840 = vpop.f32.mrb[0].mxu0
    %v2841 = vadd.f32 0.0, %v2840
    %2842 = vdwg.mxu0
    %2843 = vmatprep.subr.bf16.mxu0 %v2559
    %2844 = vmatpush1.bf16.msra.mxu0 %v2558
    %2845 = vmatprep.subr.bf16.mxu0 %v2563
    %2846 = vmatpush1.bf16.msra.mxu0 %v2562
    %2847 = vmatprep.subr.bf16.mxu0 %v2567
    %2848 = vmatpush1.bf16.msra.mxu0 %v2566
    %2849 = vmatprep.subr.bf16.mxu0 %v2571
    %2850 = vmatpush1.bf16.msra.mxu0 %v2570
    %2851 = vmatprep.subr.bf16.mxu0 %v2575
    %2852 = vmatpush1.bf16.msra.mxu0 %v2574
    %2853 = vmatprep.subr.bf16.mxu0 %v2579
    %2854 = vmatpush1.bf16.msra.mxu0 %v2578
    %2855 = vmatprep.subr.bf16.mxu0 %v2583
    %2856 = vmatpush1.bf16.msra.mxu0 %v2582
    %2857 = vmatprep.subr.bf16.mxu0 %v2587
    %2858 = vmatpush1.bf16.msra.mxu0 %v2586
    %2859 = vmatprep.subr.bf16.mxu0 0
    %2860 = vmatpush1.bf16.msra.mxu0 0
    %2861 = vmatprep.subr.bf16.mxu0 0
    %2862 = vmatpush1.bf16.msra.mxu0 0
    %2863 = vmatprep.subr.bf16.mxu0 0
    %2864 = vmatpush1.bf16.msra.mxu0 0
    %2865 = vmatprep.subr.bf16.mxu0 0
    %2866 = vmatpush1.bf16.msra.mxu0 0
    %2867 = vmatprep.subr.bf16.mxu0 0
    %2868 = vmatpush1.bf16.msra.mxu0 0
    %2869 = vmatprep.subr.bf16.mxu0 0
    %2870 = vmatpush1.bf16.msra.mxu0 0
    %2871 = vmatprep.subr.bf16.mxu0 0
    %2872 = vmatpush1.bf16.msra.mxu0 0
    %2873 = vmatprep.subr.bf16.mxu0 0
    %2874 = vmatpush1.bf16.msra.mxu0 0
    %2875 = vmatprep.mubr.bf16.mxu0 0
    %2876 = vmatmul.mubr.bf16.gmra.mrb[0].mxu0 %v2409
    %v2877 = vpop.f32.mrb[0].mxu0
    %v2878 = vadd.f32 0.0, %v2877
    %v2879 = vpop.f32.mrb[0].mxu0
    %v2880 = vadd.f32 0.0, %v2879
    %v2881 = vpop.f32.mrb[0].mxu0
    %v2882 = vadd.f32 0.0, %v2881
    %v2883 = vpop.f32.mrb[0].mxu0
    %v2884 = vadd.f32 0.0, %v2883
    %2885 = vmatprep.mubr.bf16.mxu0 0
    %2886 = vmatmul.mubr.bf16.gmra.mrb[0].mxu0 %v2410
    %v2887 = vpop.f32.mrb[0].mxu0
    %v2888 = vadd.f32 0.0, %v2887
    %v2889 = vpop.f32.mrb[0].mxu0
    %v2890 = vadd.f32 0.0, %v2889
    %v2891 = vpop.f32.mrb[0].mxu0
    %v2892 = vadd.f32 0.0, %v2891
    %v2893 = vpop.f32.mrb[0].mxu0
    %v2894 = vadd.f32 0.0, %v2893
    %2895 = vmatprep.mubr.bf16.mxu0 0
    %2896 = vmatmul.mubr.bf16.gmra.mrb[0].mxu0 %v2411
    %v2897 = vpop.f32.mrb[0].mxu0
    %v2898 = vadd.f32 0.0, %v2897
    %v2899 = vpop.f32.mrb[0].mxu0
    %v2900 = vadd.f32 0.0, %v2899
    %v2901 = vpop.f32.mrb[0].mxu0
    %v2902 = vadd.f32 0.0, %v2901
    %v2903 = vpop.f32.mrb[0].mxu0
    %v2904 = vadd.f32 0.0, %v2903
    %2905 = vmatprep.mubr.bf16.mxu0 0
    %2906 = vmatmul.mubr.bf16.gmra.mrb[0].mxu0 %v2412
    %v2907 = vpop.f32.mrb[0].mxu0
    %v2908 = vadd.f32 0.0, %v2907
    %v2909 = vpop.f32.mrb[0].mxu0
    %v2910 = vadd.f32 0.0, %v2909
    %v2911 = vpop.f32.mrb[0].mxu0
    %v2912 = vadd.f32 0.0, %v2911
    %v2913 = vpop.f32.mrb[0].mxu0
    %v2914 = vadd.f32 0.0, %v2913
    %2915 = vmatprep.mubr.bf16.mxu0 0
    %2916 = vmatmul.mubr.bf16.gmra.mrb[0].mxu0 %v2413
    %v2917 = vpop.f32.mrb[0].mxu0
    %v2918 = vadd.f32 0.0, %v2917
    %v2919 = vpop.f32.mrb[0].mxu0
    %v2920 = vadd.f32 0.0, %v2919
    %v2921 = vpop.f32.mrb[0].mxu0
    %v2922 = vadd.f32 0.0, %v2921
    %v2923 = vpop.f32.mrb[0].mxu0
    %v2924 = vadd.f32 0.0, %v2923
    %2925 = vmatprep.mubr.bf16.mxu0 0
    %2926 = vmatmul.mubr.bf16.gmra.mrb[0].mxu0 %v2414
    %v2927 = vpop.f32.mrb[0].mxu0
    %v2928 = vadd.f32 0.0, %v2927
    %v2929 = vpop.f32.mrb[0].mxu0
    %v2930 = vadd.f32 0.0, %v2929
    %v2931 = vpop.f32.mrb[0].mxu0
    %v2932 = vadd.f32 0.0, %v2931
    %v2933 = vpop.f32.mrb[0].mxu0
    %v2934 = vadd.f32 0.0, %v2933
    %2935 = vmatprep.mubr.bf16.mxu0 0
    %2936 = vmatmul.mubr.bf16.gmra.mrb[0].mxu0 %v2415
    %v2937 = vpop.f32.mrb[0].mxu0
    %v2938 = vadd.f32 0.0, %v2937
    %v2939 = vpop.f32.mrb[0].mxu0
    %v2940 = vadd.f32 0.0, %v2939
    %v2941 = vpop.f32.mrb[0].mxu0
    %v2942 = vadd.f32 0.0, %v2941
    %v2943 = vpop.f32.mrb[0].mxu0
    %v2944 = vadd.f32 0.0, %v2943
    %2945 = vmatprep.mubr.bf16.mxu0 0
    %2946 = vmatmul.mubr.bf16.gmra.mrb[0].mxu0 %v2416
    %v2947 = vpop.f32.mrb[0].mxu0
    %v2948 = vadd.f32 0.0, %v2947
    %v2949 = vpop.f32.mrb[0].mxu0
    %v2950 = vadd.f32 0.0, %v2949
    %v2951 = vpop.f32.mrb[0].mxu0
    %v2952 = vadd.f32 0.0, %v2951
    %v2953 = vpop.f32.mrb[0].mxu0
    %v2954 = vadd.f32 0.0, %v2953
    %2955 = vmatprep.mubr.bf16.mxu0 0
    %2956 = vmatmul.mubr.bf16.gmra.mrb[0].mxu0 %v2417
    %v2957 = vpop.f32.mrb[0].mxu0
    %v2958 = vadd.f32 0.0, %v2957
    %v2959 = vpop.f32.mrb[0].mxu0
    %v2960 = vadd.f32 0.0, %v2959
    %v2961 = vpop.f32.mrb[0].mxu0
    %v2962 = vadd.f32 0.0, %v2961
    %v2963 = vpop.f32.mrb[0].mxu0
    %v2964 = vadd.f32 0.0, %v2963
    %2965 = vmatprep.mubr.bf16.mxu0 0
    %2966 = vmatmul.mubr.bf16.gmra.mrb[0].mxu0 %v2418
    %v2967 = vpop.f32.mrb[0].mxu0
    %v2968 = vadd.f32 0.0, %v2967
    %v2969 = vpop.f32.mrb[0].mxu0
    %v2970 = vadd.f32 0.0, %v2969
    %v2971 = vpop.f32.mrb[0].mxu0
    %v2972 = vadd.f32 0.0, %v2971
    %v2973 = vpop.f32.mrb[0].mxu0
    %v2974 = vadd.f32 0.0, %v2973
    %2975 = vmatprep.mubr.bf16.mxu0 0
    %2976 = vmatmul.mubr.bf16.gmra.mrb[0].mxu0 %v2419
    %v2977 = vpop.f32.mrb[0].mxu0
    %v2978 = vadd.f32 0.0, %v2977
    %v2979 = vpop.f32.mrb[0].mxu0
    %v2980 = vadd.f32 0.0, %v2979
    %v2981 = vpop.f32.mrb[0].mxu0
    %v2982 = vadd.f32 0.0, %v2981
    %v2983 = vpop.f32.mrb[0].mxu0
    %v2984 = vadd.f32 0.0, %v2983
    %2985 = vmatprep.mubr.bf16.mxu0 0
    %2986 = vmatmul.mubr.bf16.gmra.mrb[0].mxu0 %v2420
    %v2987 = vpop.f32.mrb[0].mxu0
    %v2988 = vadd.f32 0.0, %v2987
    %v2989 = vpop.f32.mrb[0].mxu0
    %v2990 = vadd.f32 0.0, %v2989
    %v2991 = vpop.f32.mrb[0].mxu0
    %v2992 = vadd.f32 0.0, %v2991
    %v2993 = vpop.f32.mrb[0].mxu0
    %v2994 = vadd.f32 0.0, %v2993
    %2995 = vmatprep.mubr.bf16.mxu0 0
    %2996 = vmatmul.mubr.bf16.gmra.mrb[0].mxu0 %v2421
    %v2997 = vpop.f32.mrb[0].mxu0
    %v2998 = vadd.f32 0.0, %v2997
    %v2999 = vpop.f32.mrb[0].mxu0
    %v3000 = vadd.f32 0.0, %v2999
    %v3001 = vpop.f32.mrb[0].mxu0
    %v3002 = vadd.f32 0.0, %v3001
    %v3003 = vpop.f32.mrb[0].mxu0
    %v3004 = vadd.f32 0.0, %v3003
    %3005 = vmatprep.mubr.bf16.mxu0 0
    %3006 = vmatmul.mubr.bf16.gmra.mrb[0].mxu0 %v2422
    %v3007 = vpop.f32.mrb[0].mxu0
    %v3008 = vadd.f32 0.0, %v3007
    %v3009 = vpop.f32.mrb[0].mxu0
    %v3010 = vadd.f32 0.0, %v3009
    %v3011 = vpop.f32.mrb[0].mxu0
    %v3012 = vadd.f32 0.0, %v3011
    %v3013 = vpop.f32.mrb[0].mxu0
    %v3014 = vadd.f32 0.0, %v3013
    %3015 = vmatprep.mubr.bf16.mxu0 0
    %3016 = vmatmul.mubr.bf16.gmra.mrb[0].mxu0 %v2423
    %v3017 = vpop.f32.mrb[0].mxu0
    %v3018 = vadd.f32 0.0, %v3017
    %v3019 = vpop.f32.mrb[0].mxu0
    %v3020 = vadd.f32 0.0, %v3019
    %v3021 = vpop.f32.mrb[0].mxu0
    %v3022 = vadd.f32 0.0, %v3021
    %v3023 = vpop.f32.mrb[0].mxu0
    %v3024 = vadd.f32 0.0, %v3023
    %3025 = vmatprep.mubr.bf16.mxu0 0
    %3026 = vmatmul.mubr.bf16.gmra.mrb[0].mxu0 %v2424
    %v3027 = vpop.f32.mrb[0].mxu0
    %v3028 = vadd.f32 0.0, %v3027
    %v3029 = vpop.f32.mrb[0].mxu0
    %v3030 = vadd.f32 0.0, %v3029
    %v3031 = vpop.f32.mrb[0].mxu0
    %v3032 = vadd.f32 0.0, %v3031
    %v3033 = vpop.f32.mrb[0].mxu0
    %v3034 = vadd.f32 0.0, %v3033
    %3035 = vmatprep.mubr.bf16.mxu0 0
    %3036 = vmatmul.mubr.bf16.gmra.mrb[0].mxu0 %v2425
    %v3037 = vpop.f32.mrb[0].mxu0
    %v3038 = vadd.f32 0.0, %v3037
    %v3039 = vpop.f32.mrb[0].mxu0
    %v3040 = vadd.f32 0.0, %v3039
    %v3041 = vpop.f32.mrb[0].mxu0
    %v3042 = vadd.f32 0.0, %v3041
    %v3043 = vpop.f32.mrb[0].mxu0
    %v3044 = vadd.f32 0.0, %v3043
    %3045 = vmatprep.mubr.bf16.mxu0 0
    %3046 = vmatmul.mubr.bf16.gmra.mrb[0].mxu0 %v2426
    %v3047 = vpop.f32.mrb[0].mxu0
    %v3048 = vadd.f32 0.0, %v3047
    %v3049 = vpop.f32.mrb[0].mxu0
    %v3050 = vadd.f32 0.0, %v3049
    %v3051 = vpop.f32.mrb[0].mxu0
    %v3052 = vadd.f32 0.0, %v3051
    %v3053 = vpop.f32.mrb[0].mxu0
    %v3054 = vadd.f32 0.0, %v3053
    %3055 = vmatprep.mubr.bf16.mxu0 0
    %3056 = vmatmul.mubr.bf16.gmra.mrb[0].mxu0 %v2427
    %v3057 = vpop.f32.mrb[0].mxu0
    %v3058 = vadd.f32 0.0, %v3057
    %v3059 = vpop.f32.mrb[0].mxu0
    %v3060 = vadd.f32 0.0, %v3059
    %v3061 = vpop.f32.mrb[0].mxu0
    %v3062 = vadd.f32 0.0, %v3061
    %v3063 = vpop.f32.mrb[0].mxu0
    %v3064 = vadd.f32 0.0, %v3063
    %3065 = vdwg.mxu0
    %v3066 = vadd.f32 %v1998, %v2655
    %v3067 = vadd.f32 %v2000, %v2657
    %v3068 = vadd.f32 %v2221, %v2878
    %v3069 = vadd.f32 %v2223, %v2880
    %v3070 = vadd.f32 %v2002, %v2659
    %v3071 = vadd.f32 %v2004, %v2661
    %v3072 = vadd.f32 %v2225, %v2882
    %v3073 = vadd.f32 %v2227, %v2884
    %v3074 = vadd.f32 %v2008, %v2665
    %v3075 = vadd.f32 %v2010, %v2667
    %v3076 = vadd.f32 %v2231, %v2888
    %v3077 = vadd.f32 %v2233, %v2890
    %v3078 = vadd.f32 %v2012, %v2669
    %v3079 = vadd.f32 %v2014, %v2671
    %v3080 = vadd.f32 %v2235, %v2892
    %v3081 = vadd.f32 %v2237, %v2894
    %v3082 = vadd.f32 %v2018, %v2675
    %v3083 = vadd.f32 %v2020, %v2677
    %v3084 = vadd.f32 %v2241, %v2898
    %v3085 = vadd.f32 %v2243, %v2900
    %v3086 = vadd.f32 %v2022, %v2679
    %v3087 = vadd.f32 %v2024, %v2681
    %v3088 = vadd.f32 %v2245, %v2902
    %v3089 = vadd.f32 %v2247, %v2904
    %v3090 = vadd.f32 %v2028, %v2685
    %v3091 = vadd.f32 %v2030, %v2687
    %v3092 = vadd.f32 %v2251, %v2908
    %v3093 = vadd.f32 %v2253, %v2910
    %v3094 = vadd.f32 %v2032, %v2689
    %v3095 = vadd.f32 %v2034, %v2691
    %v3096 = vadd.f32 %v2255, %v2912
    %v3097 = vadd.f32 %v2257, %v2914
    %v3098 = vadd.f32 %v2038, %v2695
    %v3099 = vadd.f32 %v2040, %v2697
    %v3100 = vadd.f32 %v2261, %v2918
    %v3101 = vadd.f32 %v2263, %v2920
    %v3102 = vadd.f32 %v2042, %v2699
    %v3103 = vadd.f32 %v2044, %v2701
    %v3104 = vadd.f32 %v2265, %v2922
    %v3105 = vadd.f32 %v2267, %v2924
    %v3106 = vadd.f32 %v2048, %v2705
    %v3107 = vadd.f32 %v2050, %v2707
    %v3108 = vadd.f32 %v2271, %v2928
    %v3109 = vadd.f32 %v2273, %v2930
    %v3110 = vadd.f32 %v2052, %v2709
    %v3111 = vadd.f32 %v2054, %v2711
    %v3112 = vadd.f32 %v2275, %v2932
    %v3113 = vadd.f32 %v2277, %v2934
    %v3114 = vadd.f32 %v2058, %v2715
    %v3115 = vadd.f32 %v2060, %v2717
    %v3116 = vadd.f32 %v2281, %v2938
    %v3117 = vadd.f32 %v2283, %v2940
    %v3118 = vadd.f32 %v2062, %v2719
    %v3119 = vadd.f32 %v2064, %v2721
    %v3120 = vadd.f32 %v2285, %v2942
    %v3121 = vadd.f32 %v2287, %v2944
    %v3122 = vadd.f32 %v2068, %v2725
    %v3123 = vadd.f32 %v2070, %v2727
    %v3124 = vadd.f32 %v2291, %v2948
    %v3125 = vadd.f32 %v2293, %v2950
    %v3126 = vadd.f32 %v2072, %v2729
    %v3127 = vadd.f32 %v2074, %v2731
    %v3128 = vadd.f32 %v2295, %v2952
    %v3129 = vadd.f32 %v2297, %v2954
    %v3130 = vadd.f32 %v2078, %v2735
    %v3131 = vadd.f32 %v2080, %v2737
    %v3132 = vadd.f32 %v2301, %v2958
    %v3133 = vadd.f32 %v2303, %v2960
    %v3134 = vadd.f32 %v2082, %v2739
    %v3135 = vadd.f32 %v2084, %v2741
    %v3136 = vadd.f32 %v2305, %v2962
    %v3137 = vadd.f32 %v2307, %v2964
    %v3138 = vadd.f32 %v2088, %v2745
    %v3139 = vadd.f32 %v2090, %v2747
    %v3140 = vadd.f32 %v2311, %v2968
    %v3141 = vadd.f32 %v2313, %v2970
    %v3142 = vadd.f32 %v2092, %v2749
    %v3143 = vadd.f32 %v2094, %v2751
    %v3144 = vadd.f32 %v2315, %v2972
    %v3145 = vadd.f32 %v2317, %v2974
    %v3146 = vadd.f32 %v2098, %v2755
    %v3147 = vadd.f32 %v2100, %v2757
    %v3148 = vadd.f32 %v2321, %v2978
    %v3149 = vadd.f32 %v2323, %v2980
    %v3150 = vadd.f32 %v2102, %v2759
    %v3151 = vadd.f32 %v2104, %v2761
    %v3152 = vadd.f32 %v2325, %v2982
    %v3153 = vadd.f32 %v2327, %v2984
    %v3154 = vadd.f32 %v2108, %v2765
    %v3155 = vadd.f32 %v2110, %v2767
    %v3156 = vadd.f32 %v2331, %v2988
    %v3157 = vadd.f32 %v2333, %v2990
    %v3158 = vadd.f32 %v2112, %v2769
    %v3159 = vadd.f32 %v2114, %v2771
    %v3160 = vadd.f32 %v2335, %v2992
    %v3161 = vadd.f32 %v2337, %v2994
    %v3162 = vadd.f32 %v2118, %v2775
    %v3163 = vadd.f32 %v2120, %v2777
    %v3164 = vadd.f32 %v2341, %v2998
    %v3165 = vadd.f32 %v2343, %v3000
    %v3166 = vadd.f32 %v2122, %v2779
    %v3167 = vadd.f32 %v2124, %v2781
    %v3168 = vadd.f32 %v2345, %v3002
    %v3169 = vadd.f32 %v2347, %v3004
    %v3170 = vadd.f32 %v2128, %v2785
    %v3171 = vadd.f32 %v2130, %v2787
    %v3172 = vadd.f32 %v2351, %v3008
    %v3173 = vadd.f32 %v2353, %v3010
    %v3174 = vadd.f32 %v2132, %v2789
    %v3175 = vadd.f32 %v2134, %v2791
    %v3176 = vadd.f32 %v2355, %v3012
    %v3177 = vadd.f32 %v2357, %v3014
    %v3178 = vadd.f32 %v2138, %v2795
    %v3179 = vadd.f32 %v2140, %v2797
    %v3180 = vadd.f32 %v2361, %v3018
    %v3181 = vadd.f32 %v2363, %v3020
    %v3182 = vadd.f32 %v2142, %v2799
    %v3183 = vadd.f32 %v2144, %v2801
    %v3184 = vadd.f32 %v2365, %v3022
    %v3185 = vadd.f32 %v2367, %v3024
    %v3186 = vadd.f32 %v2148, %v2805
    %v3187 = vadd.f32 %v2150, %v2807
    %v3188 = vadd.f32 %v2371, %v3028
    %v3189 = vadd.f32 %v2373, %v3030
    %v3190 = vadd.f32 %v2152, %v2809
    %v3191 = vadd.f32 %v2154, %v2811
    %v3192 = vadd.f32 %v2375, %v3032
    %v3193 = vadd.f32 %v2377, %v3034
    %v3194 = vadd.f32 %v2158, %v2815
    %v3195 = vadd.f32 %v2160, %v2817
    %v3196 = vadd.f32 %v2381, %v3038
    %v3197 = vadd.f32 %v2383, %v3040
    %v3198 = vadd.f32 %v2162, %v2819
    %v3199 = vadd.f32 %v2164, %v2821
    %v3200 = vadd.f32 %v2385, %v3042
    %v3201 = vadd.f32 %v2387, %v3044
    %v3202 = vadd.f32 %v2168, %v2825
    %v3203 = vadd.f32 %v2170, %v2827
    %v3204 = vadd.f32 %v2391, %v3048
    %v3205 = vadd.f32 %v2393, %v3050
    %v3206 = vadd.f32 %v2172, %v2829
    %v3207 = vadd.f32 %v2174, %v2831
    %v3208 = vadd.f32 %v2395, %v3052
    %v3209 = vadd.f32 %v2397, %v3054
    %v3210 = vadd.f32 %v2178, %v2835
    %v3211 = vadd.f32 %v2180, %v2837
    %v3212 = vadd.f32 %v2401, %v3058
    %v3213 = vadd.f32 %v2403, %v3060
    %v3214 = vadd.f32 %v2182, %v2839
    %v3215 = vadd.f32 %v2184, %v2841
    %v3216 = vadd.f32 %v2405, %v3062
    %v3217 = vadd.f32 %v2407, %v3064
    %v3218 = vld [vmem:[#allocation9] sm:$0xf]
    %v3220 = vlaneseq
    %v3221 = vshrl.u32 %v3220, 7
    %v3222 = vsub.s32 0, %v3221
    %v3223 = vrot.slane %v3218, %v3222
    %v3224 = vlaneseq
    %v3225 = vshrl.u32 %v3224, 7
    %v3226 = vsub.s32 1, %v3225
    %v3227 = vrot.slane %v3218, %v3226
    %v3228 = vlaneseq
    %v3229 = vshrl.u32 %v3228, 7
    %v3230 = vsub.s32 2, %v3229
    %v3231 = vrot.slane %v3218, %v3230
    %v3232 = vlaneseq
    %v3233 = vshrl.u32 %v3232, 7
    %v3234 = vsub.s32 3, %v3233
    %v3235 = vrot.slane %v3218, %v3234
    %v3240 = vadd.f32 %v3066, %v3223
    %v3241 = vadd.f32 %v3067, %v3227
    %v3242 = vadd.f32 %v3068, %v3231
    %v3243 = vadd.f32 %v3069, %v3235
    %v3244 = vadd.f32 %v3070, %v3223
    %v3245 = vadd.f32 %v3071, %v3227
    %v3246 = vadd.f32 %v3072, %v3231
    %v3247 = vadd.f32 %v3073, %v3235
    %v3248 = vadd.f32 %v3074, %v3223
    %v3249 = vadd.f32 %v3075, %v3227
    %v3250 = vadd.f32 %v3076, %v3231
    %v3251 = vadd.f32 %v3077, %v3235
    %v3252 = vadd.f32 %v3078, %v3223
    %v3253 = vadd.f32 %v3079, %v3227
    %v3254 = vadd.f32 %v3080, %v3231
    %v3255 = vadd.f32 %v3081, %v3235
    %v3256 = vadd.f32 %v3082, %v3223
    %v3257 = vadd.f32 %v3083, %v3227
    %v3258 = vadd.f32 %v3084, %v3231
    %v3259 = vadd.f32 %v3085, %v3235
    %v3260 = vadd.f32 %v3086, %v3223
    %v3261 = vadd.f32 %v3087, %v3227
    %v3262 = vadd.f32 %v3088, %v3231
    %v3263 = vadd.f32 %v3089, %v3235
    %v3264 = vadd.f32 %v3090, %v3223
    %v3265 = vadd.f32 %v3091, %v3227
    %v3266 = vadd.f32 %v3092, %v3231
    %v3267 = vadd.f32 %v3093, %v3235
    %v3268 = vadd.f32 %v3094, %v3223
    %v3269 = vadd.f32 %v3095, %v3227
    %v3270 = vadd.f32 %v3096, %v3231
    %v3271 = vadd.f32 %v3097, %v3235
    %v3272 = vadd.f32 %v3098, %v3223
    %v3273 = vadd.f32 %v3099, %v3227
    %v3274 = vadd.f32 %v3100, %v3231
    %v3275 = vadd.f32 %v3101, %v3235
    %v3276 = vadd.f32 %v3102, %v3223
    %v3277 = vadd.f32 %v3103, %v3227
    %v3278 = vadd.f32 %v3104, %v3231
    %v3279 = vadd.f32 %v3105, %v3235
    %v3280 = vadd.f32 %v3106, %v3223
    %v3281 = vadd.f32 %v3107, %v3227
    %v3282 = vadd.f32 %v3108, %v3231
    %v3283 = vadd.f32 %v3109, %v3235
    %v3284 = vadd.f32 %v3110, %v3223
    %v3285 = vadd.f32 %v3111, %v3227
    %v3286 = vadd.f32 %v3112, %v3231
    %v3287 = vadd.f32 %v3113, %v3235
    %v3288 = vadd.f32 %v3114, %v3223
    %v3289 = vadd.f32 %v3115, %v3227
    %v3290 = vadd.f32 %v3116, %v3231
    %v3291 = vadd.f32 %v3117, %v3235
    %v3292 = vadd.f32 %v3118, %v3223
    %v3293 = vadd.f32 %v3119, %v3227
    %v3294 = vadd.f32 %v3120, %v3231
    %v3295 = vadd.f32 %v3121, %v3235
    %v3296 = vadd.f32 %v3122, %v3223
    %v3297 = vadd.f32 %v3123, %v3227
    %v3298 = vadd.f32 %v3124, %v3231
    %v3299 = vadd.f32 %v3125, %v3235
    %v3300 = vadd.f32 %v3126, %v3223
    %v3301 = vadd.f32 %v3127, %v3227
    %v3302 = vadd.f32 %v3128, %v3231
    %v3303 = vadd.f32 %v3129, %v3235
    %v3304 = vadd.f32 %v3130, %v3223
    %v3305 = vadd.f32 %v3131, %v3227
    %v3306 = vadd.f32 %v3132, %v3231
    %v3307 = vadd.f32 %v3133, %v3235
    %v3308 = vadd.f32 %v3134, %v3223
    %v3309 = vadd.f32 %v3135, %v3227
    %v3310 = vadd.f32 %v3136, %v3231
    %v3311 = vadd.f32 %v3137, %v3235
    %v3312 = vadd.f32 %v3138, %v3223
    %v3313 = vadd.f32 %v3139, %v3227
    %v3314 = vadd.f32 %v3140, %v3231
    %v3315 = vadd.f32 %v3141, %v3235
    %v3316 = vadd.f32 %v3142, %v3223
    %v3317 = vadd.f32 %v3143, %v3227
    %v3318 = vadd.f32 %v3144, %v3231
    %v3319 = vadd.f32 %v3145, %v3235
    %v3320 = vadd.f32 %v3146, %v3223
    %v3321 = vadd.f32 %v3147, %v3227
    %v3322 = vadd.f32 %v3148, %v3231
    %v3323 = vadd.f32 %v3149, %v3235
    %v3324 = vadd.f32 %v3150, %v3223
    %v3325 = vadd.f32 %v3151, %v3227
    %v3326 = vadd.f32 %v3152, %v3231
    %v3327 = vadd.f32 %v3153, %v3235
    %v3328 = vadd.f32 %v3154, %v3223
    %v3329 = vadd.f32 %v3155, %v3227
    %v3330 = vadd.f32 %v3156, %v3231
    %v3331 = vadd.f32 %v3157, %v3235
    %v3332 = vadd.f32 %v3158, %v3223
    %v3333 = vadd.f32 %v3159, %v3227
    %v3334 = vadd.f32 %v3160, %v3231
    %v3335 = vadd.f32 %v3161, %v3235
    %v3336 = vadd.f32 %v3162, %v3223
    %v3337 = vadd.f32 %v3163, %v3227
    %v3338 = vadd.f32 %v3164, %v3231
    %v3339 = vadd.f32 %v3165, %v3235
    %v3340 = vadd.f32 %v3166, %v3223
    %v3341 = vadd.f32 %v3167, %v3227
    %v3342 = vadd.f32 %v3168, %v3231
    %v3343 = vadd.f32 %v3169, %v3235
    %v3344 = vadd.f32 %v3170, %v3223
    %v3345 = vadd.f32 %v3171, %v3227
    %v3346 = vadd.f32 %v3172, %v3231
    %v3347 = vadd.f32 %v3173, %v3235
    %v3348 = vadd.f32 %v3174, %v3223
    %v3349 = vadd.f32 %v3175, %v3227
    %v3350 = vadd.f32 %v3176, %v3231
    %v3351 = vadd.f32 %v3177, %v3235
    %v3352 = vadd.f32 %v3178, %v3223
    %v3353 = vadd.f32 %v3179, %v3227
    %v3354 = vadd.f32 %v3180, %v3231
    %v3355 = vadd.f32 %v3181, %v3235
    %v3356 = vadd.f32 %v3182, %v3223
    %v3357 = vadd.f32 %v3183, %v3227
    %v3358 = vadd.f32 %v3184, %v3231
    %v3359 = vadd.f32 %v3185, %v3235
    %v3360 = vadd.f32 %v3186, %v3223
    %v3361 = vadd.f32 %v3187, %v3227
    %v3362 = vadd.f32 %v3188, %v3231
    %v3363 = vadd.f32 %v3189, %v3235
    %v3364 = vadd.f32 %v3190, %v3223
    %v3365 = vadd.f32 %v3191, %v3227
    %v3366 = vadd.f32 %v3192, %v3231
    %v3367 = vadd.f32 %v3193, %v3235
    %v3368 = vadd.f32 %v3194, %v3223
    %v3369 = vadd.f32 %v3195, %v3227
    %v3370 = vadd.f32 %v3196, %v3231
    %v3371 = vadd.f32 %v3197, %v3235
    %v3372 = vadd.f32 %v3198, %v3223
    %v3373 = vadd.f32 %v3199, %v3227
    %v3374 = vadd.f32 %v3200, %v3231
    %v3375 = vadd.f32 %v3201, %v3235
    %v3376 = vadd.f32 %v3202, %v3223
    %v3377 = vadd.f32 %v3203, %v3227
    %v3378 = vadd.f32 %v3204, %v3231
    %v3379 = vadd.f32 %v3205, %v3235
    %v3380 = vadd.f32 %v3206, %v3223
    %v3381 = vadd.f32 %v3207, %v3227
    %v3382 = vadd.f32 %v3208, %v3231
    %v3383 = vadd.f32 %v3209, %v3235
    %v3384 = vadd.f32 %v3210, %v3223
    %v3385 = vadd.f32 %v3211, %v3227
    %v3386 = vadd.f32 %v3212, %v3231
    %v3387 = vadd.f32 %v3213, %v3235
    %v3388 = vadd.f32 %v3214, %v3223
    %v3389 = vadd.f32 %v3215, %v3227
    %v3390 = vadd.f32 %v3216, %v3231
    %v3391 = vadd.f32 %v3217, %v3235
    %v3392 = vld [vmem:[#allocation2] sm:$0xf]
    %v3393 = vmax.f32 %v3240, %v3244
    %v3394 = vmax.f32 %v3393, %v3248
    %v3395 = vmax.f32 %v3394, %v3252
    %v3396 = vmax.f32 %v3395, %v3256
    %v3397 = vmax.f32 %v3396, %v3260
    %v3398 = vmax.f32 %v3397, %v3264
    %v3399 = vmax.f32 %v3398, %v3268
    %v3400 = vmax.f32 %v3399, %v3272
    %v3401 = vmax.f32 %v3400, %v3276
    %v3402 = vmax.f32 %v3401, %v3280
    %v3403 = vmax.f32 %v3402, %v3284
    %v3404 = vmax.f32 %v3403, %v3288
    %v3405 = vmax.f32 %v3404, %v3292
    %v3406 = vmax.f32 %v3405, %v3296
    %v3407 = vmax.f32 %v3406, %v3300
    %v3408 = vmax.f32 %v3407, %v3304
    %v3409 = vmax.f32 %v3408, %v3308
    %v3410 = vmax.f32 %v3409, %v3312
    %v3411 = vmax.f32 %v3410, %v3316
    %v3412 = vmax.f32 %v3411, %v3320
    %v3413 = vmax.f32 %v3412, %v3324
    %v3414 = vmax.f32 %v3413, %v3328
    %v3415 = vmax.f32 %v3414, %v3332
    %v3416 = vmax.f32 %v3415, %v3336
    %v3417 = vmax.f32 %v3416, %v3340
    %v3418 = vmax.f32 %v3417, %v3344
    %v3419 = vmax.f32 %v3418, %v3348
    %v3420 = vmax.f32 %v3419, %v3352
    %v3421 = vmax.f32 %v3420, %v3356
    %v3422 = vmax.f32 %v3421, %v3360
    %v3423 = vmax.f32 %v3422, %v3364
    %v3424 = vmax.f32 %v3423, %v3368
    %v3425 = vmax.f32 %v3424, %v3372
    %v3426 = vmax.f32 %v3425, %v3376
    %v3427 = vmax.f32 %v3426, %v3380
    %v3428 = vmax.f32 %v3427, %v3384
    %v3429 = vmax.f32 %v3428, %v3388
    %v3430 = vrot.slane %v3429, 4
    %v3431 = vmax.f32 %v3429, %v3430
    %v3432 = vrot.slane %v3431, 2
    %v3433 = vmax.f32 %v3431, %v3432
    %v3434 = vrot.slane %v3433, 1
    %v3435 = vmax.f32 %v3433, %v3434
    %v3436 = vmax.f32 %v3241, %v3245
    %v3437 = vmax.f32 %v3436, %v3249
    %v3438 = vmax.f32 %v3437, %v3253
    %v3439 = vmax.f32 %v3438, %v3257
    %v3440 = vmax.f32 %v3439, %v3261
    %v3441 = vmax.f32 %v3440, %v3265
    %v3442 = vmax.f32 %v3441, %v3269
    %v3443 = vmax.f32 %v3442, %v3273
    %v3444 = vmax.f32 %v3443, %v3277
    %v3445 = vmax.f32 %v3444, %v3281
    %v3446 = vmax.f32 %v3445, %v3285
    %v3447 = vmax.f32 %v3446, %v3289
    %v3448 = vmax.f32 %v3447, %v3293
    %v3449 = vmax.f32 %v3448, %v3297
    %v3450 = vmax.f32 %v3449, %v3301
    %v3451 = vmax.f32 %v3450, %v3305
    %v3452 = vmax.f32 %v3451, %v3309
    %v3453 = vmax.f32 %v3452, %v3313
    %v3454 = vmax.f32 %v3453, %v3317
    %v3455 = vmax.f32 %v3454, %v3321
    %v3456 = vmax.f32 %v3455, %v3325
    %v3457 = vmax.f32 %v3456, %v3329
    %v3458 = vmax.f32 %v3457, %v3333
    %v3459 = vmax.f32 %v3458, %v3337
    %v3460 = vmax.f32 %v3459, %v3341
    %v3461 = vmax.f32 %v3460, %v3345
    %v3462 = vmax.f32 %v3461, %v3349
    %v3463 = vmax.f32 %v3462, %v3353
    %v3464 = vmax.f32 %v3463, %v3357
    %v3465 = vmax.f32 %v3464, %v3361
    %v3466 = vmax.f32 %v3465, %v3365
    %v3467 = vmax.f32 %v3466, %v3369
    %v3468 = vmax.f32 %v3467, %v3373
    %v3469 = vmax.f32 %v3468, %v3377
    %v3470 = vmax.f32 %v3469, %v3381
    %v3471 = vmax.f32 %v3470, %v3385
    %v3472 = vmax.f32 %v3471, %v3389
    %v3473 = vrot.slane %v3472, 4
    %v3474 = vmax.f32 %v3472, %v3473
    %v3475 = vrot.slane %v3474, 2
    %v3476 = vmax.f32 %v3474, %v3475
    %v3477 = vrot.slane %v3476, 1
    %v3478 = vmax.f32 %v3476, %v3477
    %v3479 = vmax.f32 %v3242, %v3246
    %v3480 = vmax.f32 %v3479, %v3250
    %v3481 = vmax.f32 %v3480, %v3254
    %v3482 = vmax.f32 %v3481, %v3258
    %v3483 = vmax.f32 %v3482, %v3262
    %v3484 = vmax.f32 %v3483, %v3266
    %v3485 = vmax.f32 %v3484, %v3270
    %v3486 = vmax.f32 %v3485, %v3274
    %v3487 = vmax.f32 %v3486, %v3278
    %v3488 = vmax.f32 %v3487, %v3282
    %v3489 = vmax.f32 %v3488, %v3286
    %v3490 = vmax.f32 %v3489, %v3290
    %v3491 = vmax.f32 %v3490, %v3294
    %v3492 = vmax.f32 %v3491, %v3298
    %v3493 = vmax.f32 %v3492, %v3302
    %v3494 = vmax.f32 %v3493, %v3306
    %v3495 = vmax.f32 %v3494, %v3310
    %v3496 = vmax.f32 %v3495, %v3314
    %v3497 = vmax.f32 %v3496, %v3318
    %v3498 = vmax.f32 %v3497, %v3322
    %v3499 = vmax.f32 %v3498, %v3326
    %v3500 = vmax.f32 %v3499, %v3330
    %v3501 = vmax.f32 %v3500, %v3334
    %v3502 = vmax.f32 %v3501, %v3338
    %v3503 = vmax.f32 %v3502, %v3342
    %v3504 = vmax.f32 %v3503, %v3346
    %v3505 = vmax.f32 %v3504, %v3350
    %v3506 = vmax.f32 %v3505, %v3354
    %v3507 = vmax.f32 %v3506, %v3358
    %v3508 = vmax.f32 %v3507, %v3362
    %v3509 = vmax.f32 %v3508, %v3366
    %v3510 = vmax.f32 %v3509, %v3370
    %v3511 = vmax.f32 %v3510, %v3374
    %v3512 = vmax.f32 %v3511, %v3378
    %v3513 = vmax.f32 %v3512, %v3382
    %v3514 = vmax.f32 %v3513, %v3386
    %v3515 = vmax.f32 %v3514, %v3390
    %v3516 = vrot.slane %v3515, 4
    %v3517 = vmax.f32 %v3515, %v3516
    %v3518 = vrot.slane %v3517, 2
    %v3519 = vmax.f32 %v3517, %v3518
    %v3520 = vrot.slane %v3519, 1
    %v3521 = vmax.f32 %v3519, %v3520
    %v3522 = vsel %vm1016, %v3243, -inf
    %v3523 = vsel %vm1016, %v3247, -inf
    %v3524 = vmax.f32 %v3522, %v3523
    %v3525 = vsel %vm1016, %v3251, -inf
    %v3526 = vmax.f32 %v3524, %v3525
    %v3527 = vsel %vm1016, %v3255, -inf
    %v3528 = vmax.f32 %v3526, %v3527
    %v3529 = vsel %vm1016, %v3259, -inf
    %v3530 = vmax.f32 %v3528, %v3529
    %v3531 = vsel %vm1016, %v3263, -inf
    %v3532 = vmax.f32 %v3530, %v3531
    %v3533 = vsel %vm1016, %v3267, -inf
    %v3534 = vmax.f32 %v3532, %v3533
    %v3535 = vsel %vm1016, %v3271, -inf
    %v3536 = vmax.f32 %v3534, %v3535
    %v3537 = vsel %vm1016, %v3275, -inf
    %v3538 = vmax.f32 %v3536, %v3537
    %v3539 = vsel %vm1016, %v3279, -inf
    %v3540 = vmax.f32 %v3538, %v3539
    %v3541 = vsel %vm1016, %v3283, -inf
    %v3542 = vmax.f32 %v3540, %v3541
    %v3543 = vsel %vm1016, %v3287, -inf
    %v3544 = vmax.f32 %v3542, %v3543
    %v3545 = vsel %vm1016, %v3291, -inf
    %v3546 = vmax.f32 %v3544, %v3545
    %v3547 = vsel %vm1016, %v3295, -inf
    %v3548 = vmax.f32 %v3546, %v3547
    %v3549 = vsel %vm1016, %v3299, -inf
    %v3550 = vmax.f32 %v3548, %v3549
    %v3551 = vsel %vm1016, %v3303, -inf
    %v3552 = vmax.f32 %v3550, %v3551
    %v3553 = vsel %vm1016, %v3307, -inf
    %v3554 = vmax.f32 %v3552, %v3553
    %v3555 = vsel %vm1016, %v3311, -inf
    %v3556 = vmax.f32 %v3554, %v3555
    %v3557 = vsel %vm1016, %v3315, -inf
    %v3558 = vmax.f32 %v3556, %v3557
    %v3559 = vsel %vm1016, %v3319, -inf
    %v3560 = vmax.f32 %v3558, %v3559
    %v3561 = vsel %vm1016, %v3323, -inf
    %v3562 = vmax.f32 %v3560, %v3561
    %v3563 = vsel %vm1016, %v3327, -inf
    %v3564 = vmax.f32 %v3562, %v3563
    %v3565 = vsel %vm1016, %v3331, -inf
    %v3566 = vmax.f32 %v3564, %v3565
    %v3567 = vsel %vm1016, %v3335, -inf
    %v3568 = vmax.f32 %v3566, %v3567
    %v3569 = vsel %vm1016, %v3339, -inf
    %v3570 = vmax.f32 %v3568, %v3569
    %v3571 = vsel %vm1016, %v3343, -inf
    %v3572 = vmax.f32 %v3570, %v3571
    %v3573 = vsel %vm1016, %v3347, -inf
    %v3574 = vmax.f32 %v3572, %v3573
    %v3575 = vsel %vm1016, %v3351, -inf
    %v3576 = vmax.f32 %v3574, %v3575
    %v3577 = vsel %vm1016, %v3355, -inf
    %v3578 = vmax.f32 %v3576, %v3577
    %v3579 = vsel %vm1016, %v3359, -inf
    %v3580 = vmax.f32 %v3578, %v3579
    %v3581 = vsel %vm1016, %v3363, -inf
    %v3582 = vmax.f32 %v3580, %v3581
    %v3583 = vsel %vm1016, %v3367, -inf
    %v3584 = vmax.f32 %v3582, %v3583
    %v3585 = vsel %vm1016, %v3371, -inf
    %v3586 = vmax.f32 %v3584, %v3585
    %v3587 = vsel %vm1016, %v3375, -inf
    %v3588 = vmax.f32 %v3586, %v3587
    %v3589 = vsel %vm1016, %v3379, -inf
    %v3590 = vmax.f32 %v3588, %v3589
    %v3591 = vsel %vm1016, %v3383, -inf
    %v3592 = vmax.f32 %v3590, %v3591
    %v3593 = vsel %vm1016, %v3387, -inf
    %v3594 = vmax.f32 %v3592, %v3593
    %v3595 = vsel %vm1016, %v3391, -inf
    %v3596 = vmax.f32 %v3594, %v3595
    %v3597 = vrot.slane %v3596, 4
    %v3598 = vmax.f32 %v3596, %v3597
    %v3599 = vrot.slane %v3598, 2
    %v3600 = vmax.f32 %v3598, %v3599
    %v3601 = vrot.slane %v3600, 1
    %v3602 = vmax.f32 %v3600, %v3601
    %v3607 = vcombine.low %v3435, %v3478
    %v3608 = vcombine.low %v3521, %v3602
    %v3610 = vunpack.c.l.s4 1966171168
    %v3611 = vunpack.c.0.s8 %v3610
    %v3612 = vlaneseq
    %v3613 = vshrl.u32 %v3612, 7
    %v3614 = vsub.s32 %v3611, %v3613
    %v3615 = vrot.slane %v3607, %v3614
    %v3617 = vunpack.c.l.s4 1966171168
    %v3618 = vunpack.c.0.s8 %v3617
    %v3619 = vlaneseq
    %v3620 = vshrl.u32 %v3619, 7
    %v3621 = vsub.s32 %v3618, %v3620
    %v3622 = vrot.slane %v3608, %v3621
    %v3623 = vcombine.low %v3615, %v3622
    %v3625 = vunpack.c.l.s4 1966171168
    %v3626 = vunpack.c.0.s8 %v3625
    %v3627 = vlaneseq
    %v3628 = vshrl.u32 %v3627, 7
    %v3629 = vsub.s32 %v3626, %v3628
    %v3630 = vrot.slane %v3623, %v3629
    %v3632 = vmax.f32 %v3392, %v3630
    %v3633 = vlaneseq
    %vm3634 = vcmp.ge.s32.totalorder %v3633, 0
    %vm3635 = vcmp.lt.s32.totalorder %v3633, 448
    %vm3636 = vmand %vm3634, %vm3635
    %3637 = vst.msk [vmem:[#allocation2] sm:$0xf] %vm3636, %v3632
    // Predicated region
    $region90: #{tpu_custom_call.1} parent=1 // pred_check
      %p3638 = pneg %p124
    $region91: #{tpu_custom_call.1} parent=1 // pred_check_branch
      %3640 = sbr.rel (%p3638) target = $region93
    $region92: #{tpu_custom_call.1} parent=1 // pred_region
      %v3641 = vld [vmem:[#allocation2] sm:$0xf]
      %v3642 = vld [vmem:[%s11] sm:$0xff]
      %v3643 = vld [vmem:[%s11 + $0x8] sm:$0xff]
      %v3644 = vld [vmem:[%s11 + $0x10] sm:$0xff]
      %v3645 = vld [vmem:[%s11 + $0x18] sm:$0xff]
      %v3646 = vld [vmem:[%s11 + $0x20] sm:$0xff]
      %v3647 = vld [vmem:[%s11 + $0x28] sm:$0xff]
      %v3648 = vld [vmem:[%s11 + $0x30] sm:$0xff]
      %v3649 = vld [vmem:[%s11 + $0x38] sm:$0xff]
      %v3650 = vld [vmem:[%s11 + $0x40] sm:$0xff]
      %v3651 = vld [vmem:[%s11 + $0x48] sm:$0xff]
      %v3652 = vld [vmem:[%s11 + $0x50] sm:$0xff]
      %v3653 = vld [vmem:[%s11 + $0x58] sm:$0xff]
      %v3654 = vld [vmem:[%s11 + $0x60] sm:$0xff]
      %v3655 = vld [vmem:[%s11 + $0x68] sm:$0xff]
      %v3656 = vld [vmem:[%s11 + $0x70] sm:$0xff]
      %v3657 = vld [vmem:[%s11 + $0x78] sm:$0xff]
      %v3658 = vld [vmem:[%s11 + $0x80] sm:$0xff]
      %v3659 = vld [vmem:[%s11 + $0x88] sm:$0xff]
      %v3660 = vld [vmem:[%s11 + $0x90] sm:$0xff]
      %v3661 = vld [vmem:[%s11 + $0x98] sm:$0xff]
      %v3662 = vld [vmem:[%s11 + $0xa0] sm:$0xff]
      %v3663 = vld [vmem:[%s11 + $0xa8] sm:$0xff]
      %v3664 = vld [vmem:[%s11 + $0xb0] sm:$0xff]
      %v3665 = vld [vmem:[%s11 + $0xb8] sm:$0xff]
      %v3666 = vld [vmem:[%s11 + $0xc0] sm:$0xff]
      %v3667 = vld [vmem:[%s11 + $0xc8] sm:$0xff]
      %v3668 = vld [vmem:[%s11 + $0xd0] sm:$0xff]
      %v3669 = vld [vmem:[%s11 + $0xd8] sm:$0xff]
      %v3670 = vld [vmem:[%s11 + $0xe0] sm:$0xff]
      %v3671 = vld [vmem:[%s11 + $0xe8] sm:$0xff]
      %v3672 = vld [vmem:[%s11 + $0xf0] sm:$0xff]
      %v3673 = vld [vmem:[%s11 + $0xf8] sm:$0xff]
      %v3674 = vld [vmem:[%s11 + $0x100] sm:$0xff]
      %v3675 = vld [vmem:[%s11 + $0x108] sm:$0xff]
      %v3676 = vld [vmem:[%s11 + $0x110] sm:$0xff]
      %v3677 = vld [vmem:[%s11 + $0x118] sm:$0xff]
      %v3678 = vld [vmem:[%s11 + $0x120] sm:$0xff]
      %v3679 = vld [vmem:[%s11 + $0x128] sm:$0xff]
      %v3680 = vld [vmem:[%s11 + $0x130] sm:$0xff]
      %v3681 = vld [vmem:[%s11 + $0x138] sm:$0xff]
      %v3682 = vld [vmem:[%s11 + $0x140] sm:$0xff]
      %v3683 = vld [vmem:[%s11 + $0x148] sm:$0xff]
      %v3684 = vld [vmem:[%s11 + $0x150] sm:$0xff]
      %v3685 = vld [vmem:[%s11 + $0x158] sm:$0xff]
      %v3686 = vld [vmem:[%s11 + $0x160] sm:$0xff]
      %v3687 = vld [vmem:[%s11 + $0x168] sm:$0xff]
      %v3688 = vld [vmem:[%s11 + $0x170] sm:$0xff]
      %v3689 = vld [vmem:[%s11 + $0x178] sm:$0xff]
      %v3690 = vld [vmem:[%s11 + $0x180] sm:$0xff]
      %v3691 = vld [vmem:[%s11 + $0x188] sm:$0xff]
      %v3692 = vld [vmem:[%s11 + $0x190] sm:$0xff]
      %v3693 = vld [vmem:[%s11 + $0x198] sm:$0xff]
      %v3694 = vld [vmem:[%s11 + $0x1a0] sm:$0xff]
      %v3695 = vld [vmem:[%s11 + $0x1a8] sm:$0xff]
      %v3696 = vld [vmem:[%s11 + $0x1b0] sm:$0xff]
      %v3697 = vld [vmem:[%s11 + $0x1b8] sm:$0xff]
      %v3698 = vld [vmem:[%s11 + $0x1c0] sm:$0xff]
      %v3699 = vld [vmem:[%s11 + $0x1c8] sm:$0xff]
      %v3700 = vld [vmem:[%s11 + $0x1d0] sm:$0xff]
      %v3701 = vld [vmem:[%s11 + $0x1d8] sm:$0xff]
      %v3702 = vld [vmem:[%s11 + $0x1e0] sm:$0xff]
      %v3703 = vld [vmem:[%s11 + $0x1e8] sm:$0xff]
      %v3704 = vld [vmem:[%s11 + $0x1f0] sm:$0xff]
      %v3705 = vld [vmem:[%s11 + $0x1f8] sm:$0xff]
      %v3706 = vld [vmem:[%s11 + $0x200] sm:$0xff]
      %v3707 = vld [vmem:[%s11 + $0x208] sm:$0xff]
      %v3708 = vld [vmem:[%s11 + $0x210] sm:$0xff]
      %v3709 = vld [vmem:[%s11 + $0x218] sm:$0xff]
      %v3710 = vld [vmem:[%s11 + $0x220] sm:$0xff]
      %v3711 = vld [vmem:[%s11 + $0x228] sm:$0xff]
      %v3712 = vld [vmem:[%s11 + $0x230] sm:$0xff]
      %v3713 = vld [vmem:[%s11 + $0x238] sm:$0xff]
      %v3714 = vld [vmem:[%s11 + $0x240] sm:$0xff]
      %v3715 = vld [vmem:[%s11 + $0x248] sm:$0xff]
      %v3716 = vld [vmem:[%s11 + $0x250] sm:$0xff]
      %v3717 = vld [vmem:[%s11 + $0x258] sm:$0xff]
      %v3718 = vld [vmem:[%s11 + $0x260] sm:$0xff]
      %v3719 = vld [vmem:[%s11 + $0x268] sm:$0xff]
      %v3720 = vld [vmem:[%s11 + $0x270] sm:$0xff]
      %v3721 = vld [vmem:[%s11 + $0x278] sm:$0xff]
      %v3722 = vld [vmem:[%s11 + $0x280] sm:$0xff]
      %v3723 = vld [vmem:[%s11 + $0x288] sm:$0xff]
      %v3724 = vld [vmem:[%s11 + $0x290] sm:$0xff]
      %v3725 = vld [vmem:[%s11 + $0x298] sm:$0xff]
      %v3726 = vld [vmem:[%s11 + $0x2a0] sm:$0xff]
      %v3727 = vld [vmem:[%s11 + $0x2a8] sm:$0xff]
      %v3728 = vld [vmem:[%s11 + $0x2b0] sm:$0xff]
      %v3729 = vld [vmem:[%s11 + $0x2b8] sm:$0xff]
      %v3730 = vld [vmem:[%s11 + $0x2c0] sm:$0xff]
      %v3731 = vld [vmem:[%s11 + $0x2c8] sm:$0xff]
      %v3732 = vld [vmem:[%s11 + $0x2d0] sm:$0xff]
      %v3733 = vld [vmem:[%s11 + $0x2d8] sm:$0xff]
      %v3734 = vld [vmem:[%s11 + $0x2e0] sm:$0xff]
      %v3735 = vld [vmem:[%s11 + $0x2e8] sm:$0xff]
      %v3736 = vld [vmem:[%s11 + $0x2f0] sm:$0xff]
      %v3737 = vld [vmem:[%s11 + $0x2f8] sm:$0xff]
      %v3738 = vld [vmem:[%s11 + $0x300] sm:$0xff]
      %v3739 = vld [vmem:[%s11 + $0x308] sm:$0xff]
      %v3740 = vld [vmem:[%s11 + $0x310] sm:$0xff]
      %v3741 = vld [vmem:[%s11 + $0x318] sm:$0xff]
      %v3742 = vld [vmem:[%s11 + $0x320] sm:$0xff]
      %v3743 = vld [vmem:[%s11 + $0x328] sm:$0xff]
      %v3744 = vld [vmem:[%s11 + $0x330] sm:$0xff]
      %v3745 = vld [vmem:[%s11 + $0x338] sm:$0xff]
      %v3746 = vld [vmem:[%s11 + $0x340] sm:$0xff]
      %v3747 = vld [vmem:[%s11 + $0x348] sm:$0xff]
      %v3748 = vld [vmem:[%s11 + $0x350] sm:$0xff]
      %v3749 = vld [vmem:[%s11 + $0x358] sm:$0xff]
      %v3750 = vld [vmem:[%s11 + $0x360] sm:$0xff]
      %v3751 = vld [vmem:[%s11 + $0x368] sm:$0xff]
      %v3752 = vld [vmem:[%s11 + $0x370] sm:$0xff]
      %v3753 = vld [vmem:[%s11 + $0x378] sm:$0xff]
      %v3754 = vld [vmem:[#allocation11] sm:$0x3]
      %v3756 = vlaneseq
      %v3757 = vshrl.u32 %v3756, 7
      %v3758 = vsub.s32 0, %v3757
      %v3759 = vrot.slane %v3641, %v3758
      %v3760 = vlaneseq
      %v3761 = vshrl.u32 %v3760, 7
      %v3762 = vsub.s32 1, %v3761
      %v3763 = vrot.slane %v3641, %v3762
      %v3764 = vlaneseq
      %v3765 = vshrl.u32 %v3764, 7
      %v3766 = vsub.s32 2, %v3765
      %v3767 = vrot.slane %v3641, %v3766
      %v3768 = vlaneseq
      %v3769 = vshrl.u32 %v3768, 7
      %v3770 = vsub.s32 3, %v3769
      %v3771 = vrot.slane %v3641, %v3770
      %v3776 = vlaneseq
      %v3777 = vshrl.u32 %v3776, 7
      %v3778 = vsub.s32 0, %v3777
      %v3779 = vrot.slane %v3754, %v3778
      %v3780 = vlaneseq
      %v3781 = vshrl.u32 %v3780, 7
      %v3782 = vsub.s32 1, %v3781
      %v3783 = vrot.slane %v3754, %v3782
      %v3786 = vsel %vm1016, %v3771, 0
      %3788 = vmatprep.subr.mxu0 %v3643
      %3789 = vmatpush1.msra.mxu0 %v3642
      %3790 = vmatprep.subr.mxu0 %v3645
      %3791 = vmatpush1.msra.mxu0 %v3644
      %3792 = vmatprep.subr.mxu0 %v3647
      %3793 = vmatpush1.msra.mxu0 %v3646
      %3794 = vmatprep.subr.mxu0 %v3649
      %3795 = vmatpush1.msra.mxu0 %v3648
      %3796 = vmatprep.subr.mxu0 %v3651
      %3797 = vmatpush1.msra.mxu0 %v3650
      %3798 = vmatprep.subr.mxu0 %v3653
      %3799 = vmatpush1.msra.mxu0 %v3652
      %3800 = vmatprep.subr.mxu0 %v3655
      %3801 = vmatpush1.msra.mxu0 %v3654
      %3802 = vmatprep.subr.mxu0 %v3657
      %3803 = vmatpush1.msra.mxu0 %v3656
      %3804 = vmatprep.subr.mxu0 %v3659
      %3805 = vmatpush1.msra.mxu0 %v3658
      %3806 = vmatprep.subr.mxu0 %v3661
      %3807 = vmatpush1.msra.mxu0 %v3660
      %3808 = vmatprep.subr.mxu0 %v3663
      %3809 = vmatpush1.msra.mxu0 %v3662
      %3810 = vmatprep.subr.mxu0 %v3665
      %3811 = vmatpush1.msra.mxu0 %v3664
      %3812 = vmatprep.subr.mxu0 %v3667
      %3813 = vmatpush1.msra.mxu0 %v3666
      %3814 = vmatprep.subr.mxu0 %v3669
      %3815 = vmatpush1.msra.mxu0 %v3668
      %3816 = vmatprep.subr.mxu0 %v3671
      %3817 = vmatpush1.msra.mxu0 %v3670
      %3818 = vmatprep.subr.mxu0 %v3673
      %3819 = vmatpush1.msra.mxu0 %v3672
      %3820 = vmatprep.subr.mxu0 %v3675
      %3821 = vmatpush1.msra.mxu0 %v3674
      %3822 = vmatprep.subr.mxu0 %v3677
      %3823 = vmatpush1.msra.mxu0 %v3676
      %3824 = vmatprep.subr.mxu0 %v3679
      %3825 = vmatpush1.msra.mxu0 %v3678
      %3826 = vmatprep.subr.mxu0 %v3681
      %3827 = vmatpush1.msra.mxu0 %v3680
      %3828 = vmatprep.subr.mxu0 %v3683
      %3829 = vmatpush1.msra.mxu0 %v3682
      %3830 = vmatprep.subr.mxu0 %v3685
      %3831 = vmatpush1.msra.mxu0 %v3684
      %3832 = vmatprep.subr.mxu0 %v3687
      %3833 = vmatpush1.msra.mxu0 %v3686
      %3834 = vmatprep.subr.mxu0 %v3689
      %3835 = vmatpush1.msra.mxu0 %v3688
      %3836 = vmatprep.subr.mxu0 %v3691
      %3837 = vmatpush1.msra.mxu0 %v3690
      %3838 = vmatprep.subr.mxu0 %v3693
      %3839 = vmatpush1.msra.mxu0 %v3692
      %3840 = vmatprep.subr.mxu0 %v3695
      %3841 = vmatpush1.msra.mxu0 %v3694
      %3842 = vmatprep.subr.mxu0 %v3697
      %3843 = vmatpush1.msra.mxu0 %v3696
      %3844 = vmatprep.subr.mxu0 %v3699
      %3845 = vmatpush1.msra.mxu0 %v3698
      %3846 = vmatprep.subr.mxu0 %v3701
      %3847 = vmatpush1.msra.mxu0 %v3700
      %3848 = vmatprep.subr.mxu0 %v3703
      %3849 = vmatpush1.msra.mxu0 %v3702
      %3850 = vmatprep.subr.mxu0 %v3705
      %3851 = vmatpush1.msra.mxu0 %v3704
      %3852 = vmatprep.mubr.f32.mxu0 %v3763
      %3853 = vmatmul.mubr.f32.gmra.mrb[0].mxu0 %v3759
      %v3854 = vpop.f32.mrb[0].mxu0
      %v3855 = vadd.f32 %v3779, %v3854
      %v3856 = vpop.f32.mrb[0].mxu0
      %v3857 = vadd.f32 %v3783, %v3856
      %3858 = vdwg.mxu0
      %3859 = vmatprep.subr.mxu0 %v3707
      %3860 = vmatpush1.msra.mxu0 %v3706
      %3861 = vmatprep.subr.mxu0 %v3709
      %3862 = vmatpush1.msra.mxu0 %v3708
      %3863 = vmatprep.subr.mxu0 %v3711
      %3864 = vmatpush1.msra.mxu0 %v3710
      %3865 = vmatprep.subr.mxu0 %v3713
      %3866 = vmatpush1.msra.mxu0 %v3712
      %3867 = vmatprep.subr.mxu0 %v3715
      %3868 = vmatpush1.msra.mxu0 %v3714
      %3869 = vmatprep.subr.mxu0 %v3717
      %3870 = vmatpush1.msra.mxu0 %v3716
      %3871 = vmatprep.subr.mxu0 %v3719
      %3872 = vmatpush1.msra.mxu0 %v3718
      %3873 = vmatprep.subr.mxu0 %v3721
      %3874 = vmatpush1.msra.mxu0 %v3720
      %3875 = vmatprep.subr.mxu0 %v3723
      %3876 = vmatpush1.msra.mxu0 %v3722
      %3877 = vmatprep.subr.mxu0 %v3725
      %3878 = vmatpush1.msra.mxu0 %v3724
      %3879 = vmatprep.subr.mxu0 %v3727
      %3880 = vmatpush1.msra.mxu0 %v3726
      %3881 = vmatprep.subr.mxu0 %v3729
      %3882 = vmatpush1.msra.mxu0 %v3728
      %3883 = vmatprep.subr.mxu0 %v3731
      %3884 = vmatpush1.msra.mxu0 %v3730
      %3885 = vmatprep.subr.mxu0 %v3733
      %3886 = vmatpush1.msra.mxu0 %v3732
      %3887 = vmatprep.subr.mxu0 %v3735
      %3888 = vmatpush1.msra.mxu0 %v3734
      %3889 = vmatprep.subr.mxu0 %v3737
      %3890 = vmatpush1.msra.mxu0 %v3736
      %3891 = vmatprep.subr.mxu0 %v3739
      %3892 = vmatpush1.msra.mxu0 %v3738
      %3893 = vmatprep.subr.mxu0 %v3741
      %3894 = vmatpush1.msra.mxu0 %v3740
      %3895 = vmatprep.subr.mxu0 %v3743
      %3896 = vmatpush1.msra.mxu0 %v3742
      %3897 = vmatprep.subr.mxu0 %v3745
      %3898 = vmatpush1.msra.mxu0 %v3744
      %3899 = vmatprep.subr.mxu0 %v3747
      %3900 = vmatpush1.msra.mxu0 %v3746
      %3901 = vmatprep.subr.mxu0 %v3749
      %3902 = vmatpush1.msra.mxu0 %v3748
      %3903 = vmatprep.subr.mxu0 %v3751
      %3904 = vmatpush1.msra.mxu0 %v3750
      %3905 = vmatprep.subr.mxu0 %v3753
      %3906 = vmatpush1.msra.mxu0 %v3752
      %3907 = vmatprep.subr.mxu0 0.0
      %3908 = vmatpush1.msra.mxu0 0.0
      %3909 = vmatprep.subr.mxu0 0.0
      %3910 = vmatpush1.msra.mxu0 0.0
      %3911 = vmatprep.subr.mxu0 0.0
      %3912 = vmatpush1.msra.mxu0 0.0
      %3913 = vmatprep.subr.mxu0 0.0
      %3914 = vmatpush1.msra.mxu0 0.0
      %3915 = vmatprep.subr.mxu0 0.0
      %3916 = vmatpush1.msra.mxu0 0.0
      %3917 = vmatprep.subr.mxu0 0.0
      %3918 = vmatpush1.msra.mxu0 0.0
      %3919 = vmatprep.subr.mxu0 0.0
      %3920 = vmatpush1.msra.mxu0 0.0
      %3921 = vmatprep.subr.mxu0 0.0
      %3922 = vmatpush1.msra.mxu0 0.0
      %3923 = vmatprep.mubr.f32.mxu0 %v3786
      %3924 = vmatmul.mubr.f32.gmra.mrb[0].mxu0 %v3767
      %v3925 = vpop.f32.mrb[0].mxu0
      %v3926 = vadd.f32 %v3855, %v3925
      %v3927 = vpop.f32.mrb[0].mxu0
      %v3928 = vadd.f32 %v3857, %v3927
      %3929 = vdwg.mxu0
      %vm3930 = vcmp.gt.f32.partialorder %v3926, 0.0
      %vm3931 = vcmp.gt.f32.partialorder %v3928, 0.0
      %v3932 = vmul.f32 %v3926, 0.01
      %v3933 = vmul.f32 %v3928, 0.01
      %v3934 = vsel %vm3930, %v3926, %v3932
      %v3935 = vsel %vm3931, %v3928, %v3933
      %v3936 = vld [vmem:[%s13] sm:$0xff]
      %v3937 = vld [vmem:[%s13 + $0x8] sm:$0xff]
      %v3938 = vld [vmem:[%s13 + $0x10] sm:$0xff]
      %v3939 = vld [vmem:[%s13 + $0x18] sm:$0xff]
      %v3940 = vld [vmem:[%s13 + $0x20] sm:$0xff]
      %v3941 = vld [vmem:[%s13 + $0x28] sm:$0xff]
      %v3942 = vld [vmem:[%s13 + $0x30] sm:$0xff]
      %v3943 = vld [vmem:[%s13 + $0x38] sm:$0xff]
      %v3944 = vld [vmem:[%s13 + $0x40] sm:$0xff]
      %v3945 = vld [vmem:[%s13 + $0x48] sm:$0xff]
      %v3946 = vld [vmem:[%s13 + $0x50] sm:$0xff]
      %v3947 = vld [vmem:[%s13 + $0x58] sm:$0xff]
      %v3948 = vld [vmem:[%s13 + $0x60] sm:$0xff]
      %v3949 = vld [vmem:[%s13 + $0x68] sm:$0xff]
      %v3950 = vld [vmem:[%s13 + $0x70] sm:$0xff]
      %v3951 = vld [vmem:[%s13 + $0x78] sm:$0xff]
      %v3952 = vld [vmem:[%s13 + $0x80] sm:$0xff]
      %v3953 = vld [vmem:[%s13 + $0x88] sm:$0xff]
      %v3954 = vld [vmem:[%s13 + $0x90] sm:$0xff]
      %v3955 = vld [vmem:[%s13 + $0x98] sm:$0xff]
      %v3956 = vld [vmem:[%s13 + $0xa0] sm:$0xff]
      %v3957 = vld [vmem:[%s13 + $0xa8] sm:$0xff]
      %v3958 = vld [vmem:[%s13 + $0xb0] sm:$0xff]
      %v3959 = vld [vmem:[%s13 + $0xb8] sm:$0xff]
      %v3960 = vld [vmem:[%s13 + $0xc0] sm:$0xff]
      %v3961 = vld [vmem:[%s13 + $0xc8] sm:$0xff]
      %v3962 = vld [vmem:[%s13 + $0xd0] sm:$0xff]
      %v3963 = vld [vmem:[%s13 + $0xd8] sm:$0xff]
      %v3964 = vld [vmem:[%s13 + $0xe0] sm:$0xff]
      %v3965 = vld [vmem:[%s13 + $0xe8] sm:$0xff]
      %v3966 = vld [vmem:[%s13 + $0xf0] sm:$0xff]
      %v3967 = vld [vmem:[%s13 + $0xf8] sm:$0xff]
      %v3968 = vld [vmem:[#allocation12] sm:$0x1]
      %3969 = vmatprep.subr.mxu0 0.0
      %3970 = vmatpush1.msra.mxu0 %v3936
      %3971 = vmatprep.subr.mxu0 0.0
      %3972 = vmatpush1.msra.mxu0 %v3937
      %3973 = vmatprep.subr.mxu0 0.0
      %3974 = vmatpush1.msra.mxu0 %v3938
      %3975 = vmatprep.subr.mxu0 0.0
      %3976 = vmatpush1.msra.mxu0 %v3939
      %3977 = vmatprep.subr.mxu0 0.0
      %3978 = vmatpush1.msra.mxu0 %v3940
      %3979 = vmatprep.subr.mxu0 0.0
      %3980 = vmatpush1.msra.mxu0 %v3941
      %3981 = vmatprep.subr.mxu0 0.0
      %3982 = vmatpush1.msra.mxu0 %v3942
      %3983 = vmatprep.subr.mxu0 0.0
      %3984 = vmatpush1.msra.mxu0 %v3943
      %3985 = vmatprep.subr.mxu0 0.0
      %3986 = vmatpush1.msra.mxu0 %v3944
      %3987 = vmatprep.subr.mxu0 0.0
      %3988 = vmatpush1.msra.mxu0 %v3945
      %3989 = vmatprep.subr.mxu0 0.0
      %3990 = vmatpush1.msra.mxu0 %v3946
      %3991 = vmatprep.subr.mxu0 0.0
      %3992 = vmatpush1.msra.mxu0 %v3947
      %3993 = vmatprep.subr.mxu0 0.0
      %3994 = vmatpush1.msra.mxu0 %v3948
      %3995 = vmatprep.subr.mxu0 0.0
      %3996 = vmatpush1.msra.mxu0 %v3949
      %3997 = vmatprep.subr.mxu0 0.0
      %3998 = vmatpush1.msra.mxu0 %v3950
      %3999 = vmatprep.subr.mxu0 0.0
      %4000 = vmatpush1.msra.mxu0 %v3951
      %4001 = vmatprep.subr.mxu0 0.0
      %4002 = vmatpush1.msra.mxu0 %v3952
      %4003 = vmatprep.subr.mxu0 0.0
      %4004 = vmatpush1.msra.mxu0 %v3953
      %4005 = vmatprep.subr.mxu0 0.0
      %4006 = vmatpush1.msra.mxu0 %v3954
      %4007 = vmatprep.subr.mxu0 0.0
      %4008 = vmatpush1.msra.mxu0 %v3955
      %4009 = vmatprep.subr.mxu0 0.0
      %4010 = vmatpush1.msra.mxu0 %v3956
      %4011 = vmatprep.subr.mxu0 0.0
      %4012 = vmatpush1.msra.mxu0 %v3957
      %4013 = vmatprep.subr.mxu0 0.0
      %4014 = vmatpush1.msra.mxu0 %v3958
      %4015 = vmatprep.subr.mxu0 0.0
      %4016 = vmatpush1.msra.mxu0 %v3959
      %4017 = vmatprep.subr.mxu0 0.0
      %4018 = vmatpush1.msra.mxu0 %v3960
      %4019 = vmatprep.subr.mxu0 0.0
      %4020 = vmatpush1.msra.mxu0 %v3961
      %4021 = vmatprep.subr.mxu0 0.0
      %4022 = vmatpush1.msra.mxu0 %v3962
      %4023 = vmatprep.subr.mxu0 0.0
      %4024 = vmatpush1.msra.mxu0 %v3963
      %4025 = vmatprep.subr.mxu0 0.0
      %4026 = vmatpush1.msra.mxu0 %v3964
      %4027 = vmatprep.subr.mxu0 0.0
      %4028 = vmatpush1.msra.mxu0 %v3965
      %4029 = vmatprep.subr.mxu0 0.0
      %4030 = vmatpush1.msra.mxu0 %v3966
      %4031 = vmatprep.subr.mxu0 0.0
      %4032 = vmatpush1.msra.mxu0 %v3967
      %4033 = vmatprep.mubr.f32.mxu0 %v3935
      %4034 = vmatmul.mubr.f32.gmra.mrb[0].mxu0 %v3934
      %v4035 = vpop.f32.mrb[0].mxu0
      %v4036 = vadd.f32 %v3968, %v4035
      %v4037 = vpop.f32.mrb[0].mxu0
      %4038 = vdwg.mxu0
      %vm4039 = vcmask 16384
      %4040 = vst.msk [vmem:[#allocation14] sm:$0x1] %vm4039, %v4036
    $region93: #{tpu_custom_call.1} parent=1 // pred_fallthru
      _
    // Predicated region
    $region94: #{tpu_custom_call.1} parent=1 // pred_check
      _
    $region95: #{tpu_custom_call.1} parent=1 // pred_check_branch
      %4042 = sbr.rel (0) target = $region97
    $region96: #{tpu_custom_call.1} parent=1 // pred_region
      %s4044 = ssub.s32 16, 16
      %4045 = vsyncadd [#allocation5], %s4044
      %s4047 = sshll.u32 [#allocation14], 4
      %s4048 = int_to_ptr.vmem [resolvable:$true] %s4047
      %4050 = dma.vmem_to_hbm [thread:$0]  %s4048, 16, %s15, [#allocation5]
    $region97: #{tpu_custom_call.1} parent=1 // pred_fallthru
      _
    // Predicated region
    $region98: #{tpu_custom_call.1} parent=1 // pred_check
      _
    $region99: #{tpu_custom_call.1} parent=1 // pred_check_branch
      %4052 = sbr.rel (0) target = $region101
    $region100: #{tpu_custom_call.1} parent=1 // pred_region
      %4053 = dma.done [#allocation5], 16
    $region101: #{tpu_custom_call.1} parent=1 // pred_fallthru
      _
    %4054 = vsyncpa [#allocation4], 1
    %4055 = vsyncpa [#allocation7], 1
    %4056 = vsyncpa [#allocation10], 1
    %4057 = vsyncpa [#allocation13], 1
    %4058 = vsyncpa [#allocation5], 1

</llo_original>
